<compile_context>
chip_gen: v5e
topology: v5e:2x2
jax: 0.10.0
libtpu: 0.0.40
codegen_flags: <defaults>
</compile_context>

<pallas_src>
import math
import numpy as np
import jax
import jax.numpy as jnp
from jax import lax
from jax.experimental import pallas as pl
from jax.experimental.pallas import tpu as pltpu

# ----------------------------- configuration --------------------------------
B = 2            # batch
N = 8            # graph nodes (attention seq len / TCN length / GRU seq len)
C = 16           # in_channels (per-node features; attention embed dim)
E = 32           # embed_channels
OUT = 4          # out_channels
HEADS = 2
HD = C // HEADS
TCN_MID = 64     # TemporalConvNet num_channels = [64, embed_channels]
EMBED = 12       # FeSTGCN_net.embed_size
HGRU = E // 2    # GRU hidden
NPER = 8         # periods per node -> Frequency_info last dim = NPER + 1
P = NPER + 1
CATD = 2 * E + P
BH = B * HGRU    # lane-packed GRU state width
W_INFLATION = 25.0
A_LIST = [5, 5, 5, 7, 7, 7, 9, 9]   # func_fourier parameter counts per period index


# =============================================================================
# The single fused kernel.
# =============================================================================
def festgcn_kernel(
        x_ref, wqk_ref, bqk_ref, m25_ref, sh1_ref, sh2_ref,
        wfb0_ref, wf1_ref, wb1_ref, db_ref,
        w1a_ref, b1a_ref, w2a_ref, b2a_ref, wda_ref, bda_ref,
        w1b_ref, b1b_ref, w2b_ref, b2b_ref, wdb_ref, bdb_ref,
        vfreq_ref, bfreq_ref,
        wembt_ref, wembs_ref, wembf_ref, bemb_ref,
        wih_ref, bih_ref, whhblk_ref, bhhblk_ref, wdec_ref, bdec_ref,
        o_ref,
        freq_s, h_all):
    f32 = jnp.float32
    xs = [x_ref[b] for b in range(B)]                     # (N, C) per batch element

    # ---------------- 1. attention weights -> weighted adjacency -------------
    wqk = wqk_ref[...]
    bqk = bqk_ref[...]
    scale = 1.0 / math.sqrt(HD)
    attn_sum = jnp.zeros((N, N), f32)
    for b in range(B):                                    # static unroll
        qk = jnp.dot(xs[b], wqk, preferred_element_type=f32) + bqk   # (N, 2C)
        q = qk[:, :C]
        k = qk[:, C:]
        for h in range(HEADS):
            qh = q[:, h * HD:(h + 1) * HD]
            kh = k[:, h * HD:(h + 1) * HD]
            s = lax.dot_general(qh, kh, (((1,), (1,)), ((), ())),
                                preferred_element_type=f32) * scale
            s = s - jnp.max(s, axis=-1, keepdims=True)
            e = jnp.exp(s)
            attn_sum = attn_sum + e * pl.reciprocal(
                jnp.sum(e, axis=-1, keepdims=True), approx=True)
    # A = 25 * edge_weight * ADJ * mean_b(head-averaged attention)
    A = m25_ref[...] * (attn_sum * (1.0 / (B * HEADS)))

    # normalized forward / backward diffusion operators (guarded reciprocals)
    deg_out = jnp.sum(A, axis=1, keepdims=True)           # (N, 1)
    deg_in = jnp.sum(A, axis=0, keepdims=True)            # (1, N)
    a_fwd = A * pl.reciprocal(jnp.where(deg_out != 0.0, deg_out, 1.0), approx=True)
    a_bwd = A * pl.reciprocal(jnp.where(deg_in != 0.0, deg_in, 1.0), approx=True)

    # ---------------- 2. per-batch spatial / temporal / frequency / embed ----
    wfb0 = wfb0_ref[...]; wf1 = wf1_ref[...]; wb1 = wb1_ref[...]; db = db_ref[...]
    sh1 = sh1_ref[...]; sh2 = sh2_ref[...]
    w1a = w1a_ref[...]; b1a = b1a_ref[...]; w2a = w2a_ref[...]; b2a = b2a_ref[...]
    wda = wda_ref[...]; bda = bda_ref[...]
    w1b = w1b_ref[...]; b1b = b1b_ref[...]; w2b = w2b_ref[...]; b2b = b2b_ref[...]
    wdb = wdb_ref[...]; bdb = bdb_ref[...]
    vfreq = vfreq_ref[...]; bfreq = bfreq_ref[...]
    wembt = wembt_ref[...]; wembs = wembs_ref[...]; wembf = wembf_ref[...]
    bemb = bemb_ref[...]
    wih = wih_ref[...]; bih = bih_ref[...]

    def temporal_block(inp, sh, w1, b1, w2, b2, wd, bd):
        # causal dilated conv (k=2) + chomp:  y[t] = W[1] x[t] + W[0] x[t-d] + b
        # (x[t-d] realized with a precomputed constant shift matrix -> MXU, no iota)
        x_sh = jnp.dot(sh, inp, preferred_element_type=f32)
        y = jnp.maximum(jnp.dot(inp, w1[1], preferred_element_type=f32)
                        + jnp.dot(x_sh, w1[0], preferred_element_type=f32) + b1, 0.0)
        y_sh = jnp.dot(sh, y, preferred_element_type=f32)
        z = jnp.maximum(jnp.dot(y, w2[1], preferred_element_type=f32)
                        + jnp.dot(y_sh, w2[0], preferred_element_type=f32) + b2, 0.0)
        res = jnp.dot(inp, wd, preferred_element_type=f32) + bd
        return jnp.maximum(z + res, 0.0)

    gi_list = []
    for b in range(B):                                    # static unroll over batch
        xb = xs[b]

        # spatial cell: dense K=2 bidirectional diffusion conv + ReLU
        t1o = lax.dot_general(a_fwd, xb, (((0,), (0,)), ((), ())),
                              preferred_element_type=f32)
        t1i = jnp.dot(a_bwd, xb, preferred_element_type=f32)
        spat = jnp.maximum(
            jnp.dot(xb, wfb0, preferred_element_type=f32)
            + jnp.dot(t1o, wf1, preferred_element_type=f32)
            + jnp.dot(t1i, wb1, preferred_element_type=f32) + db, 0.0)   # (N, E)

        # temporal cell: 2-level TCN (k=2, dilations 1 and 2); final ReLU idempotent
        h1 = temporal_block(xb, sh1, w1a, b1a, w2a, b2a, wda, bda)
        temporal = temporal_block(h1, sh2, w1b, b1b, w2b, b2b, wdb, bdb)  # (N, E)

        # frequency cell: closed-form per-node matvec x[n] @ V[n]  (+ bias, ReLU)
        for n in range(N):
            freq_s[n:n + 1, :] = jnp.dot(xb[n:n + 1, :], vfreq[n],
                                         preferred_element_type=f32)
        freq = jnp.maximum(freq_s[...] + bfreq, 0.0)                      # (N, P)

        # embedding Linear applied to the (virtual) concat [temporal|spatial|freq]
        emb = (jnp.dot(temporal, wembt, preferred_element_type=f32)
               + jnp.dot(spat, wembs, preferred_element_type=f32)
               + jnp.dot(freq, wembf, preferred_element_type=f32) + bemb)  # (N, EMBED)
        # GRU input projection hoisted out of the recurrence
        gi_list.append(jnp.dot(emb, wih, preferred_element_type=f32) + bih)  # (N, 3H)

    # ---------------- 3. GRU over the node axis, both batches lane-packed ----
    Hh = HGRU
    # gate-major / batch-minor lane layout: [r_b0|r_b1|z_b0|z_b1|n_b0|n_b1]
    gi_lane = jnp.concatenate(
        [gi_list[b][:, g * Hh:(g + 1) * Hh] for g in range(3) for b in range(B)],
        axis=1)                                           # (N, 3*BH)
    whh_blk = whhblk_ref[...]                             # (BH, 3*BH) block-diagonal
    bhh_blk = bhhblk_ref[...]                             # (1, 3*BH)
    h = jnp.zeros((1, BH), f32)
    for t in range(N):                                    # static unroll (N = 8)
        gi_t = gi_lane[t:t + 1, :]
        gh = jnp.dot(h, whh_blk, preferred_element_type=f32) + bhh_blk
        r = jax.nn.sigmoid(gi_t[:, 0:BH] + gh[:, 0:BH])
        z = jax.nn.sigmoid(gi_t[:, BH:2 * BH] + gh[:, BH:2 * BH])
        ng = jnp.tanh(gi_t[:, 2 * BH:3 * BH] + r * gh[:, 2 * BH:3 * BH])
        h = (1.0 - z) * ng + z * h
        h_all[t:t + 1, :] = h

    # ---------------- 4. decoder: ReLU -> Linear (DropConnect = identity) ----
    wdec = wdec_ref[...]
    bdec = bdec_ref[...]
    for b in range(B):
        hb = h_all[:, b * Hh:(b + 1) * Hh]                # (N, HGRU)
        o_ref[b] = jnp.dot(jnp.maximum(hb, 0.0), wdec,
                           preferred_element_type=f32) + bdec


def festgcn_forward(x, prep):
    return pl.pallas_call(
        festgcn_kernel,
        out_shape=jax.ShapeDtypeStruct((B, N, OUT), jnp.float32),
        scratch_shapes=[
            pltpu.VMEM((N, P), jnp.float32),      # per-node frequency rows
            pltpu.VMEM((N, BH), jnp.float32),     # GRU hidden states (both batches)
        ],
    )(x, prep["wqk"], prep["bqk"], prep["m25"], prep["sh1"], prep["sh2"],
      prep["wfb0"], prep["wf1"], prep["wb1"], prep["db"],
      prep["w1a"], prep["b1a"], prep["w2a"], prep["b2a"], prep["wda"], prep["bda"],
      prep["w1b"], prep["b1b"], prep["w2b"], prep["b2b"], prep["wdb"], prep["bdb"],
      prep["vfreq"], prep["bfreq"],
      prep["wembt"], prep["wembs"], prep["wembf"], prep["bemb"],
      prep["wih"], prep["bih"], prep["whhblk"], prep["bhhblk"],
      prep["wdec"], prep["bdec"])


# =============================================================================
# Frequency cell collapsed to per-node (C, NPER+1) matrices (host-side, once).
# =============================================================================
def build_vfreq(period_np, w_last_np):
    # TODO(synk): scipy.optimize.curve_fit of the (linear-in-parameters) Fourier
    # model with random init is replaced by its deterministic closed-form
    # least-squares projection; the sequential deflation + final Linear row are
    # collapsed into a single per-node (C, NPER+1) matrix used inside the kernel.
    xg = np.arange(1, C + 1, dtype=np.float64)
    w_last = np.asarray(w_last_np, dtype=np.float64)
    vfreq = np.zeros((N, C, NPER + 1), dtype=np.float64)
    eye = np.eye(C)
    for node in range(N):
        M = eye.copy()
        for k, i in enumerate(range(NPER - 1, -1, -1)):    # same deflation order
            T = float(period_np[node, i])
            D = A_LIST[i] // 2
            cols = [np.ones_like(xg)]
            for deg in range(1, D + 1):
                cols.append(np.cos(deg * 2.0 * np.pi / T * xg))
                cols.append(np.sin(deg * 2.0 * np.pi / T * xg))
            Bm = np.stack(cols, axis=1)                    # (C, n_basis)
            Pk = Bm @ np.linalg.pinv(Bm)                   # orthogonal projection
            vfreq[node, :, k] = (M @ Pk) @ w_last
            M = M @ (eye - Pk)
        vfreq[node, :, NPER] = M @ w_last                  # residual pattern
    return jnp.asarray(vfreq.astype(np.float32))


# =============================================================================
# Deterministic synthetic parameters (mirrors the __init__ shapes).
# =============================================================================
def init_params(key, adj_dense):
    keys = iter(jax.random.split(key, 64))
    nrm = lambda shape, s=0.1: jax.random.normal(next(keys), shape, jnp.float32) * s
    zeros = lambda shape: jnp.zeros(shape, jnp.float32)
    p = {"ADJ": adj_dense}
    # MultiheadAttention (only Q/K projections matter for the attention weights)
    p["wq"], p["wk"] = nrm((C, C)), nrm((C, C))
    p["bq"], p["bk"] = zeros((1, C)), zeros((1, C))
    # DConv(in_channels, embed_channels, K=2)
    p["wf0"], p["wf1"] = nrm((C, E)), nrm((C, E))
    p["wb0"], p["wb1"] = nrm((C, E)), nrm((C, E))
    p["db"] = zeros((1, E))
    # TCN block 0: C -> 64 (k=2, d=1); block 1: 64 -> E (k=2, d=2)
    p["w1a"], p["b1a"] = nrm((2, C, TCN_MID), 0.01), zeros((1, TCN_MID))
    p["w2a"], p["b2a"] = nrm((2, TCN_MID, TCN_MID), 0.01), zeros((1, TCN_MID))
    p["wda"], p["bda"] = nrm((C, TCN_MID), 0.01), zeros((1, TCN_MID))
    p["w1b"], p["b1b"] = nrm((2, TCN_MID, E), 0.01), zeros((1, E))
    p["w2b"], p["b2b"] = nrm((2, E, E), 0.01), zeros((1, E))
    p["wdb"], p["bdb"] = nrm((TCN_MID, E), 0.01), zeros((1, E))
    # Frequency_net.linear(C -> OUT): only the last output row / bias is used
    p["w_freq_last"], p["b_freq_last"] = nrm((C,)), jnp.float32(0.0)
    # embedding Linear(2E + 9 -> 12)
    p["wemb"], p["bemb"] = nrm((CATD, EMBED)), zeros((1, EMBED))
    # GRU(embed_size -> E//2), gate order r, z, n (PyTorch)
    p["wih"], p["whh"] = nrm((EMBED, 3 * HGRU)), nrm((HGRU, 3 * HGRU))
    p["bih"], p["bhh"] = zeros((1, 3 * HGRU)), zeros((1, 3 * HGRU))
    # decoder Linear(E//2 -> OUT)
    p["wdec"], p["bdec"] = nrm((HGRU, OUT)), zeros((1, OUT))
    return p


def prepare_inputs(p, edge_index, edge_weight, period_np):
    """All static precomputation (graph scatter, weight fusion) done eagerly once."""
    f32 = jnp.float32
    prep = {}
    ew_dense = jnp.zeros((N, N), f32).at[edge_index[0], edge_index[1]].set(edge_weight)
    prep["m25"] = W_INFLATION * ew_dense * p["ADJ"]
    # fused Q|K projection
    prep["wqk"] = jnp.concatenate([p["wq"], p["wk"]], axis=1)
    prep["bqk"] = jnp.concatenate([p["bq"], p["bk"]], axis=1)
    # constant causal shift matrices for the TCN (dilations 1 and 2)
    prep["sh1"] = jnp.asarray(np.eye(N, k=-1).astype(np.float32))
    prep["sh2"] = jnp.asarray(np.eye(N, k=-2).astype(np.float32))
    # DConv: wf0 and wb0 both multiply x -> pre-sum
    prep["wfb0"] = p["wf0"] + p["wb0"]
    prep["wf1"], prep["wb1"], prep["db"] = p["wf1"], p["wb1"], p["db"]
    for k in ("w1a", "b1a", "w2a", "b2a", "wda", "bda",
              "w1b", "b1b", "w2b", "b2b", "wdb", "bdb"):
        prep[k] = p[k]
    # collapsed frequency cell
    prep["vfreq"] = build_vfreq(period_np, np.asarray(p["w_freq_last"]))
    prep["bfreq"] = jnp.full((1, NPER + 1), p["b_freq_last"], f32)
    # embedding Linear split over the [temporal|spatial|freq] concat pieces
    prep["wembt"] = p["wemb"][:E]
    prep["wembs"] = p["wemb"][E:2 * E]
    prep["wembf"] = p["wemb"][2 * E:]
    prep["bemb"] = p["bemb"]
    prep["wih"], prep["bih"] = p["wih"], p["bih"]
    # block-diagonal W_hh / tiled b_hh for the lane-packed (batched) GRU state
    whh = np.asarray(p["whh"]); bhh = np.asarray(p["bhh"])
    whhblk = np.zeros((BH, 3 * BH), np.float32)
    bhhblk = np.zeros((1, 3 * BH), np.float32)
    Hh = HGRU
    for b in range(B):
        for g in range(3):
            whhblk[b * Hh:(b + 1) * Hh, g * BH + b * Hh:g * BH + (b + 1) * Hh] = \
                whh[:, g * Hh:(g + 1) * Hh]
            bhhblk[0, g * BH + b * Hh:g * BH + (b + 1) * Hh] = bhh[0, g * Hh:(g + 1) * Hh]
    prep["whhblk"] = jnp.asarray(whhblk)
    prep["bhhblk"] = jnp.asarray(bhhblk)
    prep["wdec"], prep["bdec"] = p["wdec"], p["bdec"]
    return prep


if __name__ == "__main__":
    key = jax.random.PRNGKey(0)
    kx, kw, ke = jax.random.split(key, 3)

    # Synthetic graph: ring + self-loops (guarantees nonzero in/out degrees).
    adj_np = np.zeros((N, N), dtype=np.float32)
    for i in range(N):
        adj_np[i, i] = 1.0
        adj_np[i, (i + 1) % N] = 1.0
        adj_np[i, (i - 1) % N] = 1.0
    src, dst = np.nonzero(adj_np)                         # row-major, like torch.nonzero
    edge_index = jnp.asarray(np.stack([src, dst]), dtype=jnp.int32)
    edge_weight = 0.5 + jax.random.uniform(ke, (src.shape[0],), jnp.float32)

    # Synthetic per-node periods (N, NPER).
    period_np = np.tile(np.array([24.0, 12.0, 8.0, 6.0, 4.0, 3.0, 16.0, 5.0]), (N, 1))
    period_np += 0.25 * np.arange(N)[:, None]

    params = init_params(kw, jnp.asarray(adj_np))
    prep = prepare_inputs(params, edge_index, edge_weight, period_np)
    x = jax.random.normal(kx, (B, N, C), jnp.float32)

    fwd = jax.jit(festgcn_forward)
    out = jax.block_until_ready(fwd(x, prep))
    assert out.shape == (B, N, OUT)
    assert bool(jnp.all(jnp.isfinite(out)))
    print("KERNEL_OK")
</pallas_src>

<mosaic_0001>
module attributes {stable_mosaic.version = 11 : i64} {
  func.func @festgcn_kernel(%arg0: memref<2x8x16xf32, #tpu.memory_space<vmem>>, %arg1: memref<16x32xf32, #tpu.memory_space<vmem>>, %arg2: memref<1x32xf32, #tpu.memory_space<vmem>>, %arg3: memref<8x8xf32, #tpu.memory_space<vmem>>, %arg4: memref<8x8xf32, #tpu.memory_space<vmem>>, %arg5: memref<8x8xf32, #tpu.memory_space<vmem>>, %arg6: memref<16x32xf32, #tpu.memory_space<vmem>>, %arg7: memref<16x32xf32, #tpu.memory_space<vmem>>, %arg8: memref<16x32xf32, #tpu.memory_space<vmem>>, %arg9: memref<1x32xf32, #tpu.memory_space<vmem>>, %arg10: memref<2x16x64xf32, #tpu.memory_space<vmem>>, %arg11: memref<1x64xf32, #tpu.memory_space<vmem>>, %arg12: memref<2x64x64xf32, #tpu.memory_space<vmem>>, %arg13: memref<1x64xf32, #tpu.memory_space<vmem>>, %arg14: memref<16x64xf32, #tpu.memory_space<vmem>>, %arg15: memref<1x64xf32, #tpu.memory_space<vmem>>, %arg16: memref<2x64x32xf32, #tpu.memory_space<vmem>>, %arg17: memref<1x32xf32, #tpu.memory_space<vmem>>, %arg18: memref<2x32x32xf32, #tpu.memory_space<vmem>>, %arg19: memref<1x32xf32, #tpu.memory_space<vmem>>, %arg20: memref<64x32xf32, #tpu.memory_space<vmem>>, %arg21: memref<1x32xf32, #tpu.memory_space<vmem>>, %arg22: memref<8x16x9xf32, #tpu.memory_space<vmem>>, %arg23: memref<1x9xf32, #tpu.memory_space<vmem>>, %arg24: memref<32x12xf32, #tpu.memory_space<vmem>>, %arg25: memref<32x12xf32, #tpu.memory_space<vmem>>, %arg26: memref<9x12xf32, #tpu.memory_space<vmem>>, %arg27: memref<1x12xf32, #tpu.memory_space<vmem>>, %arg28: memref<12x48xf32, #tpu.memory_space<vmem>>, %arg29: memref<1x48xf32, #tpu.memory_space<vmem>>, %arg30: memref<32x96xf32, #tpu.memory_space<vmem>>, %arg31: memref<1x96xf32, #tpu.memory_space<vmem>>, %arg32: memref<16x4xf32, #tpu.memory_space<vmem>>, %arg33: memref<1x4xf32, #tpu.memory_space<vmem>>, %arg34: memref<2x8x4xf32, #tpu.memory_space<vmem>>, %arg35: memref<8x9xf32, #tpu.memory_space<vmem>>, %arg36: memref<8x32xf32, #tpu.memory_space<vmem>>) attributes {dimension_semantics = [], scalar_prefetch = 0 : i64, scratch_operands = 2 : i64, tpu.core_type = #tpu.core_type<tc>} {
    %c0 = arith.constant 0 : index
    %c0_0 = arith.constant 0 : index
    %c0_1 = arith.constant 0 : index
    %0 = vector.load %arg0[%c0, %c0_0, %c0_1] : memref<2x8x16xf32, #tpu.memory_space<vmem>>, vector<1x8x16xf32>
    %1 = vector.shape_cast %0 : vector<1x8x16xf32> to vector<8x16xf32>
    %c1 = arith.constant 1 : index
    %c0_2 = arith.constant 0 : index
    %c0_3 = arith.constant 0 : index
    %2 = vector.load %arg0[%c1, %c0_2, %c0_3] : memref<2x8x16xf32, #tpu.memory_space<vmem>>, vector<1x8x16xf32>
    %3 = vector.shape_cast %2 : vector<1x8x16xf32> to vector<8x16xf32>
    %c0_4 = arith.constant 0 : index
    %c0_5 = arith.constant 0 : index
    %4 = vector.load %arg1[%c0_4, %c0_5] : memref<16x32xf32, #tpu.memory_space<vmem>>, vector<16x32xf32>
    %c0_6 = arith.constant 0 : index
    %c0_7 = arith.constant 0 : index
    %5 = vector.load %arg2[%c0_6, %c0_7] : memref<1x32xf32, #tpu.memory_space<vmem>>, vector<1x32xf32>
    %cst = arith.constant 0.000000e+00 : f32
    %6 = vector.broadcast %cst : f32 to vector<8x8xf32>
    %cst_8 = arith.constant dense<0.000000e+00> : vector<8x32xf32>
    %7 = tpu.matmul %1, %4, %cst_8 {dimension_numbers = #tpu.dot_dimension_numbers<[1], [0], [0], [1], [0, 0, 1, 1], [], []>} : vector<8x16xf32>, vector<16x32xf32>, vector<8x32xf32> -> vector<8x32xf32>
    %8 = vector.broadcast %5 : vector<1x32xf32> to vector<8x32xf32>
    %9 = arith.addf %7, %8 : vector<8x32xf32>
    %10 = vector.extract_strided_slice %9 {offsets = [0, 0], sizes = [8, 16], strides = [1, 1]} : vector<8x32xf32> to vector<8x16xf32>
    %11 = vector.extract_strided_slice %9 {offsets = [0, 16], sizes = [8, 16], strides = [1, 1]} : vector<8x32xf32> to vector<8x16xf32>
    %12 = vector.extract_strided_slice %10 {offsets = [0, 0], sizes = [8, 8], strides = [1, 1]} : vector<8x16xf32> to vector<8x8xf32>
    %13 = vector.extract_strided_slice %11 {offsets = [0, 0], sizes = [8, 8], strides = [1, 1]} : vector<8x16xf32> to vector<8x8xf32>
    %cst_9 = arith.constant dense<0.000000e+00> : vector<8x8xf32>
    %14 = tpu.matmul %12, %13, %cst_9 {dimension_numbers = #tpu.dot_dimension_numbers<[1], [1], [0], [0], [0, 0, 1, 0], [], []>} : vector<8x8xf32>, vector<8x8xf32>, vector<8x8xf32> -> vector<8x8xf32>
    %cst_10 = arith.constant 0.353553385 : f32
    %15 = vector.broadcast %cst_10 : f32 to vector<8x8xf32>
    %16 = arith.mulf %14, %15 : vector<8x8xf32>
    %cst_11 = arith.constant dense<0xFF800000> : vector<8xf32>
    %17 = vector.multi_reduction <maximumf>, %16, %cst_11 [1] : vector<8x8xf32> to vector<8xf32>
    %18 = vector.shape_cast %17 : vector<8xf32> to vector<8x1xf32>
    %19 = vector.broadcast %18 : vector<8x1xf32> to vector<8x8xf32>
    %20 = arith.subf %16, %19 : vector<8x8xf32>
    %21 = math.exp %20 : vector<8x8xf32>
    %cst_12 = arith.constant dense<0.000000e+00> : vector<8xf32>
    %22 = vector.multi_reduction <add>, %21, %cst_12 [1] : vector<8x8xf32> to vector<8xf32>
    %23 = vector.shape_cast %22 : vector<8xf32> to vector<8x1xf32>
    %24 = tpu.reciprocal %23 {approx = true} : vector<8x1xf32> -> vector<8x1xf32>
    %25 = vector.broadcast %24 : vector<8x1xf32> to vector<8x8xf32>
    %26 = arith.mulf %21, %25 : vector<8x8xf32>
    %27 = arith.addf %6, %26 : vector<8x8xf32>
    %28 = vector.extract_strided_slice %10 {offsets = [0, 8], sizes = [8, 8], strides = [1, 1]} : vector<8x16xf32> to vector<8x8xf32>
    %29 = vector.extract_strided_slice %11 {offsets = [0, 8], sizes = [8, 8], strides = [1, 1]} : vector<8x16xf32> to vector<8x8xf32>
    %cst_13 = arith.constant dense<0.000000e+00> : vector<8x8xf32>
    %30 = tpu.matmul %28, %29, %cst_13 {dimension_numbers = #tpu.dot_dimension_numbers<[1], [1], [0], [0], [0, 0, 1, 0], [], []>} : vector<8x8xf32>, vector<8x8xf32>, vector<8x8xf32> -> vector<8x8xf32>
    %cst_14 = arith.constant 0.353553385 : f32
    %31 = vector.broadcast %cst_14 : f32 to vector<8x8xf32>
    %32 = arith.mulf %30, %31 : vector<8x8xf32>
    %cst_15 = arith.constant dense<0xFF800000> : vector<8xf32>
    %33 = vector.multi_reduction <maximumf>, %32, %cst_15 [1] : vector<8x8xf32> to vector<8xf32>
    %34 = vector.shape_cast %33 : vector<8xf32> to vector<8x1xf32>
    %35 = vector.broadcast %34 : vector<8x1xf32> to vector<8x8xf32>
    %36 = arith.subf %32, %35 : vector<8x8xf32>
    %37 = math.exp %36 : vector<8x8xf32>
    %cst_16 = arith.constant dense<0.000000e+00> : vector<8xf32>
    %38 = vector.multi_reduction <add>, %37, %cst_16 [1] : vector<8x8xf32> to vector<8xf32>
    %39 = vector.shape_cast %38 : vector<8xf32> to vector<8x1xf32>
    %40 = tpu.reciprocal %39 {approx = true} : vector<8x1xf32> -> vector<8x1xf32>
    %41 = vector.broadcast %40 : vector<8x1xf32> to vector<8x8xf32>
    %42 = arith.mulf %37, %41 : vector<8x8xf32>
    %43 = arith.addf %27, %42 : vector<8x8xf32>
    %cst_17 = arith.constant dense<0.000000e+00> : vector<8x32xf32>
    %44 = tpu.matmul %3, %4, %cst_17 {dimension_numbers = #tpu.dot_dimension_numbers<[1], [0], [0], [1], [0, 0, 1, 1], [], []>} : vector<8x16xf32>, vector<16x32xf32>, vector<8x32xf32> -> vector<8x32xf32>
    %45 = vector.broadcast %5 : vector<1x32xf32> to vector<8x32xf32>
    %46 = arith.addf %44, %45 : vector<8x32xf32>
    %47 = vector.extract_strided_slice %46 {offsets = [0, 0], sizes = [8, 16], strides = [1, 1]} : vector<8x32xf32> to vector<8x16xf32>
    %48 = vector.extract_strided_slice %46 {offsets = [0, 16], sizes = [8, 16], strides = [1, 1]} : vector<8x32xf32> to vector<8x16xf32>
    %49 = vector.extract_strided_slice %47 {offsets = [0, 0], sizes = [8, 8], strides = [1, 1]} : vector<8x16xf32> to vector<8x8xf32>
    %50 = vector.extract_strided_slice %48 {offsets = [0, 0], sizes = [8, 8], strides = [1, 1]} : vector<8x16xf32> to vector<8x8xf32>
    %cst_18 = arith.constant dense<0.000000e+00> : vector<8x8xf32>
    %51 = tpu.matmul %49, %50, %cst_18 {dimension_numbers = #tpu.dot_dimension_numbers<[1], [1], [0], [0], [0, 0, 1, 0], [], []>} : vector<8x8xf32>, vector<8x8xf32>, vector<8x8xf32> -> vector<8x8xf32>
    %cst_19 = arith.constant 0.353553385 : f32
    %52 = vector.broadcast %cst_19 : f32 to vector<8x8xf32>
    %53 = arith.mulf %51, %52 : vector<8x8xf32>
    %cst_20 = arith.constant dense<0xFF800000> : vector<8xf32>
    %54 = vector.multi_reduction <maximumf>, %53, %cst_20 [1] : vector<8x8xf32> to vector<8xf32>
    %55 = vector.shape_cast %54 : vector<8xf32> to vector<8x1xf32>
    %56 = vector.broadcast %55 : vector<8x1xf32> to vector<8x8xf32>
    %57 = arith.subf %53, %56 : vector<8x8xf32>
    %58 = math.exp %57 : vector<8x8xf32>
    %cst_21 = arith.constant dense<0.000000e+00> : vector<8xf32>
    %59 = vector.multi_reduction <add>, %58, %cst_21 [1] : vector<8x8xf32> to vector<8xf32>
    %60 = vector.shape_cast %59 : vector<8xf32> to vector<8x1xf32>
    %61 = tpu.reciprocal %60 {approx = true} : vector<8x1xf32> -> vector<8x1xf32>
    %62 = vector.broadcast %61 : vector<8x1xf32> to vector<8x8xf32>
    %63 = arith.mulf %58, %62 : vector<8x8xf32>
    %64 = arith.addf %43, %63 : vector<8x8xf32>
    %65 = vector.extract_strided_slice %47 {offsets = [0, 8], sizes = [8, 8], strides = [1, 1]} : vector<8x16xf32> to vector<8x8xf32>
    %66 = vector.extract_strided_slice %48 {offsets = [0, 8], sizes = [8, 8], strides = [1, 1]} : vector<8x16xf32> to vector<8x8xf32>
    %cst_22 = arith.constant dense<0.000000e+00> : vector<8x8xf32>
    %67 = tpu.matmul %65, %66, %cst_22 {dimension_numbers = #tpu.dot_dimension_numbers<[1], [1], [0], [0], [0, 0, 1, 0], [], []>} : vector<8x8xf32>, vector<8x8xf32>, vector<8x8xf32> -> vector<8x8xf32>
    %cst_23 = arith.constant 0.353553385 : f32
    %68 = vector.broadcast %cst_23 : f32 to vector<8x8xf32>
    %69 = arith.mulf %67, %68 : vector<8x8xf32>
    %cst_24 = arith.constant dense<0xFF800000> : vector<8xf32>
    %70 = vector.multi_reduction <maximumf>, %69, %cst_24 [1] : vector<8x8xf32> to vector<8xf32>
    %71 = vector.shape_cast %70 : vector<8xf32> to vector<8x1xf32>
    %72 = vector.broadcast %71 : vector<8x1xf32> to vector<8x8xf32>
    %73 = arith.subf %69, %72 : vector<8x8xf32>
    %74 = math.exp %73 : vector<8x8xf32>
    %cst_25 = arith.constant dense<0.000000e+00> : vector<8xf32>
    %75 = vector.multi_reduction <add>, %74, %cst_25 [1] : vector<8x8xf32> to vector<8xf32>
    %76 = vector.shape_cast %75 : vector<8xf32> to vector<8x1xf32>
    %77 = tpu.reciprocal %76 {approx = true} : vector<8x1xf32> -> vector<8x1xf32>
    %78 = vector.broadcast %77 : vector<8x1xf32> to vector<8x8xf32>
    %79 = arith.mulf %74, %78 : vector<8x8xf32>
    %80 = arith.addf %64, %79 : vector<8x8xf32>
    %c0_26 = arith.constant 0 : index
    %c0_27 = arith.constant 0 : index
    %81 = vector.load %arg3[%c0_26, %c0_27] : memref<8x8xf32, #tpu.memory_space<vmem>>, vector<8x8xf32>
    %cst_28 = arith.constant 2.500000e-01 : f32
    %82 = vector.broadcast %cst_28 : f32 to vector<8x8xf32>
    %83 = arith.mulf %80, %82 : vector<8x8xf32>
    %84 = arith.mulf %81, %83 : vector<8x8xf32>
    %cst_29 = arith.constant dense<0.000000e+00> : vector<8xf32>
    %85 = vector.multi_reduction <add>, %84, %cst_29 [1] : vector<8x8xf32> to vector<8xf32>
    %86 = vector.shape_cast %85 : vector<8xf32> to vector<8x1xf32>
    %cst_30 = arith.constant dense<0.000000e+00> : vector<8xf32>
    %87 = vector.multi_reduction <add>, %84, %cst_30 [0] : vector<8x8xf32> to vector<8xf32>
    %88 = vector.shape_cast %87 : vector<8xf32> to vector<1x8xf32>
    %cst_31 = arith.constant 0.000000e+00 : f32
    %89 = vector.broadcast %cst_31 : f32 to vector<8x1xf32>
    %90 = arith.cmpf one, %86, %89 : vector<8x1xf32>
    %cst_32 = arith.constant 1.000000e+00 : f32
    %91 = vector.broadcast %cst_32 : f32 to vector<8x1xf32>
    %92 = arith.select %90, %86, %91 : vector<8x1xi1>, vector<8x1xf32>
    %93 = tpu.reciprocal %92 {approx = true} : vector<8x1xf32> -> vector<8x1xf32>
    %94 = vector.broadcast %93 : vector<8x1xf32> to vector<8x8xf32>
    %95 = arith.mulf %84, %94 : vector<8x8xf32>
    %cst_33 = arith.constant 0.000000e+00 : f32
    %96 = vector.broadcast %cst_33 : f32 to vector<1x8xf32>
    %97 = arith.cmpf one, %88, %96 : vector<1x8xf32>
    %cst_34 = arith.constant 1.000000e+00 : f32
    %98 = vector.broadcast %cst_34 : f32 to vector<1x8xf32>
    %99 = arith.select %97, %88, %98 : vector<1x8xi1>, vector<1x8xf32>
    %100 = tpu.reciprocal %99 {approx = true} : vector<1x8xf32> -> vector<1x8xf32>
    %101 = vector.broadcast %100 : vector<1x8xf32> to vector<8x8xf32>
    %102 = arith.mulf %84, %101 : vector<8x8xf32>
    %c0_35 = arith.constant 0 : index
    %c0_36 = arith.constant 0 : index
    %103 = vector.load %arg6[%c0_35, %c0_36] : memref<16x32xf32, #tpu.memory_space<vmem>>, vector<16x32xf32>
    %c0_37 = arith.constant 0 : index
    %c0_38 = arith.constant 0 : index
    %104 = vector.load %arg7[%c0_37, %c0_38] : memref<16x32xf32, #tpu.memory_space<vmem>>, vector<16x32xf32>
    %c0_39 = arith.constant 0 : index
    %c0_40 = arith.constant 0 : index
    %105 = vector.load %arg8[%c0_39, %c0_40] : memref<16x32xf32, #tpu.memory_space<vmem>>, vector<16x32xf32>
    %c0_41 = arith.constant 0 : index
    %c0_42 = arith.constant 0 : index
    %106 = vector.load %arg9[%c0_41, %c0_42] : memref<1x32xf32, #tpu.memory_space<vmem>>, vector<1x32xf32>
    %c0_43 = arith.constant 0 : index
    %c0_44 = arith.constant 0 : index
    %107 = vector.load %arg4[%c0_43, %c0_44] : memref<8x8xf32, #tpu.memory_space<vmem>>, vector<8x8xf32>
    %c0_45 = arith.constant 0 : index
    %c0_46 = arith.constant 0 : index
    %108 = vector.load %arg5[%c0_45, %c0_46] : memref<8x8xf32, #tpu.memory_space<vmem>>, vector<8x8xf32>
    %c0_47 = arith.constant 0 : index
    %c0_48 = arith.constant 0 : index
    %c0_49 = arith.constant 0 : index
    %109 = vector.load %arg10[%c0_47, %c0_48, %c0_49] : memref<2x16x64xf32, #tpu.memory_space<vmem>>, vector<2x16x64xf32>
    %c0_50 = arith.constant 0 : index
    %c0_51 = arith.constant 0 : index
    %110 = vector.load %arg11[%c0_50, %c0_51] : memref<1x64xf32, #tpu.memory_space<vmem>>, vector<1x64xf32>
    %c0_52 = arith.constant 0 : index
    %c0_53 = arith.constant 0 : index
    %c0_54 = arith.constant 0 : index
    %111 = vector.load %arg12[%c0_52, %c0_53, %c0_54] : memref<2x64x64xf32, #tpu.memory_space<vmem>>, vector<2x64x64xf32>
    %c0_55 = arith.constant 0 : index
    %c0_56 = arith.constant 0 : index
    %112 = vector.load %arg13[%c0_55, %c0_56] : memref<1x64xf32, #tpu.memory_space<vmem>>, vector<1x64xf32>
    %c0_57 = arith.constant 0 : index
    %c0_58 = arith.constant 0 : index
    %113 = vector.load %arg14[%c0_57, %c0_58] : memref<16x64xf32, #tpu.memory_space<vmem>>, vector<16x64xf32>
    %c0_59 = arith.constant 0 : index
    %c0_60 = arith.constant 0 : index
    %114 = vector.load %arg15[%c0_59, %c0_60] : memref<1x64xf32, #tpu.memory_space<vmem>>, vector<1x64xf32>
    %c0_61 = arith.constant 0 : index
    %c0_62 = arith.constant 0 : index
    %c0_63 = arith.constant 0 : index
    %115 = vector.load %arg16[%c0_61, %c0_62, %c0_63] : memref<2x64x32xf32, #tpu.memory_space<vmem>>, vector<2x64x32xf32>
    %c0_64 = arith.constant 0 : index
    %c0_65 = arith.constant 0 : index
    %116 = vector.load %arg17[%c0_64, %c0_65] : memref<1x32xf32, #tpu.memory_space<vmem>>, vector<1x32xf32>
    %c0_66 = arith.constant 0 : index
    %c0_67 = arith.constant 0 : index
    %c0_68 = arith.constant 0 : index
    %117 = vector.load %arg18[%c0_66, %c0_67, %c0_68] : memref<2x32x32xf32, #tpu.memory_space<vmem>>, vector<2x32x32xf32>
    %c0_69 = arith.constant 0 : index
    %c0_70 = arith.constant 0 : index
    %118 = vector.load %arg19[%c0_69, %c0_70] : memref<1x32xf32, #tpu.memory_space<vmem>>, vector<1x32xf32>
    %c0_71 = arith.constant 0 : index
    %c0_72 = arith.constant 0 : index
    %119 = vector.load %arg20[%c0_71, %c0_72] : memref<64x32xf32, #tpu.memory_space<vmem>>, vector<64x32xf32>
    %c0_73 = arith.constant 0 : index
    %c0_74 = arith.constant 0 : index
    %120 = vector.load %arg21[%c0_73, %c0_74] : memref<1x32xf32, #tpu.memory_space<vmem>>, vector<1x32xf32>
    %c0_75 = arith.constant 0 : index
    %c0_76 = arith.constant 0 : index
    %c0_77 = arith.constant 0 : index
    %121 = vector.load %arg22[%c0_75, %c0_76, %c0_77] : memref<8x16x9xf32, #tpu.memory_space<vmem>>, vector<8x16x9xf32>
    %c0_78 = arith.constant 0 : index
    %c0_79 = arith.constant 0 : index
    %122 = vector.load %arg23[%c0_78, %c0_79] : memref<1x9xf32, #tpu.memory_space<vmem>>, vector<1x9xf32>
    %c0_80 = arith.constant 0 : index
    %c0_81 = arith.constant 0 : index
    %123 = vector.load %arg24[%c0_80, %c0_81] : memref<32x12xf32, #tpu.memory_space<vmem>>, vector<32x12xf32>
    %c0_82 = arith.constant 0 : index
    %c0_83 = arith.constant 0 : index
    %124 = vector.load %arg25[%c0_82, %c0_83] : memref<32x12xf32, #tpu.memory_space<vmem>>, vector<32x12xf32>
    %c0_84 = arith.constant 0 : index
    %c0_85 = arith.constant 0 : index
    %125 = vector.load %arg26[%c0_84, %c0_85] : memref<9x12xf32, #tpu.memory_space<vmem>>, vector<9x12xf32>
    %c0_86 = arith.constant 0 : index
    %c0_87 = arith.constant 0 : index
    %126 = vector.load %arg27[%c0_86, %c0_87] : memref<1x12xf32, #tpu.memory_space<vmem>>, vector<1x12xf32>
    %c0_88 = arith.constant 0 : index
    %c0_89 = arith.constant 0 : index
    %127 = vector.load %arg28[%c0_88, %c0_89] : memref<12x48xf32, #tpu.memory_space<vmem>>, vector<12x48xf32>
    %c0_90 = arith.constant 0 : index
    %c0_91 = arith.constant 0 : index
    %128 = vector.load %arg29[%c0_90, %c0_91] : memref<1x48xf32, #tpu.memory_space<vmem>>, vector<1x48xf32>
    %cst_92 = arith.constant dense<0.000000e+00> : vector<8x16xf32>
    %129 = tpu.matmul %95, %1, %cst_92 {dimension_numbers = #tpu.dot_dimension_numbers<[0], [0], [1], [1], [0, 1, 1, 1], [], []>} : vector<8x8xf32>, vector<8x16xf32>, vector<8x16xf32> -> vector<8x16xf32>
    %cst_93 = arith.constant dense<0.000000e+00> : vector<8x16xf32>
    %130 = tpu.matmul %102, %1, %cst_93 {dimension_numbers = #tpu.dot_dimension_numbers<[1], [0], [0], [1], [0, 0, 1, 1], [], []>} : vector<8x8xf32>, vector<8x16xf32>, vector<8x16xf32> -> vector<8x16xf32>
    %cst_94 = arith.constant dense<0.000000e+00> : vector<8x32xf32>
    %131 = tpu.matmul %1, %103, %cst_94 {dimension_numbers = #tpu.dot_dimension_numbers<[1], [0], [0], [1], [0, 0, 1, 1], [], []>} : vector<8x16xf32>, vector<16x32xf32>, vector<8x32xf32> -> vector<8x32xf32>
    %cst_95 = arith.constant dense<0.000000e+00> : vector<8x32xf32>
    %132 = tpu.matmul %129, %104, %cst_95 {dimension_numbers = #tpu.dot_dimension_numbers<[1], [0], [0], [1], [0, 0, 1, 1], [], []>} : vector<8x16xf32>, vector<16x32xf32>, vector<8x32xf32> -> vector<8x32xf32>
    %133 = arith.addf %131, %132 : vector<8x32xf32>
    %cst_96 = arith.constant dense<0.000000e+00> : vector<8x32xf32>
    %134 = tpu.matmul %130, %105, %cst_96 {dimension_numbers = #tpu.dot_dimension_numbers<[1], [0], [0], [1], [0, 0, 1, 1], [], []>} : vector<8x16xf32>, vector<16x32xf32>, vector<8x32xf32> -> vector<8x32xf32>
    %135 = arith.addf %133, %134 : vector<8x32xf32>
    %136 = vector.broadcast %106 : vector<1x32xf32> to vector<8x32xf32>
    %137 = arith.addf %135, %136 : vector<8x32xf32>
    %cst_97 = arith.constant 0.000000e+00 : f32
    %138 = vector.broadcast %cst_97 : f32 to vector<8x32xf32>
    %139 = arith.maximumf %137, %138 : vector<8x32xf32>
    %cst_98 = arith.constant dense<0.000000e+00> : vector<8x16xf32>
    %140 = tpu.matmul %107, %1, %cst_98 {dimension_numbers = #tpu.dot_dimension_numbers<[1], [0], [0], [1], [0, 0, 1, 1], [], []>} : vector<8x8xf32>, vector<8x16xf32>, vector<8x16xf32> -> vector<8x16xf32>
    %141 = vector.extract_strided_slice %109 {offsets = [1, 0, 0], sizes = [1, 16, 64], strides = [1, 1, 1]} : vector<2x16x64xf32> to vector<1x16x64xf32>
    %142 = vector.shape_cast %141 : vector<1x16x64xf32> to vector<16x64xf32>
    %cst_99 = arith.constant dense<0.000000e+00> : vector<8x64xf32>
    %143 = tpu.matmul %1, %142, %cst_99 {dimension_numbers = #tpu.dot_dimension_numbers<[1], [0], [0], [1], [0, 0, 1, 1], [], []>} : vector<8x16xf32>, vector<16x64xf32>, vector<8x64xf32> -> vector<8x64xf32>
    %144 = vector.extract_strided_slice %109 {offsets = [0, 0, 0], sizes = [1, 16, 64], strides = [1, 1, 1]} : vector<2x16x64xf32> to vector<1x16x64xf32>
    %145 = vector.shape_cast %144 : vector<1x16x64xf32> to vector<16x64xf32>
    %cst_100 = arith.constant dense<0.000000e+00> : vector<8x64xf32>
    %146 = tpu.matmul %140, %145, %cst_100 {dimension_numbers = #tpu.dot_dimension_numbers<[1], [0], [0], [1], [0, 0, 1, 1], [], []>} : vector<8x16xf32>, vector<16x64xf32>, vector<8x64xf32> -> vector<8x64xf32>
    %147 = arith.addf %143, %146 : vector<8x64xf32>
    %148 = vector.broadcast %110 : vector<1x64xf32> to vector<8x64xf32>
    %149 = arith.addf %147, %148 : vector<8x64xf32>
    %cst_101 = arith.constant 0.000000e+00 : f32
    %150 = vector.broadcast %cst_101 : f32 to vector<8x64xf32>
    %151 = arith.maximumf %149, %150 : vector<8x64xf32>
    %cst_102 = arith.constant dense<0.000000e+00> : vector<8x64xf32>
    %152 = tpu.matmul %107, %151, %cst_102 {dimension_numbers = #tpu.dot_dimension_numbers<[1], [0], [0], [1], [0, 0, 1, 1], [], []>} : vector<8x8xf32>, vector<8x64xf32>, vector<8x64xf32> -> vector<8x64xf32>
    %153 = vector.extract_strided_slice %111 {offsets = [1, 0, 0], sizes = [1, 64, 64], strides = [1, 1, 1]} : vector<2x64x64xf32> to vector<1x64x64xf32>
    %154 = vector.shape_cast %153 : vector<1x64x64xf32> to vector<64x64xf32>
    %cst_103 = arith.constant dense<0.000000e+00> : vector<8x64xf32>
    %155 = tpu.matmul %151, %154, %cst_103 {dimension_numbers = #tpu.dot_dimension_numbers<[1], [0], [0], [1], [0, 0, 1, 1], [], []>} : vector<8x64xf32>, vector<64x64xf32>, vector<8x64xf32> -> vector<8x64xf32>
    %156 = vector.extract_strided_slice %111 {offsets = [0, 0, 0], sizes = [1, 64, 64], strides = [1, 1, 1]} : vector<2x64x64xf32> to vector<1x64x64xf32>
    %157 = vector.shape_cast %156 : vector<1x64x64xf32> to vector<64x64xf32>
    %cst_104 = arith.constant dense<0.000000e+00> : vector<8x64xf32>
    %158 = tpu.matmul %152, %157, %cst_104 {dimension_numbers = #tpu.dot_dimension_numbers<[1], [0], [0], [1], [0, 0, 1, 1], [], []>} : vector<8x64xf32>, vector<64x64xf32>, vector<8x64xf32> -> vector<8x64xf32>
    %159 = arith.addf %155, %158 : vector<8x64xf32>
    %160 = vector.broadcast %112 : vector<1x64xf32> to vector<8x64xf32>
    %161 = arith.addf %159, %160 : vector<8x64xf32>
    %cst_105 = arith.constant 0.000000e+00 : f32
    %162 = vector.broadcast %cst_105 : f32 to vector<8x64xf32>
    %163 = arith.maximumf %161, %162 : vector<8x64xf32>
    %cst_106 = arith.constant dense<0.000000e+00> : vector<8x64xf32>
    %164 = tpu.matmul %1, %113, %cst_106 {dimension_numbers = #tpu.dot_dimension_numbers<[1], [0], [0], [1], [0, 0, 1, 1], [], []>} : vector<8x16xf32>, vector<16x64xf32>, vector<8x64xf32> -> vector<8x64xf32>
    %165 = vector.broadcast %114 : vector<1x64xf32> to vector<8x64xf32>
    %166 = arith.addf %164, %165 : vector<8x64xf32>
    %167 = arith.addf %163, %166 : vector<8x64xf32>
    %cst_107 = arith.constant 0.000000e+00 : f32
    %168 = vector.broadcast %cst_107 : f32 to vector<8x64xf32>
    %169 = arith.maximumf %167, %168 : vector<8x64xf32>
    %cst_108 = arith.constant dense<0.000000e+00> : vector<8x64xf32>
    %170 = tpu.matmul %108, %169, %cst_108 {dimension_numbers = #tpu.dot_dimension_numbers<[1], [0], [0], [1], [0, 0, 1, 1], [], []>} : vector<8x8xf32>, vector<8x64xf32>, vector<8x64xf32> -> vector<8x64xf32>
    %171 = vector.extract_strided_slice %115 {offsets = [1, 0, 0], sizes = [1, 64, 32], strides = [1, 1, 1]} : vector<2x64x32xf32> to vector<1x64x32xf32>
    %172 = vector.shape_cast %171 : vector<1x64x32xf32> to vector<64x32xf32>
    %cst_109 = arith.constant dense<0.000000e+00> : vector<8x32xf32>
    %173 = tpu.matmul %169, %172, %cst_109 {dimension_numbers = #tpu.dot_dimension_numbers<[1], [0], [0], [1], [0, 0, 1, 1], [], []>} : vector<8x64xf32>, vector<64x32xf32>, vector<8x32xf32> -> vector<8x32xf32>
    %174 = vector.extract_strided_slice %115 {offsets = [0, 0, 0], sizes = [1, 64, 32], strides = [1, 1, 1]} : vector<2x64x32xf32> to vector<1x64x32xf32>
    %175 = vector.shape_cast %174 : vector<1x64x32xf32> to vector<64x32xf32>
    %cst_110 = arith.constant dense<0.000000e+00> : vector<8x32xf32>
    %176 = tpu.matmul %170, %175, %cst_110 {dimension_numbers = #tpu.dot_dimension_numbers<[1], [0], [0], [1], [0, 0, 1, 1], [], []>} : vector<8x64xf32>, vector<64x32xf32>, vector<8x32xf32> -> vector<8x32xf32>
    %177 = arith.addf %173, %176 : vector<8x32xf32>
    %178 = vector.broadcast %116 : vector<1x32xf32> to vector<8x32xf32>
    %179 = arith.addf %177, %178 : vector<8x32xf32>
    %cst_111 = arith.constant 0.000000e+00 : f32
    %180 = vector.broadcast %cst_111 : f32 to vector<8x32xf32>
    %181 = arith.maximumf %179, %180 : vector<8x32xf32>
    %cst_112 = arith.constant dense<0.000000e+00> : vector<8x32xf32>
    %182 = tpu.matmul %108, %181, %cst_112 {dimension_numbers = #tpu.dot_dimension_numbers<[1], [0], [0], [1], [0, 0, 1, 1], [], []>} : vector<8x8xf32>, vector<8x32xf32>, vector<8x32xf32> -> vector<8x32xf32>
    %183 = vector.extract_strided_slice %117 {offsets = [1, 0, 0], sizes = [1, 32, 32], strides = [1, 1, 1]} : vector<2x32x32xf32> to vector<1x32x32xf32>
    %184 = vector.shape_cast %183 : vector<1x32x32xf32> to vector<32x32xf32>
    %cst_113 = arith.constant dense<0.000000e+00> : vector<8x32xf32>
    %185 = tpu.matmul %181, %184, %cst_113 {dimension_numbers = #tpu.dot_dimension_numbers<[1], [0], [0], [1], [0, 0, 1, 1], [], []>} : vector<8x32xf32>, vector<32x32xf32>, vector<8x32xf32> -> vector<8x32xf32>
    %186 = vector.extract_strided_slice %117 {offsets = [0, 0, 0], sizes = [1, 32, 32], strides = [1, 1, 1]} : vector<2x32x32xf32> to vector<1x32x32xf32>
    %187 = vector.shape_cast %186 : vector<1x32x32xf32> to vector<32x32xf32>
    %cst_114 = arith.constant dense<0.000000e+00> : vector<8x32xf32>
    %188 = tpu.matmul %182, %187, %cst_114 {dimension_numbers = #tpu.dot_dimension_numbers<[1], [0], [0], [1], [0, 0, 1, 1], [], []>} : vector<8x32xf32>, vector<32x32xf32>, vector<8x32xf32> -> vector<8x32xf32>
    %189 = arith.addf %185, %188 : vector<8x32xf32>
    %190 = vector.broadcast %118 : vector<1x32xf32> to vector<8x32xf32>
    %191 = arith.addf %189, %190 : vector<8x32xf32>
    %cst_115 = arith.constant 0.000000e+00 : f32
    %192 = vector.broadcast %cst_115 : f32 to vector<8x32xf32>
    %193 = arith.maximumf %191, %192 : vector<8x32xf32>
    %cst_116 = arith.constant dense<0.000000e+00> : vector<8x32xf32>
    %194 = tpu.matmul %169, %119, %cst_116 {dimension_numbers = #tpu.dot_dimension_numbers<[1], [0], [0], [1], [0, 0, 1, 1], [], []>} : vector<8x64xf32>, vector<64x32xf32>, vector<8x32xf32> -> vector<8x32xf32>
    %195 = vector.broadcast %120 : vector<1x32xf32> to vector<8x32xf32>
    %196 = arith.addf %194, %195 : vector<8x32xf32>
    %197 = arith.addf %193, %196 : vector<8x32xf32>
    %cst_117 = arith.constant 0.000000e+00 : f32
    %198 = vector.broadcast %cst_117 : f32 to vector<8x32xf32>
    %199 = arith.maximumf %197, %198 : vector<8x32xf32>
    %200 = vector.extract_strided_slice %1 {offsets = [0, 0], sizes = [1, 16], strides = [1, 1]} : vector<8x16xf32> to vector<1x16xf32>
    %201 = vector.extract_strided_slice %121 {offsets = [0, 0, 0], sizes = [1, 16, 9], strides = [1, 1, 1]} : vector<8x16x9xf32> to vector<1x16x9xf32>
    %202 = vector.shape_cast %201 : vector<1x16x9xf32> to vector<16x9xf32>
    %cst_118 = arith.constant dense<0.000000e+00> : vector<1x9xf32>
    %203 = tpu.matmul %200, %202, %cst_118 {dimension_numbers = #tpu.dot_dimension_numbers<[1], [0], [0], [1], [0, 0, 1, 1], [], []>} : vector<1x16xf32>, vector<16x9xf32>, vector<1x9xf32> -> vector<1x9xf32>
    %c0_119 = arith.constant 0 : index
    %c0_120 = arith.constant 0 : index
    %204 = vector.load %arg35[%c0_119, %c0_120] : memref<8x9xf32, #tpu.memory_space<vmem>>, vector<1x9xf32>
    tpu.vector_store %arg35[%c0_119, %c0_120], %203 {strides = array<i32>} : memref<8x9xf32, #tpu.memory_space<vmem>>, vector<1x9xf32>,
    %205 = vector.extract_strided_slice %1 {offsets = [1, 0], sizes = [1, 16], strides = [1, 1]} : vector<8x16xf32> to vector<1x16xf32>
    %206 = vector.extract_strided_slice %121 {offsets = [1, 0, 0], sizes = [1, 16, 9], strides = [1, 1, 1]} : vector<8x16x9xf32> to vector<1x16x9xf32>
    %207 = vector.shape_cast %206 : vector<1x16x9xf32> to vector<16x9xf32>
    %cst_121 = arith.constant dense<0.000000e+00> : vector<1x9xf32>
    %208 = tpu.matmul %205, %207, %cst_121 {dimension_numbers = #tpu.dot_dimension_numbers<[1], [0], [0], [1], [0, 0, 1, 1], [], []>} : vector<1x16xf32>, vector<16x9xf32>, vector<1x9xf32> -> vector<1x9xf32>
    %c1_122 = arith.constant 1 : index
    %c0_123 = arith.constant 0 : index
    %209 = vector.load %arg35[%c1_122, %c0_123] : memref<8x9xf32, #tpu.memory_space<vmem>>, vector<1x9xf32>
    tpu.vector_store %arg35[%c1_122, %c0_123], %208 {strides = array<i32>} : memref<8x9xf32, #tpu.memory_space<vmem>>, vector<1x9xf32>,
    %210 = vector.extract_strided_slice %1 {offsets = [2, 0], sizes = [1, 16], strides = [1, 1]} : vector<8x16xf32> to vector<1x16xf32>
    %211 = vector.extract_strided_slice %121 {offsets = [2, 0, 0], sizes = [1, 16, 9], strides = [1, 1, 1]} : vector<8x16x9xf32> to vector<1x16x9xf32>
    %212 = vector.shape_cast %211 : vector<1x16x9xf32> to vector<16x9xf32>
    %cst_124 = arith.constant dense<0.000000e+00> : vector<1x9xf32>
    %213 = tpu.matmul %210, %212, %cst_124 {dimension_numbers = #tpu.dot_dimension_numbers<[1], [0], [0], [1], [0, 0, 1, 1], [], []>} : vector<1x16xf32>, vector<16x9xf32>, vector<1x9xf32> -> vector<1x9xf32>
    %c2 = arith.constant 2 : index
    %c0_125 = arith.constant 0 : index
    %214 = vector.load %arg35[%c2, %c0_125] : memref<8x9xf32, #tpu.memory_space<vmem>>, vector<1x9xf32>
    tpu.vector_store %arg35[%c2, %c0_125], %213 {strides = array<i32>} : memref<8x9xf32, #tpu.memory_space<vmem>>, vector<1x9xf32>,
    %215 = vector.extract_strided_slice %1 {offsets = [3, 0], sizes = [1, 16], strides = [1, 1]} : vector<8x16xf32> to vector<1x16xf32>
    %216 = vector.extract_strided_slice %121 {offsets = [3, 0, 0], sizes = [1, 16, 9], strides = [1, 1, 1]} : vector<8x16x9xf32> to vector<1x16x9xf32>
    %217 = vector.shape_cast %216 : vector<1x16x9xf32> to vector<16x9xf32>
    %cst_126 = arith.constant dense<0.000000e+00> : vector<1x9xf32>
    %218 = tpu.matmul %215, %217, %cst_126 {dimension_numbers = #tpu.dot_dimension_numbers<[1], [0], [0], [1], [0, 0, 1, 1], [], []>} : vector<1x16xf32>, vector<16x9xf32>, vector<1x9xf32> -> vector<1x9xf32>
    %c3 = arith.constant 3 : index
    %c0_127 = arith.constant 0 : index
    %219 = vector.load %arg35[%c3, %c0_127] : memref<8x9xf32, #tpu.memory_space<vmem>>, vector<1x9xf32>
    tpu.vector_store %arg35[%c3, %c0_127], %218 {strides = array<i32>} : memref<8x9xf32, #tpu.memory_space<vmem>>, vector<1x9xf32>,
    %220 = vector.extract_strided_slice %1 {offsets = [4, 0], sizes = [1, 16], strides = [1, 1]} : vector<8x16xf32> to vector<1x16xf32>
    %221 = vector.extract_strided_slice %121 {offsets = [4, 0, 0], sizes = [1, 16, 9], strides = [1, 1, 1]} : vector<8x16x9xf32> to vector<1x16x9xf32>
    %222 = vector.shape_cast %221 : vector<1x16x9xf32> to vector<16x9xf32>
    %cst_128 = arith.constant dense<0.000000e+00> : vector<1x9xf32>
    %223 = tpu.matmul %220, %222, %cst_128 {dimension_numbers = #tpu.dot_dimension_numbers<[1], [0], [0], [1], [0, 0, 1, 1], [], []>} : vector<1x16xf32>, vector<16x9xf32>, vector<1x9xf32> -> vector<1x9xf32>
    %c4 = arith.constant 4 : index
    %c0_129 = arith.constant 0 : index
    %224 = vector.load %arg35[%c4, %c0_129] : memref<8x9xf32, #tpu.memory_space<vmem>>, vector<1x9xf32>
    tpu.vector_store %arg35[%c4, %c0_129], %223 {strides = array<i32>} : memref<8x9xf32, #tpu.memory_space<vmem>>, vector<1x9xf32>,
    %225 = vector.extract_strided_slice %1 {offsets = [5, 0], sizes = [1, 16], strides = [1, 1]} : vector<8x16xf32> to vector<1x16xf32>
    %226 = vector.extract_strided_slice %121 {offsets = [5, 0, 0], sizes = [1, 16, 9], strides = [1, 1, 1]} : vector<8x16x9xf32> to vector<1x16x9xf32>
    %227 = vector.shape_cast %226 : vector<1x16x9xf32> to vector<16x9xf32>
    %cst_130 = arith.constant dense<0.000000e+00> : vector<1x9xf32>
    %228 = tpu.matmul %225, %227, %cst_130 {dimension_numbers = #tpu.dot_dimension_numbers<[1], [0], [0], [1], [0, 0, 1, 1], [], []>} : vector<1x16xf32>, vector<16x9xf32>, vector<1x9xf32> -> vector<1x9xf32>
    %c5 = arith.constant 5 : index
    %c0_131 = arith.constant 0 : index
    %229 = vector.load %arg35[%c5, %c0_131] : memref<8x9xf32, #tpu.memory_space<vmem>>, vector<1x9xf32>
    tpu.vector_store %arg35[%c5, %c0_131], %228 {strides = array<i32>} : memref<8x9xf32, #tpu.memory_space<vmem>>, vector<1x9xf32>,
    %230 = vector.extract_strided_slice %1 {offsets = [6, 0], sizes = [1, 16], strides = [1, 1]} : vector<8x16xf32> to vector<1x16xf32>
    %231 = vector.extract_strided_slice %121 {offsets = [6, 0, 0], sizes = [1, 16, 9], strides = [1, 1, 1]} : vector<8x16x9xf32> to vector<1x16x9xf32>
    %232 = vector.shape_cast %231 : vector<1x16x9xf32> to vector<16x9xf32>
    %cst_132 = arith.constant dense<0.000000e+00> : vector<1x9xf32>
    %233 = tpu.matmul %230, %232, %cst_132 {dimension_numbers = #tpu.dot_dimension_numbers<[1], [0], [0], [1], [0, 0, 1, 1], [], []>} : vector<1x16xf32>, vector<16x9xf32>, vector<1x9xf32> -> vector<1x9xf32>
    %c6 = arith.constant 6 : index
    %c0_133 = arith.constant 0 : index
    %234 = vector.load %arg35[%c6, %c0_133] : memref<8x9xf32, #tpu.memory_space<vmem>>, vector<1x9xf32>
    tpu.vector_store %arg35[%c6, %c0_133], %233 {strides = array<i32>} : memref<8x9xf32, #tpu.memory_space<vmem>>, vector<1x9xf32>,
    %235 = vector.extract_strided_slice %1 {offsets = [7, 0], sizes = [1, 16], strides = [1, 1]} : vector<8x16xf32> to vector<1x16xf32>
    %236 = vector.extract_strided_slice %121 {offsets = [7, 0, 0], sizes = [1, 16, 9], strides = [1, 1, 1]} : vector<8x16x9xf32> to vector<1x16x9xf32>
    %237 = vector.shape_cast %236 : vector<1x16x9xf32> to vector<16x9xf32>
    %cst_134 = arith.constant dense<0.000000e+00> : vector<1x9xf32>
    %238 = tpu.matmul %235, %237, %cst_134 {dimension_numbers = #tpu.dot_dimension_numbers<[1], [0], [0], [1], [0, 0, 1, 1], [], []>} : vector<1x16xf32>, vector<16x9xf32>, vector<1x9xf32> -> vector<1x9xf32>
    %c7 = arith.constant 7 : index
    %c0_135 = arith.constant 0 : index
    %239 = vector.load %arg35[%c7, %c0_135] : memref<8x9xf32, #tpu.memory_space<vmem>>, vector<1x9xf32>
    tpu.vector_store %arg35[%c7, %c0_135], %238 {strides = array<i32>} : memref<8x9xf32, #tpu.memory_space<vmem>>, vector<1x9xf32>,
    %c0_136 = arith.constant 0 : index
    %c0_137 = arith.constant 0 : index
    %240 = vector.load %arg35[%c0_136, %c0_137] : memref<8x9xf32, #tpu.memory_space<vmem>>, vector<8x9xf32>
    %241 = vector.broadcast %122 : vector<1x9xf32> to vector<8x9xf32>
    %242 = arith.addf %240, %241 : vector<8x9xf32>
    %cst_138 = arith.constant 0.000000e+00 : f32
    %243 = vector.broadcast %cst_138 : f32 to vector<8x9xf32>
    %244 = arith.maximumf %242, %243 : vector<8x9xf32>
    %cst_139 = arith.constant dense<0.000000e+00> : vector<8x12xf32>
    %245 = tpu.matmul %199, %123, %cst_139 {dimension_numbers = #tpu.dot_dimension_numbers<[1], [0], [0], [1], [0, 0, 1, 1], [], []>} : vector<8x32xf32>, vector<32x12xf32>, vector<8x12xf32> -> vector<8x12xf32>
    %cst_140 = arith.constant dense<0.000000e+00> : vector<8x12xf32>
    %246 = tpu.matmul %139, %124, %cst_140 {dimension_numbers = #tpu.dot_dimension_numbers<[1], [0], [0], [1], [0, 0, 1, 1], [], []>} : vector<8x32xf32>, vector<32x12xf32>, vector<8x12xf32> -> vector<8x12xf32>
    %247 = arith.addf %245, %246 : vector<8x12xf32>
    %cst_141 = arith.constant dense<0.000000e+00> : vector<8x12xf32>
    %248 = tpu.matmul %244, %125, %cst_141 {dimension_numbers = #tpu.dot_dimension_numbers<[1], [0], [0], [1], [0, 0, 1, 1], [], []>} : vector<8x9xf32>, vector<9x12xf32>, vector<8x12xf32> -> vector<8x12xf32>
    %249 = arith.addf %247, %248 : vector<8x12xf32>
    %250 = vector.broadcast %126 : vector<1x12xf32> to vector<8x12xf32>
    %251 = arith.addf %249, %250 : vector<8x12xf32>
    %cst_142 = arith.constant dense<0.000000e+00> : vector<8x48xf32>
    %252 = tpu.matmul %251, %127, %cst_142 {dimension_numbers = #tpu.dot_dimension_numbers<[1], [0], [0], [1], [0, 0, 1, 1], [], []>} : vector<8x12xf32>, vector<12x48xf32>, vector<8x48xf32> -> vector<8x48xf32>
    %253 = vector.broadcast %128 : vector<1x48xf32> to vector<8x48xf32>
    %254 = arith.addf %252, %253 : vector<8x48xf32>
    %cst_143 = arith.constant dense<0.000000e+00> : vector<8x16xf32>
    %255 = tpu.matmul %95, %3, %cst_143 {dimension_numbers = #tpu.dot_dimension_numbers<[0], [0], [1], [1], [0, 1, 1, 1], [], []>} : vector<8x8xf32>, vector<8x16xf32>, vector<8x16xf32> -> vector<8x16xf32>
    %cst_144 = arith.constant dense<0.000000e+00> : vector<8x16xf32>
    %256 = tpu.matmul %102, %3, %cst_144 {dimension_numbers = #tpu.dot_dimension_numbers<[1], [0], [0], [1], [0, 0, 1, 1], [], []>} : vector<8x8xf32>, vector<8x16xf32>, vector<8x16xf32> -> vector<8x16xf32>
    %cst_145 = arith.constant dense<0.000000e+00> : vector<8x32xf32>
    %257 = tpu.matmul %3, %103, %cst_145 {dimension_numbers = #tpu.dot_dimension_numbers<[1], [0], [0], [1], [0, 0, 1, 1], [], []>} : vector<8x16xf32>, vector<16x32xf32>, vector<8x32xf32> -> vector<8x32xf32>
    %cst_146 = arith.constant dense<0.000000e+00> : vector<8x32xf32>
    %258 = tpu.matmul %255, %104, %cst_146 {dimension_numbers = #tpu.dot_dimension_numbers<[1], [0], [0], [1], [0, 0, 1, 1], [], []>} : vector<8x16xf32>, vector<16x32xf32>, vector<8x32xf32> -> vector<8x32xf32>
    %259 = arith.addf %257, %258 : vector<8x32xf32>
    %cst_147 = arith.constant dense<0.000000e+00> : vector<8x32xf32>
    %260 = tpu.matmul %256, %105, %cst_147 {dimension_numbers = #tpu.dot_dimension_numbers<[1], [0], [0], [1], [0, 0, 1, 1], [], []>} : vector<8x16xf32>, vector<16x32xf32>, vector<8x32xf32> -> vector<8x32xf32>
    %261 = arith.addf %259, %260 : vector<8x32xf32>
    %262 = vector.broadcast %106 : vector<1x32xf32> to vector<8x32xf32>
    %263 = arith.addf %261, %262 : vector<8x32xf32>
    %cst_148 = arith.constant 0.000000e+00 : f32
    %264 = vector.broadcast %cst_148 : f32 to vector<8x32xf32>
    %265 = arith.maximumf %263, %264 : vector<8x32xf32>
    %cst_149 = arith.constant dense<0.000000e+00> : vector<8x16xf32>
    %266 = tpu.matmul %107, %3, %cst_149 {dimension_numbers = #tpu.dot_dimension_numbers<[1], [0], [0], [1], [0, 0, 1, 1], [], []>} : vector<8x8xf32>, vector<8x16xf32>, vector<8x16xf32> -> vector<8x16xf32>
    %267 = vector.extract_strided_slice %109 {offsets = [1, 0, 0], sizes = [1, 16, 64], strides = [1, 1, 1]} : vector<2x16x64xf32> to vector<1x16x64xf32>
    %268 = vector.shape_cast %267 : vector<1x16x64xf32> to vector<16x64xf32>
    %cst_150 = arith.constant dense<0.000000e+00> : vector<8x64xf32>
    %269 = tpu.matmul %3, %268, %cst_150 {dimension_numbers = #tpu.dot_dimension_numbers<[1], [0], [0], [1], [0, 0, 1, 1], [], []>} : vector<8x16xf32>, vector<16x64xf32>, vector<8x64xf32> -> vector<8x64xf32>
    %270 = vector.extract_strided_slice %109 {offsets = [0, 0, 0], sizes = [1, 16, 64], strides = [1, 1, 1]} : vector<2x16x64xf32> to vector<1x16x64xf32>
    %271 = vector.shape_cast %270 : vector<1x16x64xf32> to vector<16x64xf32>
    %cst_151 = arith.constant dense<0.000000e+00> : vector<8x64xf32>
    %272 = tpu.matmul %266, %271, %cst_151 {dimension_numbers = #tpu.dot_dimension_numbers<[1], [0], [0], [1], [0, 0, 1, 1], [], []>} : vector<8x16xf32>, vector<16x64xf32>, vector<8x64xf32> -> vector<8x64xf32>
    %273 = arith.addf %269, %272 : vector<8x64xf32>
    %274 = vector.broadcast %110 : vector<1x64xf32> to vector<8x64xf32>
    %275 = arith.addf %273, %274 : vector<8x64xf32>
    %cst_152 = arith.constant 0.000000e+00 : f32
    %276 = vector.broadcast %cst_152 : f32 to vector<8x64xf32>
    %277 = arith.maximumf %275, %276 : vector<8x64xf32>
    %cst_153 = arith.constant dense<0.000000e+00> : vector<8x64xf32>
    %278 = tpu.matmul %107, %277, %cst_153 {dimension_numbers = #tpu.dot_dimension_numbers<[1], [0], [0], [1], [0, 0, 1, 1], [], []>} : vector<8x8xf32>, vector<8x64xf32>, vector<8x64xf32> -> vector<8x64xf32>
    %279 = vector.extract_strided_slice %111 {offsets = [1, 0, 0], sizes = [1, 64, 64], strides = [1, 1, 1]} : vector<2x64x64xf32> to vector<1x64x64xf32>
    %280 = vector.shape_cast %279 : vector<1x64x64xf32> to vector<64x64xf32>
    %cst_154 = arith.constant dense<0.000000e+00> : vector<8x64xf32>
    %281 = tpu.matmul %277, %280, %cst_154 {dimension_numbers = #tpu.dot_dimension_numbers<[1], [0], [0], [1], [0, 0, 1, 1], [], []>} : vector<8x64xf32>, vector<64x64xf32>, vector<8x64xf32> -> vector<8x64xf32>
    %282 = vector.extract_strided_slice %111 {offsets = [0, 0, 0], sizes = [1, 64, 64], strides = [1, 1, 1]} : vector<2x64x64xf32> to vector<1x64x64xf32>
    %283 = vector.shape_cast %282 : vector<1x64x64xf32> to vector<64x64xf32>
    %cst_155 = arith.constant dense<0.000000e+00> : vector<8x64xf32>
    %284 = tpu.matmul %278, %283, %cst_155 {dimension_numbers = #tpu.dot_dimension_numbers<[1], [0], [0], [1], [0, 0, 1, 1], [], []>} : vector<8x64xf32>, vector<64x64xf32>, vector<8x64xf32> -> vector<8x64xf32>
    %285 = arith.addf %281, %284 : vector<8x64xf32>
    %286 = vector.broadcast %112 : vector<1x64xf32> to vector<8x64xf32>
    %287 = arith.addf %285, %286 : vector<8x64xf32>
    %cst_156 = arith.constant 0.000000e+00 : f32
    %288 = vector.broadcast %cst_156 : f32 to vector<8x64xf32>
    %289 = arith.maximumf %287, %288 : vector<8x64xf32>
    %cst_157 = arith.constant dense<0.000000e+00> : vector<8x64xf32>
    %290 = tpu.matmul %3, %113, %cst_157 {dimension_numbers = #tpu.dot_dimension_numbers<[1], [0], [0], [1], [0, 0, 1, 1], [], []>} : vector<8x16xf32>, vector<16x64xf32>, vector<8x64xf32> -> vector<8x64xf32>
    %291 = vector.broadcast %114 : vector<1x64xf32> to vector<8x64xf32>
    %292 = arith.addf %290, %291 : vector<8x64xf32>
    %293 = arith.addf %289, %292 : vector<8x64xf32>
    %cst_158 = arith.constant 0.000000e+00 : f32
    %294 = vector.broadcast %cst_158 : f32 to vector<8x64xf32>
    %295 = arith.maximumf %293, %294 : vector<8x64xf32>
    %cst_159 = arith.constant dense<0.000000e+00> : vector<8x64xf32>
    %296 = tpu.matmul %108, %295, %cst_159 {dimension_numbers = #tpu.dot_dimension_numbers<[1], [0], [0], [1], [0, 0, 1, 1], [], []>} : vector<8x8xf32>, vector<8x64xf32>, vector<8x64xf32> -> vector<8x64xf32>
    %297 = vector.extract_strided_slice %115 {offsets = [1, 0, 0], sizes = [1, 64, 32], strides = [1, 1, 1]} : vector<2x64x32xf32> to vector<1x64x32xf32>
    %298 = vector.shape_cast %297 : vector<1x64x32xf32> to vector<64x32xf32>
    %cst_160 = arith.constant dense<0.000000e+00> : vector<8x32xf32>
    %299 = tpu.matmul %295, %298, %cst_160 {dimension_numbers = #tpu.dot_dimension_numbers<[1], [0], [0], [1], [0, 0, 1, 1], [], []>} : vector<8x64xf32>, vector<64x32xf32>, vector<8x32xf32> -> vector<8x32xf32>
    %300 = vector.extract_strided_slice %115 {offsets = [0, 0, 0], sizes = [1, 64, 32], strides = [1, 1, 1]} : vector<2x64x32xf32> to vector<1x64x32xf32>
    %301 = vector.shape_cast %300 : vector<1x64x32xf32> to vector<64x32xf32>
    %cst_161 = arith.constant dense<0.000000e+00> : vector<8x32xf32>
    %302 = tpu.matmul %296, %301, %cst_161 {dimension_numbers = #tpu.dot_dimension_numbers<[1], [0], [0], [1], [0, 0, 1, 1], [], []>} : vector<8x64xf32>, vector<64x32xf32>, vector<8x32xf32> -> vector<8x32xf32>
    %303 = arith.addf %299, %302 : vector<8x32xf32>
    %304 = vector.broadcast %116 : vector<1x32xf32> to vector<8x32xf32>
    %305 = arith.addf %303, %304 : vector<8x32xf32>
    %cst_162 = arith.constant 0.000000e+00 : f32
    %306 = vector.broadcast %cst_162 : f32 to vector<8x32xf32>
    %307 = arith.maximumf %305, %306 : vector<8x32xf32>
    %cst_163 = arith.constant dense<0.000000e+00> : vector<8x32xf32>
    %308 = tpu.matmul %108, %307, %cst_163 {dimension_numbers = #tpu.dot_dimension_numbers<[1], [0], [0], [1], [0, 0, 1, 1], [], []>} : vector<8x8xf32>, vector<8x32xf32>, vector<8x32xf32> -> vector<8x32xf32>
    %309 = vector.extract_strided_slice %117 {offsets = [1, 0, 0], sizes = [1, 32, 32], strides = [1, 1, 1]} : vector<2x32x32xf32> to vector<1x32x32xf32>
    %310 = vector.shape_cast %309 : vector<1x32x32xf32> to vector<32x32xf32>
    %cst_164 = arith.constant dense<0.000000e+00> : vector<8x32xf32>
    %311 = tpu.matmul %307, %310, %cst_164 {dimension_numbers = #tpu.dot_dimension_numbers<[1], [0], [0], [1], [0, 0, 1, 1], [], []>} : vector<8x32xf32>, vector<32x32xf32>, vector<8x32xf32> -> vector<8x32xf32>
    %312 = vector.extract_strided_slice %117 {offsets = [0, 0, 0], sizes = [1, 32, 32], strides = [1, 1, 1]} : vector<2x32x32xf32> to vector<1x32x32xf32>
    %313 = vector.shape_cast %312 : vector<1x32x32xf32> to vector<32x32xf32>
    %cst_165 = arith.constant dense<0.000000e+00> : vector<8x32xf32>
    %314 = tpu.matmul %308, %313, %cst_165 {dimension_numbers = #tpu.dot_dimension_numbers<[1], [0], [0], [1], [0, 0, 1, 1], [], []>} : vector<8x32xf32>, vector<32x32xf32>, vector<8x32xf32> -> vector<8x32xf32>
    %315 = arith.addf %311, %314 : vector<8x32xf32>
    %316 = vector.broadcast %118 : vector<1x32xf32> to vector<8x32xf32>
    %317 = arith.addf %315, %316 : vector<8x32xf32>
    %cst_166 = arith.constant 0.000000e+00 : f32
    %318 = vector.broadcast %cst_166 : f32 to vector<8x32xf32>
    %319 = arith.maximumf %317, %318 : vector<8x32xf32>
    %cst_167 = arith.constant dense<0.000000e+00> : vector<8x32xf32>
    %320 = tpu.matmul %295, %119, %cst_167 {dimension_numbers = #tpu.dot_dimension_numbers<[1], [0], [0], [1], [0, 0, 1, 1], [], []>} : vector<8x64xf32>, vector<64x32xf32>, vector<8x32xf32> -> vector<8x32xf32>
    %321 = vector.broadcast %120 : vector<1x32xf32> to vector<8x32xf32>
    %322 = arith.addf %320, %321 : vector<8x32xf32>
    %323 = arith.addf %319, %322 : vector<8x32xf32>
    %cst_168 = arith.constant 0.000000e+00 : f32
    %324 = vector.broadcast %cst_168 : f32 to vector<8x32xf32>
    %325 = arith.maximumf %323, %324 : vector<8x32xf32>
    %326 = vector.extract_strided_slice %3 {offsets = [0, 0], sizes = [1, 16], strides = [1, 1]} : vector<8x16xf32> to vector<1x16xf32>
    %327 = vector.extract_strided_slice %121 {offsets = [0, 0, 0], sizes = [1, 16, 9], strides = [1, 1, 1]} : vector<8x16x9xf32> to vector<1x16x9xf32>
    %328 = vector.shape_cast %327 : vector<1x16x9xf32> to vector<16x9xf32>
    %cst_169 = arith.constant dense<0.000000e+00> : vector<1x9xf32>
    %329 = tpu.matmul %326, %328, %cst_169 {dimension_numbers = #tpu.dot_dimension_numbers<[1], [0], [0], [1], [0, 0, 1, 1], [], []>} : vector<1x16xf32>, vector<16x9xf32>, vector<1x9xf32> -> vector<1x9xf32>
    %c0_170 = arith.constant 0 : index
    %c0_171 = arith.constant 0 : index
    %330 = vector.load %arg35[%c0_170, %c0_171] : memref<8x9xf32, #tpu.memory_space<vmem>>, vector<1x9xf32>
    tpu.vector_store %arg35[%c0_170, %c0_171], %329 {strides = array<i32>} : memref<8x9xf32, #tpu.memory_space<vmem>>, vector<1x9xf32>,
    %331 = vector.extract_strided_slice %3 {offsets = [1, 0], sizes = [1, 16], strides = [1, 1]} : vector<8x16xf32> to vector<1x16xf32>
    %332 = vector.extract_strided_slice %121 {offsets = [1, 0, 0], sizes = [1, 16, 9], strides = [1, 1, 1]} : vector<8x16x9xf32> to vector<1x16x9xf32>
    %333 = vector.shape_cast %332 : vector<1x16x9xf32> to vector<16x9xf32>
    %cst_172 = arith.constant dense<0.000000e+00> : vector<1x9xf32>
    %334 = tpu.matmul %331, %333, %cst_172 {dimension_numbers = #tpu.dot_dimension_numbers<[1], [0], [0], [1], [0, 0, 1, 1], [], []>} : vector<1x16xf32>, vector<16x9xf32>, vector<1x9xf32> -> vector<1x9xf32>
    %c1_173 = arith.constant 1 : index
    %c0_174 = arith.constant 0 : index
    %335 = vector.load %arg35[%c1_173, %c0_174] : memref<8x9xf32, #tpu.memory_space<vmem>>, vector<1x9xf32>
    tpu.vector_store %arg35[%c1_173, %c0_174], %334 {strides = array<i32>} : memref<8x9xf32, #tpu.memory_space<vmem>>, vector<1x9xf32>,
    %336 = vector.extract_strided_slice %3 {offsets = [2, 0], sizes = [1, 16], strides = [1, 1]} : vector<8x16xf32> to vector<1x16xf32>
    %337 = vector.extract_strided_slice %121 {offsets = [2, 0, 0], sizes = [1, 16, 9], strides = [1, 1, 1]} : vector<8x16x9xf32> to vector<1x16x9xf32>
    %338 = vector.shape_cast %337 : vector<1x16x9xf32> to vector<16x9xf32>
    %cst_175 = arith.constant dense<0.000000e+00> : vector<1x9xf32>
    %339 = tpu.matmul %336, %338, %cst_175 {dimension_numbers = #tpu.dot_dimension_numbers<[1], [0], [0], [1], [0, 0, 1, 1], [], []>} : vector<1x16xf32>, vector<16x9xf32>, vector<1x9xf32> -> vector<1x9xf32>
    %c2_176 = arith.constant 2 : index
    %c0_177 = arith.constant 0 : index
    %340 = vector.load %arg35[%c2_176, %c0_177] : memref<8x9xf32, #tpu.memory_space<vmem>>, vector<1x9xf32>
    tpu.vector_store %arg35[%c2_176, %c0_177], %339 {strides = array<i32>} : memref<8x9xf32, #tpu.memory_space<vmem>>, vector<1x9xf32>,
    %341 = vector.extract_strided_slice %3 {offsets = [3, 0], sizes = [1, 16], strides = [1, 1]} : vector<8x16xf32> to vector<1x16xf32>
    %342 = vector.extract_strided_slice %121 {offsets = [3, 0, 0], sizes = [1, 16, 9], strides = [1, 1, 1]} : vector<8x16x9xf32> to vector<1x16x9xf32>
    %343 = vector.shape_cast %342 : vector<1x16x9xf32> to vector<16x9xf32>
    %cst_178 = arith.constant dense<0.000000e+00> : vector<1x9xf32>
    %344 = tpu.matmul %341, %343, %cst_178 {dimension_numbers = #tpu.dot_dimension_numbers<[1], [0], [0], [1], [0, 0, 1, 1], [], []>} : vector<1x16xf32>, vector<16x9xf32>, vector<1x9xf32> -> vector<1x9xf32>
    %c3_179 = arith.constant 3 : index
    %c0_180 = arith.constant 0 : index
    %345 = vector.load %arg35[%c3_179, %c0_180] : memref<8x9xf32, #tpu.memory_space<vmem>>, vector<1x9xf32>
    tpu.vector_store %arg35[%c3_179, %c0_180], %344 {strides = array<i32>} : memref<8x9xf32, #tpu.memory_space<vmem>>, vector<1x9xf32>,
    %346 = vector.extract_strided_slice %3 {offsets = [4, 0], sizes = [1, 16], strides = [1, 1]} : vector<8x16xf32> to vector<1x16xf32>
    %347 = vector.extract_strided_slice %121 {offsets = [4, 0, 0], sizes = [1, 16, 9], strides = [1, 1, 1]} : vector<8x16x9xf32> to vector<1x16x9xf32>
    %348 = vector.shape_cast %347 : vector<1x16x9xf32> to vector<16x9xf32>
    %cst_181 = arith.constant dense<0.000000e+00> : vector<1x9xf32>
    %349 = tpu.matmul %346, %348, %cst_181 {dimension_numbers = #tpu.dot_dimension_numbers<[1], [0], [0], [1], [0, 0, 1, 1], [], []>} : vector<1x16xf32>, vector<16x9xf32>, vector<1x9xf32> -> vector<1x9xf32>
    %c4_182 = arith.constant 4 : index
    %c0_183 = arith.constant 0 : index
    %350 = vector.load %arg35[%c4_182, %c0_183] : memref<8x9xf32, #tpu.memory_space<vmem>>, vector<1x9xf32>
    tpu.vector_store %arg35[%c4_182, %c0_183], %349 {strides = array<i32>} : memref<8x9xf32, #tpu.memory_space<vmem>>, vector<1x9xf32>,
    %351 = vector.extract_strided_slice %3 {offsets = [5, 0], sizes = [1, 16], strides = [1, 1]} : vector<8x16xf32> to vector<1x16xf32>
    %352 = vector.extract_strided_slice %121 {offsets = [5, 0, 0], sizes = [1, 16, 9], strides = [1, 1, 1]} : vector<8x16x9xf32> to vector<1x16x9xf32>
    %353 = vector.shape_cast %352 : vector<1x16x9xf32> to vector<16x9xf32>
    %cst_184 = arith.constant dense<0.000000e+00> : vector<1x9xf32>
    %354 = tpu.matmul %351, %353, %cst_184 {dimension_numbers = #tpu.dot_dimension_numbers<[1], [0], [0], [1], [0, 0, 1, 1], [], []>} : vector<1x16xf32>, vector<16x9xf32>, vector<1x9xf32> -> vector<1x9xf32>
    %c5_185 = arith.constant 5 : index
    %c0_186 = arith.constant 0 : index
    %355 = vector.load %arg35[%c5_185, %c0_186] : memref<8x9xf32, #tpu.memory_space<vmem>>, vector<1x9xf32>
    tpu.vector_store %arg35[%c5_185, %c0_186], %354 {strides = array<i32>} : memref<8x9xf32, #tpu.memory_space<vmem>>, vector<1x9xf32>,
    %356 = vector.extract_strided_slice %3 {offsets = [6, 0], sizes = [1, 16], strides = [1, 1]} : vector<8x16xf32> to vector<1x16xf32>
    %357 = vector.extract_strided_slice %121 {offsets = [6, 0, 0], sizes = [1, 16, 9], strides = [1, 1, 1]} : vector<8x16x9xf32> to vector<1x16x9xf32>
    %358 = vector.shape_cast %357 : vector<1x16x9xf32> to vector<16x9xf32>
    %cst_187 = arith.constant dense<0.000000e+00> : vector<1x9xf32>
    %359 = tpu.matmul %356, %358, %cst_187 {dimension_numbers = #tpu.dot_dimension_numbers<[1], [0], [0], [1], [0, 0, 1, 1], [], []>} : vector<1x16xf32>, vector<16x9xf32>, vector<1x9xf32> -> vector<1x9xf32>
    %c6_188 = arith.constant 6 : index
    %c0_189 = arith.constant 0 : index
    %360 = vector.load %arg35[%c6_188, %c0_189] : memref<8x9xf32, #tpu.memory_space<vmem>>, vector<1x9xf32>
    tpu.vector_store %arg35[%c6_188, %c0_189], %359 {strides = array<i32>} : memref<8x9xf32, #tpu.memory_space<vmem>>, vector<1x9xf32>,
    %361 = vector.extract_strided_slice %3 {offsets = [7, 0], sizes = [1, 16], strides = [1, 1]} : vector<8x16xf32> to vector<1x16xf32>
    %362 = vector.extract_strided_slice %121 {offsets = [7, 0, 0], sizes = [1, 16, 9], strides = [1, 1, 1]} : vector<8x16x9xf32> to vector<1x16x9xf32>
    %363 = vector.shape_cast %362 : vector<1x16x9xf32> to vector<16x9xf32>
    %cst_190 = arith.constant dense<0.000000e+00> : vector<1x9xf32>
    %364 = tpu.matmul %361, %363, %cst_190 {dimension_numbers = #tpu.dot_dimension_numbers<[1], [0], [0], [1], [0, 0, 1, 1], [], []>} : vector<1x16xf32>, vector<16x9xf32>, vector<1x9xf32> -> vector<1x9xf32>
    %c7_191 = arith.constant 7 : index
    %c0_192 = arith.constant 0 : index
    %365 = vector.load %arg35[%c7_191, %c0_192] : memref<8x9xf32, #tpu.memory_space<vmem>>, vector<1x9xf32>
    tpu.vector_store %arg35[%c7_191, %c0_192], %364 {strides = array<i32>} : memref<8x9xf32, #tpu.memory_space<vmem>>, vector<1x9xf32>,
    %c0_193 = arith.constant 0 : index
    %c0_194 = arith.constant 0 : index
    %366 = vector.load %arg35[%c0_193, %c0_194] : memref<8x9xf32, #tpu.memory_space<vmem>>, vector<8x9xf32>
    %367 = vector.broadcast %122 : vector<1x9xf32> to vector<8x9xf32>
    %368 = arith.addf %366, %367 : vector<8x9xf32>
    %cst_195 = arith.constant 0.000000e+00 : f32
    %369 = vector.broadcast %cst_195 : f32 to vector<8x9xf32>
    %370 = arith.maximumf %368, %369 : vector<8x9xf32>
    %cst_196 = arith.constant dense<0.000000e+00> : vector<8x12xf32>
    %371 = tpu.matmul %325, %123, %cst_196 {dimension_numbers = #tpu.dot_dimension_numbers<[1], [0], [0], [1], [0, 0, 1, 1], [], []>} : vector<8x32xf32>, vector<32x12xf32>, vector<8x12xf32> -> vector<8x12xf32>
    %cst_197 = arith.constant dense<0.000000e+00> : vector<8x12xf32>
    %372 = tpu.matmul %265, %124, %cst_197 {dimension_numbers = #tpu.dot_dimension_numbers<[1], [0], [0], [1], [0, 0, 1, 1], [], []>} : vector<8x32xf32>, vector<32x12xf32>, vector<8x12xf32> -> vector<8x12xf32>
    %373 = arith.addf %371, %372 : vector<8x12xf32>
    %cst_198 = arith.constant dense<0.000000e+00> : vector<8x12xf32>
    %374 = tpu.matmul %370, %125, %cst_198 {dimension_numbers = #tpu.dot_dimension_numbers<[1], [0], [0], [1], [0, 0, 1, 1], [], []>} : vector<8x9xf32>, vector<9x12xf32>, vector<8x12xf32> -> vector<8x12xf32>
    %375 = arith.addf %373, %374 : vector<8x12xf32>
    %376 = vector.broadcast %126 : vector<1x12xf32> to vector<8x12xf32>
    %377 = arith.addf %375, %376 : vector<8x12xf32>
    %cst_199 = arith.constant dense<0.000000e+00> : vector<8x48xf32>
    %378 = tpu.matmul %377, %127, %cst_199 {dimension_numbers = #tpu.dot_dimension_numbers<[1], [0], [0], [1], [0, 0, 1, 1], [], []>} : vector<8x12xf32>, vector<12x48xf32>, vector<8x48xf32> -> vector<8x48xf32>
    %379 = vector.broadcast %128 : vector<1x48xf32> to vector<8x48xf32>
    %380 = arith.addf %378, %379 : vector<8x48xf32>
    %381 = vector.extract_strided_slice %254 {offsets = [0, 0], sizes = [8, 16], strides = [1, 1]} : vector<8x48xf32> to vector<8x16xf32>
    %382 = vector.extract_strided_slice %380 {offsets = [0, 0], sizes = [8, 16], strides = [1, 1]} : vector<8x48xf32> to vector<8x16xf32>
    %383 = vector.extract_strided_slice %254 {offsets = [0, 16], sizes = [8, 16], strides = [1, 1]} : vector<8x48xf32> to vector<8x16xf32>
    %384 = vector.extract_strided_slice %380 {offsets = [0, 16], sizes = [8, 16], strides = [1, 1]} : vector<8x48xf32> to vector<8x16xf32>
    %385 = vector.extract_strided_slice %254 {offsets = [0, 32], sizes = [8, 16], strides = [1, 1]} : vector<8x48xf32> to vector<8x16xf32>
    %386 = vector.extract_strided_slice %380 {offsets = [0, 32], sizes = [8, 16], strides = [1, 1]} : vector<8x48xf32> to vector<8x16xf32>
    %387 = tpu.concatenate %381, %382, %383, %384, %385, %386 in 1 : vector<8x16xf32>, vector<8x16xf32>, vector<8x16xf32>, vector<8x16xf32>, vector<8x16xf32>, vector<8x16xf32> -> vector<8x96xf32>
    %c0_200 = arith.constant 0 : index
    %c0_201 = arith.constant 0 : index
    %388 = vector.load %arg30[%c0_200, %c0_201] : memref<32x96xf32, #tpu.memory_space<vmem>>, vector<32x96xf32>
    %c0_202 = arith.constant 0 : index
    %c0_203 = arith.constant 0 : index
    %389 = vector.load %arg31[%c0_202, %c0_203] : memref<1x96xf32, #tpu.memory_space<vmem>>, vector<1x96xf32>
    %cst_204 = arith.constant 0.000000e+00 : f32
    %390 = vector.broadcast %cst_204 : f32 to vector<1x32xf32>
    %391 = vector.extract_strided_slice %387 {offsets = [0, 0], sizes = [1, 96], strides = [1, 1]} : vector<8x96xf32> to vector<1x96xf32>
    %cst_205 = arith.constant dense<0.000000e+00> : vector<1x96xf32>
    %392 = tpu.matmul %390, %388, %cst_205 {dimension_numbers = #tpu.dot_dimension_numbers<[1], [0], [0], [1], [0, 0, 1, 1], [], []>} : vector<1x32xf32>, vector<32x96xf32>, vector<1x96xf32> -> vector<1x96xf32>
    %393 = arith.addf %392, %389 : vector<1x96xf32>
    %394 = vector.extract_strided_slice %391 {offsets = [0, 0], sizes = [1, 32], strides = [1, 1]} : vector<1x96xf32> to vector<1x32xf32>
    %395 = vector.extract_strided_slice %393 {offsets = [0, 0], sizes = [1, 32], strides = [1, 1]} : vector<1x96xf32> to vector<1x32xf32>
    %396 = arith.addf %394, %395 : vector<1x32xf32>
    %397 = arith.negf %396 : vector<1x32xf32>
    %398 = math.exp %397 : vector<1x32xf32>
    %cst_206 = arith.constant 1.000000e+00 : f32
    %399 = vector.broadcast %cst_206 : f32 to vector<1x32xf32>
    %400 = arith.addf %399, %398 : vector<1x32xf32>
    %401 = arith.divf %399, %400 : vector<1x32xf32>
    %402 = vector.extract_strided_slice %391 {offsets = [0, 32], sizes = [1, 32], strides = [1, 1]} : vector<1x96xf32> to vector<1x32xf32>
    %403 = vector.extract_strided_slice %393 {offsets = [0, 32], sizes = [1, 32], strides = [1, 1]} : vector<1x96xf32> to vector<1x32xf32>
    %404 = arith.addf %402, %403 : vector<1x32xf32>
    %405 = arith.negf %404 : vector<1x32xf32>
    %406 = math.exp %405 : vector<1x32xf32>
    %cst_207 = arith.constant 1.000000e+00 : f32
    %407 = vector.broadcast %cst_207 : f32 to vector<1x32xf32>
    %408 = arith.addf %407, %406 : vector<1x32xf32>
    %409 = arith.divf %407, %408 : vector<1x32xf32>
    %410 = vector.extract_strided_slice %391 {offsets = [0, 64], sizes = [1, 32], strides = [1, 1]} : vector<1x96xf32> to vector<1x32xf32>
    %411 = vector.extract_strided_slice %393 {offsets = [0, 64], sizes = [1, 32], strides = [1, 1]} : vector<1x96xf32> to vector<1x32xf32>
    %412 = arith.mulf %401, %411 : vector<1x32xf32>
    %413 = arith.addf %410, %412 : vector<1x32xf32>
    %414 = math.tanh %413 : vector<1x32xf32>
    %cst_208 = arith.constant 1.000000e+00 : f32
    %415 = vector.broadcast %cst_208 : f32 to vector<1x32xf32>
    %416 = arith.subf %415, %409 : vector<1x32xf32>
    %417 = arith.mulf %416, %414 : vector<1x32xf32>
    %418 = arith.mulf %409, %390 : vector<1x32xf32>
    %419 = arith.addf %417, %418 : vector<1x32xf32>
    %c0_209 = arith.constant 0 : index
    %c0_210 = arith.constant 0 : index
    %420 = vector.load %arg36[%c0_209, %c0_210] : memref<8x32xf32, #tpu.memory_space<vmem>>, vector<1x32xf32>
    tpu.vector_store %arg36[%c0_209, %c0_210], %419 {strides = array<i32>} : memref<8x32xf32, #tpu.memory_space<vmem>>, vector<1x32xf32>,
    %421 = vector.extract_strided_slice %387 {offsets = [1, 0], sizes = [1, 96], strides = [1, 1]} : vector<8x96xf32> to vector<1x96xf32>
    %cst_211 = arith.constant dense<0.000000e+00> : vector<1x96xf32>
    %422 = tpu.matmul %419, %388, %cst_211 {dimension_numbers = #tpu.dot_dimension_numbers<[1], [0], [0], [1], [0, 0, 1, 1], [], []>} : vector<1x32xf32>, vector<32x96xf32>, vector<1x96xf32> -> vector<1x96xf32>
    %423 = arith.addf %422, %389 : vector<1x96xf32>
    %424 = vector.extract_strided_slice %421 {offsets = [0, 0], sizes = [1, 32], strides = [1, 1]} : vector<1x96xf32> to vector<1x32xf32>
    %425 = vector.extract_strided_slice %423 {offsets = [0, 0], sizes = [1, 32], strides = [1, 1]} : vector<1x96xf32> to vector<1x32xf32>
    %426 = arith.addf %424, %425 : vector<1x32xf32>
    %427 = arith.negf %426 : vector<1x32xf32>
    %428 = math.exp %427 : vector<1x32xf32>
    %cst_212 = arith.constant 1.000000e+00 : f32
    %429 = vector.broadcast %cst_212 : f32 to vector<1x32xf32>
    %430 = arith.addf %429, %428 : vector<1x32xf32>
    %431 = arith.divf %429, %430 : vector<1x32xf32>
    %432 = vector.extract_strided_slice %421 {offsets = [0, 32], sizes = [1, 32], strides = [1, 1]} : vector<1x96xf32> to vector<1x32xf32>
    %433 = vector.extract_strided_slice %423 {offsets = [0, 32], sizes = [1, 32], strides = [1, 1]} : vector<1x96xf32> to vector<1x32xf32>
    %434 = arith.addf %432, %433 : vector<1x32xf32>
    %435 = arith.negf %434 : vector<1x32xf32>
    %436 = math.exp %435 : vector<1x32xf32>
    %cst_213 = arith.constant 1.000000e+00 : f32
    %437 = vector.broadcast %cst_213 : f32 to vector<1x32xf32>
    %438 = arith.addf %437, %436 : vector<1x32xf32>
    %439 = arith.divf %437, %438 : vector<1x32xf32>
    %440 = vector.extract_strided_slice %421 {offsets = [0, 64], sizes = [1, 32], strides = [1, 1]} : vector<1x96xf32> to vector<1x32xf32>
    %441 = vector.extract_strided_slice %423 {offsets = [0, 64], sizes = [1, 32], strides = [1, 1]} : vector<1x96xf32> to vector<1x32xf32>
    %442 = arith.mulf %431, %441 : vector<1x32xf32>
    %443 = arith.addf %440, %442 : vector<1x32xf32>
    %444 = math.tanh %443 : vector<1x32xf32>
    %cst_214 = arith.constant 1.000000e+00 : f32
    %445 = vector.broadcast %cst_214 : f32 to vector<1x32xf32>
    %446 = arith.subf %445, %439 : vector<1x32xf32>
    %447 = arith.mulf %446, %444 : vector<1x32xf32>
    %448 = arith.mulf %439, %419 : vector<1x32xf32>
    %449 = arith.addf %447, %448 : vector<1x32xf32>
    %c1_215 = arith.constant 1 : index
    %c0_216 = arith.constant 0 : index
    %450 = vector.load %arg36[%c1_215, %c0_216] : memref<8x32xf32, #tpu.memory_space<vmem>>, vector<1x32xf32>
    tpu.vector_store %arg36[%c1_215, %c0_216], %449 {strides = array<i32>} : memref<8x32xf32, #tpu.memory_space<vmem>>, vector<1x32xf32>,
    %451 = vector.extract_strided_slice %387 {offsets = [2, 0], sizes = [1, 96], strides = [1, 1]} : vector<8x96xf32> to vector<1x96xf32>
    %cst_217 = arith.constant dense<0.000000e+00> : vector<1x96xf32>
    %452 = tpu.matmul %449, %388, %cst_217 {dimension_numbers = #tpu.dot_dimension_numbers<[1], [0], [0], [1], [0, 0, 1, 1], [], []>} : vector<1x32xf32>, vector<32x96xf32>, vector<1x96xf32> -> vector<1x96xf32>
    %453 = arith.addf %452, %389 : vector<1x96xf32>
    %454 = vector.extract_strided_slice %451 {offsets = [0, 0], sizes = [1, 32], strides = [1, 1]} : vector<1x96xf32> to vector<1x32xf32>
    %455 = vector.extract_strided_slice %453 {offsets = [0, 0], sizes = [1, 32], strides = [1, 1]} : vector<1x96xf32> to vector<1x32xf32>
    %456 = arith.addf %454, %455 : vector<1x32xf32>
    %457 = arith.negf %456 : vector<1x32xf32>
    %458 = math.exp %457 : vector<1x32xf32>
    %cst_218 = arith.constant 1.000000e+00 : f32
    %459 = vector.broadcast %cst_218 : f32 to vector<1x32xf32>
    %460 = arith.addf %459, %458 : vector<1x32xf32>
    %461 = arith.divf %459, %460 : vector<1x32xf32>
    %462 = vector.extract_strided_slice %451 {offsets = [0, 32], sizes = [1, 32], strides = [1, 1]} : vector<1x96xf32> to vector<1x32xf32>
    %463 = vector.extract_strided_slice %453 {offsets = [0, 32], sizes = [1, 32], strides = [1, 1]} : vector<1x96xf32> to vector<1x32xf32>
    %464 = arith.addf %462, %463 : vector<1x32xf32>
    %465 = arith.negf %464 : vector<1x32xf32>
    %466 = math.exp %465 : vector<1x32xf32>
    %cst_219 = arith.constant 1.000000e+00 : f32
    %467 = vector.broadcast %cst_219 : f32 to vector<1x32xf32>
    %468 = arith.addf %467, %466 : vector<1x32xf32>
    %469 = arith.divf %467, %468 : vector<1x32xf32>
    %470 = vector.extract_strided_slice %451 {offsets = [0, 64], sizes = [1, 32], strides = [1, 1]} : vector<1x96xf32> to vector<1x32xf32>
    %471 = vector.extract_strided_slice %453 {offsets = [0, 64], sizes = [1, 32], strides = [1, 1]} : vector<1x96xf32> to vector<1x32xf32>
    %472 = arith.mulf %461, %471 : vector<1x32xf32>
    %473 = arith.addf %470, %472 : vector<1x32xf32>
    %474 = math.tanh %473 : vector<1x32xf32>
    %cst_220 = arith.constant 1.000000e+00 : f32
    %475 = vector.broadcast %cst_220 : f32 to vector<1x32xf32>
    %476 = arith.subf %475, %469 : vector<1x32xf32>
    %477 = arith.mulf %476, %474 : vector<1x32xf32>
    %478 = arith.mulf %469, %449 : vector<1x32xf32>
    %479 = arith.addf %477, %478 : vector<1x32xf32>
    %c2_221 = arith.constant 2 : index
    %c0_222 = arith.constant 0 : index
    %480 = vector.load %arg36[%c2_221, %c0_222] : memref<8x32xf32, #tpu.memory_space<vmem>>, vector<1x32xf32>
    tpu.vector_store %arg36[%c2_221, %c0_222], %479 {strides = array<i32>} : memref<8x32xf32, #tpu.memory_space<vmem>>, vector<1x32xf32>,
    %481 = vector.extract_strided_slice %387 {offsets = [3, 0], sizes = [1, 96], strides = [1, 1]} : vector<8x96xf32> to vector<1x96xf32>
    %cst_223 = arith.constant dense<0.000000e+00> : vector<1x96xf32>
    %482 = tpu.matmul %479, %388, %cst_223 {dimension_numbers = #tpu.dot_dimension_numbers<[1], [0], [0], [1], [0, 0, 1, 1], [], []>} : vector<1x32xf32>, vector<32x96xf32>, vector<1x96xf32> -> vector<1x96xf32>
    %483 = arith.addf %482, %389 : vector<1x96xf32>
    %484 = vector.extract_strided_slice %481 {offsets = [0, 0], sizes = [1, 32], strides = [1, 1]} : vector<1x96xf32> to vector<1x32xf32>
    %485 = vector.extract_strided_slice %483 {offsets = [0, 0], sizes = [1, 32], strides = [1, 1]} : vector<1x96xf32> to vector<1x32xf32>
    %486 = arith.addf %484, %485 : vector<1x32xf32>
    %487 = arith.negf %486 : vector<1x32xf32>
    %488 = math.exp %487 : vector<1x32xf32>
    %cst_224 = arith.constant 1.000000e+00 : f32
    %489 = vector.broadcast %cst_224 : f32 to vector<1x32xf32>
    %490 = arith.addf %489, %488 : vector<1x32xf32>
    %491 = arith.divf %489, %490 : vector<1x32xf32>
    %492 = vector.extract_strided_slice %481 {offsets = [0, 32], sizes = [1, 32], strides = [1, 1]} : vector<1x96xf32> to vector<1x32xf32>
    %493 = vector.extract_strided_slice %483 {offsets = [0, 32], sizes = [1, 32], strides = [1, 1]} : vector<1x96xf32> to vector<1x32xf32>
    %494 = arith.addf %492, %493 : vector<1x32xf32>
    %495 = arith.negf %494 : vector<1x32xf32>
    %496 = math.exp %495 : vector<1x32xf32>
    %cst_225 = arith.constant 1.000000e+00 : f32
    %497 = vector.broadcast %cst_225 : f32 to vector<1x32xf32>
    %498 = arith.addf %497, %496 : vector<1x32xf32>
    %499 = arith.divf %497, %498 : vector<1x32xf32>
    %500 = vector.extract_strided_slice %481 {offsets = [0, 64], sizes = [1, 32], strides = [1, 1]} : vector<1x96xf32> to vector<1x32xf32>
    %501 = vector.extract_strided_slice %483 {offsets = [0, 64], sizes = [1, 32], strides = [1, 1]} : vector<1x96xf32> to vector<1x32xf32>
    %502 = arith.mulf %491, %501 : vector<1x32xf32>
    %503 = arith.addf %500, %502 : vector<1x32xf32>
    %504 = math.tanh %503 : vector<1x32xf32>
    %cst_226 = arith.constant 1.000000e+00 : f32
    %505 = vector.broadcast %cst_226 : f32 to vector<1x32xf32>
    %506 = arith.subf %505, %499 : vector<1x32xf32>
    %507 = arith.mulf %506, %504 : vector<1x32xf32>
    %508 = arith.mulf %499, %479 : vector<1x32xf32>
    %509 = arith.addf %507, %508 : vector<1x32xf32>
    %c3_227 = arith.constant 3 : index
    %c0_228 = arith.constant 0 : index
    %510 = vector.load %arg36[%c3_227, %c0_228] : memref<8x32xf32, #tpu.memory_space<vmem>>, vector<1x32xf32>
    tpu.vector_store %arg36[%c3_227, %c0_228], %509 {strides = array<i32>} : memref<8x32xf32, #tpu.memory_space<vmem>>, vector<1x32xf32>,
    %511 = vector.extract_strided_slice %387 {offsets = [4, 0], sizes = [1, 96], strides = [1, 1]} : vector<8x96xf32> to vector<1x96xf32>
    %cst_229 = arith.constant dense<0.000000e+00> : vector<1x96xf32>
    %512 = tpu.matmul %509, %388, %cst_229 {dimension_numbers = #tpu.dot_dimension_numbers<[1], [0], [0], [1], [0, 0, 1, 1], [], []>} : vector<1x32xf32>, vector<32x96xf32>, vector<1x96xf32> -> vector<1x96xf32>
    %513 = arith.addf %512, %389 : vector<1x96xf32>
    %514 = vector.extract_strided_slice %511 {offsets = [0, 0], sizes = [1, 32], strides = [1, 1]} : vector<1x96xf32> to vector<1x32xf32>
    %515 = vector.extract_strided_slice %513 {offsets = [0, 0], sizes = [1, 32], strides = [1, 1]} : vector<1x96xf32> to vector<1x32xf32>
    %516 = arith.addf %514, %515 : vector<1x32xf32>
    %517 = arith.negf %516 : vector<1x32xf32>
    %518 = math.exp %517 : vector<1x32xf32>
    %cst_230 = arith.constant 1.000000e+00 : f32
    %519 = vector.broadcast %cst_230 : f32 to vector<1x32xf32>
    %520 = arith.addf %519, %518 : vector<1x32xf32>
    %521 = arith.divf %519, %520 : vector<1x32xf32>
    %522 = vector.extract_strided_slice %511 {offsets = [0, 32], sizes = [1, 32], strides = [1, 1]} : vector<1x96xf32> to vector<1x32xf32>
    %523 = vector.extract_strided_slice %513 {offsets = [0, 32], sizes = [1, 32], strides = [1, 1]} : vector<1x96xf32> to vector<1x32xf32>
    %524 = arith.addf %522, %523 : vector<1x32xf32>
    %525 = arith.negf %524 : vector<1x32xf32>
    %526 = math.exp %525 : vector<1x32xf32>
    %cst_231 = arith.constant 1.000000e+00 : f32
    %527 = vector.broadcast %cst_231 : f32 to vector<1x32xf32>
    %528 = arith.addf %527, %526 : vector<1x32xf32>
    %529 = arith.divf %527, %528 : vector<1x32xf32>
    %530 = vector.extract_strided_slice %511 {offsets = [0, 64], sizes = [1, 32], strides = [1, 1]} : vector<1x96xf32> to vector<1x32xf32>
    %531 = vector.extract_strided_slice %513 {offsets = [0, 64], sizes = [1, 32], strides = [1, 1]} : vector<1x96xf32> to vector<1x32xf32>
    %532 = arith.mulf %521, %531 : vector<1x32xf32>
    %533 = arith.addf %530, %532 : vector<1x32xf32>
    %534 = math.tanh %533 : vector<1x32xf32>
    %cst_232 = arith.constant 1.000000e+00 : f32
    %535 = vector.broadcast %cst_232 : f32 to vector<1x32xf32>
    %536 = arith.subf %535, %529 : vector<1x32xf32>
    %537 = arith.mulf %536, %534 : vector<1x32xf32>
    %538 = arith.mulf %529, %509 : vector<1x32xf32>
    %539 = arith.addf %537, %538 : vector<1x32xf32>
    %c4_233 = arith.constant 4 : index
    %c0_234 = arith.constant 0 : index
    %540 = vector.load %arg36[%c4_233, %c0_234] : memref<8x32xf32, #tpu.memory_space<vmem>>, vector<1x32xf32>
    tpu.vector_store %arg36[%c4_233, %c0_234], %539 {strides = array<i32>} : memref<8x32xf32, #tpu.memory_space<vmem>>, vector<1x32xf32>,
    %541 = vector.extract_strided_slice %387 {offsets = [5, 0], sizes = [1, 96], strides = [1, 1]} : vector<8x96xf32> to vector<1x96xf32>
    %cst_235 = arith.constant dense<0.000000e+00> : vector<1x96xf32>
    %542 = tpu.matmul %539, %388, %cst_235 {dimension_numbers = #tpu.dot_dimension_numbers<[1], [0], [0], [1], [0, 0, 1, 1], [], []>} : vector<1x32xf32>, vector<32x96xf32>, vector<1x96xf32> -> vector<1x96xf32>
    %543 = arith.addf %542, %389 : vector<1x96xf32>
    %544 = vector.extract_strided_slice %541 {offsets = [0, 0], sizes = [1, 32], strides = [1, 1]} : vector<1x96xf32> to vector<1x32xf32>
    %545 = vector.extract_strided_slice %543 {offsets = [0, 0], sizes = [1, 32], strides = [1, 1]} : vector<1x96xf32> to vector<1x32xf32>
    %546 = arith.addf %544, %545 : vector<1x32xf32>
    %547 = arith.negf %546 : vector<1x32xf32>
    %548 = math.exp %547 : vector<1x32xf32>
    %cst_236 = arith.constant 1.000000e+00 : f32
    %549 = vector.broadcast %cst_236 : f32 to vector<1x32xf32>
    %550 = arith.addf %549, %548 : vector<1x32xf32>
    %551 = arith.divf %549, %550 : vector<1x32xf32>
    %552 = vector.extract_strided_slice %541 {offsets = [0, 32], sizes = [1, 32], strides = [1, 1]} : vector<1x96xf32> to vector<1x32xf32>
    %553 = vector.extract_strided_slice %543 {offsets = [0, 32], sizes = [1, 32], strides = [1, 1]} : vector<1x96xf32> to vector<1x32xf32>
    %554 = arith.addf %552, %553 : vector<1x32xf32>
    %555 = arith.negf %554 : vector<1x32xf32>
    %556 = math.exp %555 : vector<1x32xf32>
    %cst_237 = arith.constant 1.000000e+00 : f32
    %557 = vector.broadcast %cst_237 : f32 to vector<1x32xf32>
    %558 = arith.addf %557, %556 : vector<1x32xf32>
    %559 = arith.divf %557, %558 : vector<1x32xf32>
    %560 = vector.extract_strided_slice %541 {offsets = [0, 64], sizes = [1, 32], strides = [1, 1]} : vector<1x96xf32> to vector<1x32xf32>
    %561 = vector.extract_strided_slice %543 {offsets = [0, 64], sizes = [1, 32], strides = [1, 1]} : vector<1x96xf32> to vector<1x32xf32>
    %562 = arith.mulf %551, %561 : vector<1x32xf32>
    %563 = arith.addf %560, %562 : vector<1x32xf32>
    %564 = math.tanh %563 : vector<1x32xf32>
    %cst_238 = arith.constant 1.000000e+00 : f32
    %565 = vector.broadcast %cst_238 : f32 to vector<1x32xf32>
    %566 = arith.subf %565, %559 : vector<1x32xf32>
    %567 = arith.mulf %566, %564 : vector<1x32xf32>
    %568 = arith.mulf %559, %539 : vector<1x32xf32>
    %569 = arith.addf %567, %568 : vector<1x32xf32>
    %c5_239 = arith.constant 5 : index
    %c0_240 = arith.constant 0 : index
    %570 = vector.load %arg36[%c5_239, %c0_240] : memref<8x32xf32, #tpu.memory_space<vmem>>, vector<1x32xf32>
    tpu.vector_store %arg36[%c5_239, %c0_240], %569 {strides = array<i32>} : memref<8x32xf32, #tpu.memory_space<vmem>>, vector<1x32xf32>,
    %571 = vector.extract_strided_slice %387 {offsets = [6, 0], sizes = [1, 96], strides = [1, 1]} : vector<8x96xf32> to vector<1x96xf32>
    %cst_241 = arith.constant dense<0.000000e+00> : vector<1x96xf32>
    %572 = tpu.matmul %569, %388, %cst_241 {dimension_numbers = #tpu.dot_dimension_numbers<[1], [0], [0], [1], [0, 0, 1, 1], [], []>} : vector<1x32xf32>, vector<32x96xf32>, vector<1x96xf32> -> vector<1x96xf32>
    %573 = arith.addf %572, %389 : vector<1x96xf32>
    %574 = vector.extract_strided_slice %571 {offsets = [0, 0], sizes = [1, 32], strides = [1, 1]} : vector<1x96xf32> to vector<1x32xf32>
    %575 = vector.extract_strided_slice %573 {offsets = [0, 0], sizes = [1, 32], strides = [1, 1]} : vector<1x96xf32> to vector<1x32xf32>
    %576 = arith.addf %574, %575 : vector<1x32xf32>
    %577 = arith.negf %576 : vector<1x32xf32>
    %578 = math.exp %577 : vector<1x32xf32>
    %cst_242 = arith.constant 1.000000e+00 : f32
    %579 = vector.broadcast %cst_242 : f32 to vector<1x32xf32>
    %580 = arith.addf %579, %578 : vector<1x32xf32>
    %581 = arith.divf %579, %580 : vector<1x32xf32>
    %582 = vector.extract_strided_slice %571 {offsets = [0, 32], sizes = [1, 32], strides = [1, 1]} : vector<1x96xf32> to vector<1x32xf32>
    %583 = vector.extract_strided_slice %573 {offsets = [0, 32], sizes = [1, 32], strides = [1, 1]} : vector<1x96xf32> to vector<1x32xf32>
    %584 = arith.addf %582, %583 : vector<1x32xf32>
    %585 = arith.negf %584 : vector<1x32xf32>
    %586 = math.exp %585 : vector<1x32xf32>
    %cst_243 = arith.constant 1.000000e+00 : f32
    %587 = vector.broadcast %cst_243 : f32 to vector<1x32xf32>
    %588 = arith.addf %587, %586 : vector<1x32xf32>
    %589 = arith.divf %587, %588 : vector<1x32xf32>
    %590 = vector.extract_strided_slice %571 {offsets = [0, 64], sizes = [1, 32], strides = [1, 1]} : vector<1x96xf32> to vector<1x32xf32>
    %591 = vector.extract_strided_slice %573 {offsets = [0, 64], sizes = [1, 32], strides = [1, 1]} : vector<1x96xf32> to vector<1x32xf32>
    %592 = arith.mulf %581, %591 : vector<1x32xf32>
    %593 = arith.addf %590, %592 : vector<1x32xf32>
    %594 = math.tanh %593 : vector<1x32xf32>
    %cst_244 = arith.constant 1.000000e+00 : f32
    %595 = vector.broadcast %cst_244 : f32 to vector<1x32xf32>
    %596 = arith.subf %595, %589 : vector<1x32xf32>
    %597 = arith.mulf %596, %594 : vector<1x32xf32>
    %598 = arith.mulf %589, %569 : vector<1x32xf32>
    %599 = arith.addf %597, %598 : vector<1x32xf32>
    %c6_245 = arith.constant 6 : index
    %c0_246 = arith.constant 0 : index
    %600 = vector.load %arg36[%c6_245, %c0_246] : memref<8x32xf32, #tpu.memory_space<vmem>>, vector<1x32xf32>
    tpu.vector_store %arg36[%c6_245, %c0_246], %599 {strides = array<i32>} : memref<8x32xf32, #tpu.memory_space<vmem>>, vector<1x32xf32>,
    %601 = vector.extract_strided_slice %387 {offsets = [7, 0], sizes = [1, 96], strides = [1, 1]} : vector<8x96xf32> to vector<1x96xf32>
    %cst_247 = arith.constant dense<0.000000e+00> : vector<1x96xf32>
    %602 = tpu.matmul %599, %388, %cst_247 {dimension_numbers = #tpu.dot_dimension_numbers<[1], [0], [0], [1], [0, 0, 1, 1], [], []>} : vector<1x32xf32>, vector<32x96xf32>, vector<1x96xf32> -> vector<1x96xf32>
    %603 = arith.addf %602, %389 : vector<1x96xf32>
    %604 = vector.extract_strided_slice %601 {offsets = [0, 0], sizes = [1, 32], strides = [1, 1]} : vector<1x96xf32> to vector<1x32xf32>
    %605 = vector.extract_strided_slice %603 {offsets = [0, 0], sizes = [1, 32], strides = [1, 1]} : vector<1x96xf32> to vector<1x32xf32>
    %606 = arith.addf %604, %605 : vector<1x32xf32>
    %607 = arith.negf %606 : vector<1x32xf32>
    %608 = math.exp %607 : vector<1x32xf32>
    %cst_248 = arith.constant 1.000000e+00 : f32
    %609 = vector.broadcast %cst_248 : f32 to vector<1x32xf32>
    %610 = arith.addf %609, %608 : vector<1x32xf32>
    %611 = arith.divf %609, %610 : vector<1x32xf32>
    %612 = vector.extract_strided_slice %601 {offsets = [0, 32], sizes = [1, 32], strides = [1, 1]} : vector<1x96xf32> to vector<1x32xf32>
    %613 = vector.extract_strided_slice %603 {offsets = [0, 32], sizes = [1, 32], strides = [1, 1]} : vector<1x96xf32> to vector<1x32xf32>
    %614 = arith.addf %612, %613 : vector<1x32xf32>
    %615 = arith.negf %614 : vector<1x32xf32>
    %616 = math.exp %615 : vector<1x32xf32>
    %cst_249 = arith.constant 1.000000e+00 : f32
    %617 = vector.broadcast %cst_249 : f32 to vector<1x32xf32>
    %618 = arith.addf %617, %616 : vector<1x32xf32>
    %619 = arith.divf %617, %618 : vector<1x32xf32>
    %620 = vector.extract_strided_slice %601 {offsets = [0, 64], sizes = [1, 32], strides = [1, 1]} : vector<1x96xf32> to vector<1x32xf32>
    %621 = vector.extract_strided_slice %603 {offsets = [0, 64], sizes = [1, 32], strides = [1, 1]} : vector<1x96xf32> to vector<1x32xf32>
    %622 = arith.mulf %611, %621 : vector<1x32xf32>
    %623 = arith.addf %620, %622 : vector<1x32xf32>
    %624 = math.tanh %623 : vector<1x32xf32>
    %cst_250 = arith.constant 1.000000e+00 : f32
    %625 = vector.broadcast %cst_250 : f32 to vector<1x32xf32>
    %626 = arith.subf %625, %619 : vector<1x32xf32>
    %627 = arith.mulf %626, %624 : vector<1x32xf32>
    %628 = arith.mulf %619, %599 : vector<1x32xf32>
    %629 = arith.addf %627, %628 : vector<1x32xf32>
    %c7_251 = arith.constant 7 : index
    %c0_252 = arith.constant 0 : index
    %630 = vector.load %arg36[%c7_251, %c0_252] : memref<8x32xf32, #tpu.memory_space<vmem>>, vector<1x32xf32>
    tpu.vector_store %arg36[%c7_251, %c0_252], %629 {strides = array<i32>} : memref<8x32xf32, #tpu.memory_space<vmem>>, vector<1x32xf32>,
    %c0_253 = arith.constant 0 : index
    %c0_254 = arith.constant 0 : index
    %631 = vector.load %arg32[%c0_253, %c0_254] : memref<16x4xf32, #tpu.memory_space<vmem>>, vector<16x4xf32>
    %c0_255 = arith.constant 0 : index
    %c0_256 = arith.constant 0 : index
    %632 = vector.load %arg33[%c0_255, %c0_256] : memref<1x4xf32, #tpu.memory_space<vmem>>, vector<1x4xf32>
    %c0_257 = arith.constant 0 : index
    %c0_258 = arith.constant 0 : index
    %633 = vector.load %arg36[%c0_257, %c0_258] : memref<8x32xf32, #tpu.memory_space<vmem>>, vector<8x16xf32>
    %cst_259 = arith.constant 0.000000e+00 : f32
    %634 = vector.broadcast %cst_259 : f32 to vector<8x16xf32>
    %635 = arith.maximumf %633, %634 : vector<8x16xf32>
    %cst_260 = arith.constant dense<0.000000e+00> : vector<8x4xf32>
    %636 = tpu.matmul %635, %631, %cst_260 {dimension_numbers = #tpu.dot_dimension_numbers<[1], [0], [0], [1], [0, 0, 1, 1], [], []>} : vector<8x16xf32>, vector<16x4xf32>, vector<8x4xf32> -> vector<8x4xf32>
    %637 = vector.broadcast %632 : vector<1x4xf32> to vector<8x4xf32>
    %638 = arith.addf %636, %637 : vector<8x4xf32>
    %c0_261 = arith.constant 0 : index
    %c0_262 = arith.constant 0 : index
    %c0_263 = arith.constant 0 : index
    %639 = vector.load %arg34[%c0_261, %c0_262, %c0_263] : memref<2x8x4xf32, #tpu.memory_space<vmem>>, vector<1x8x4xf32>
    %640 = vector.shape_cast %639 : vector<1x8x4xf32> to vector<8x4xf32>
    %641 = vector.shape_cast %638 : vector<8x4xf32> to vector<1x8x4xf32>
    tpu.vector_store %arg34[%c0_261, %c0_262, %c0_263], %641 {strides = array<i32>} : memref<2x8x4xf32, #tpu.memory_space<vmem>>, vector<1x8x4xf32>,
    %c0_264 = arith.constant 0 : index
    %c16 = arith.constant 16 : index
    %642 = vector.load %arg36[%c0_264, %c16] : memref<8x32xf32, #tpu.memory_space<vmem>>, vector<8x16xf32>
    %cst_265 = arith.constant 0.000000e+00 : f32
    %643 = vector.broadcast %cst_265 : f32 to vector<8x16xf32>
    %644 = arith.maximumf %642, %643 : vector<8x16xf32>
    %cst_266 = arith.constant dense<0.000000e+00> : vector<8x4xf32>
    %645 = tpu.matmul %644, %631, %cst_266 {dimension_numbers = #tpu.dot_dimension_numbers<[1], [0], [0], [1], [0, 0, 1, 1], [], []>} : vector<8x16xf32>, vector<16x4xf32>, vector<8x4xf32> -> vector<8x4xf32>
    %646 = vector.broadcast %632 : vector<1x4xf32> to vector<8x4xf32>
    %647 = arith.addf %645, %646 : vector<8x4xf32>
    %c1_267 = arith.constant 1 : index
    %c0_268 = arith.constant 0 : index
    %c0_269 = arith.constant 0 : index
    %648 = vector.load %arg34[%c1_267, %c0_268, %c0_269] : memref<2x8x4xf32, #tpu.memory_space<vmem>>, vector<1x8x4xf32>
    %649 = vector.shape_cast %648 : vector<1x8x4xf32> to vector<8x4xf32>
    %650 = vector.shape_cast %647 : vector<8x4xf32> to vector<1x8x4xf32>
    tpu.vector_store %arg34[%c1_267, %c0_268, %c0_269], %650 {strides = array<i32>} : memref<2x8x4xf32, #tpu.memory_space<vmem>>, vector<1x8x4xf32>,
    return
  }
}

</mosaic_0001>

<llo_original>
// kernel: festgcn_forward.1
$region0: #{festgcn_forward.1}
  #allocation0 [shape = 'u32[]', space=smem, size = 0x4, offset = 0x4, fixed_abs, tag = 'smem constant byte address 0x4 - core index']
  #allocation1 [shape = 'u32[72,128]{1,0:T(1,128)}', space=vmem, size = 0x9000, scoped, tag = 'internal scratch']
  #allocation2 [shape = 'f32[8,9]{1,0:T(8,128)}', space=vmem, size = 0x1000, scoped, tag = 'scratch operand']
  #allocation3 [shape = 'f32[8,32]{1,0:T(8,128)}', space=vmem, size = 0x1000, scoped, tag = 'scratch operand']
  %s0 = inlined_call_operand.smem [shape: u32[35], index: -1, kind: input, shape index: {}]
  %s1 = sld [smem:[%s0]]
  %s2 = scalar_lea.smem %s0, 1
  %s3 = sld [smem:[%s2]]
  %s4 = scalar_lea.smem %s0, 2
  %s5 = sld [smem:[%s4]]
  %s6 = scalar_lea.smem %s0, 3
  %s7 = sld [smem:[%s6]]
  %s8 = scalar_lea.smem %s0, 4
  %s9 = sld [smem:[%s8]]
  %s10 = scalar_lea.smem %s0, 5
  %s11 = sld [smem:[%s10]]
  %s12 = scalar_lea.smem %s0, 6
  %s13 = sld [smem:[%s12]]
  %s14 = scalar_lea.smem %s0, 7
  %s15 = sld [smem:[%s14]]
  %s16 = scalar_lea.smem %s0, 8
  %s17 = sld [smem:[%s16]]
  %s18 = scalar_lea.smem %s0, 9
  %s19 = sld [smem:[%s18]]
  %s20 = scalar_lea.smem %s0, 10
  %s21 = sld [smem:[%s20]]
  %s22 = scalar_lea.smem %s0, 11
  %s23 = sld [smem:[%s22]]
  %s24 = scalar_lea.smem %s0, 12
  %s25 = sld [smem:[%s24]]
  %s26 = scalar_lea.smem %s0, 13
  %s27 = sld [smem:[%s26]]
  %s28 = scalar_lea.smem %s0, 14
  %s29 = sld [smem:[%s28]]
  %s30 = scalar_lea.smem %s0, 15
  %s31 = sld [smem:[%s30]]
  %s32 = scalar_lea.smem %s0, 16
  %s33 = sld [smem:[%s32]]
  %s34 = scalar_lea.smem %s0, 17
  %s35 = sld [smem:[%s34]]
  %s36 = scalar_lea.smem %s0, 18
  %s37 = sld [smem:[%s36]]
  %s38 = scalar_lea.smem %s0, 19
  %s39 = sld [smem:[%s38]]
  %s40 = scalar_lea.smem %s0, 20
  %s41 = sld [smem:[%s40]]
  %s42 = scalar_lea.smem %s0, 21
  %s43 = sld [smem:[%s42]]
  %s44 = scalar_lea.smem %s0, 22
  %s45 = sld [smem:[%s44]]
  %s46 = scalar_lea.smem %s0, 23
  %s47 = sld [smem:[%s46]]
  %s48 = scalar_lea.smem %s0, 24
  %s49 = sld [smem:[%s48]]
  %s50 = scalar_lea.smem %s0, 25
  %s51 = sld [smem:[%s50]]
  %s52 = scalar_lea.smem %s0, 26
  %s53 = sld [smem:[%s52]]
  %s54 = scalar_lea.smem %s0, 27
  %s55 = sld [smem:[%s54]]
  %s56 = scalar_lea.smem %s0, 28
  %s57 = sld [smem:[%s56]]
  %s58 = scalar_lea.smem %s0, 29
  %s59 = sld [smem:[%s58]]
  %s60 = scalar_lea.smem %s0, 30
  %s61 = sld [smem:[%s60]]
  %s62 = scalar_lea.smem %s0, 31
  %s63 = sld [smem:[%s62]]
  %s64 = scalar_lea.smem %s0, 32
  %s65 = sld [smem:[%s64]]
  %s66 = scalar_lea.smem %s0, 33
  %s67 = sld [smem:[%s66]]
  %s68 = scalar_lea.smem %s0, 34
  %s69 = sld [smem:[%s68]]
  %s70 = sld [smem:[#allocation0]]
  $region182: #{festgcn_forward.1} parent=0
    _
  %s72 = ssub.s32 1, %s70
  %s73 = scalar_select 0, %s72, %s70
  $region1: #{festgcn_forward.1} parent=0
    #allocation4 [shape = 'u8[512]{0}', space=vmem, size = 0x400, scoped, tag = 'input window, operand 15, single buffered']
    #allocation5 [shape = 's32[1]{0}', space=sflag, size = 0x4, scoped, tag = 'scoped memory for festgcn_forward.1']
    #allocation6 [shape = 'u8[512]{0}', space=vmem, size = 0x400, scoped, tag = 'input window, operand 17, single buffered']
    #allocation7 [shape = 's32[1]{0}', space=sflag, size = 0x4, scoped, tag = 'scoped memory for festgcn_forward.1']
    #allocation8 [shape = 'u8[512]{0}', space=vmem, size = 0x400, scoped, tag = 'input window, operand 19, single buffered']
    #allocation9 [shape = 'u8[512]{0}', space=vmem, size = 0x400, scoped, tag = 'input window, operand 21, single buffered']
    #allocation10 [shape = 's32[1]{0}', space=sflag, size = 0x4, scoped, tag = 'scoped memory for festgcn_forward.1']
    #allocation11 [shape = 'u8[512]{0}', space=vmem, size = 0x400, scoped, tag = 'input window, operand 23, single buffered']
    #allocation12 [shape = 'u8[512]{0}', space=vmem, size = 0x400, scoped, tag = 'input window, operand 27, single buffered']
    #allocation13 [shape = 's32[1]{0}', space=sflag, size = 0x4, scoped, tag = 'scoped memory for festgcn_forward.1']
    #allocation14 [shape = 'u8[512]{0}', space=vmem, size = 0x400, scoped, tag = 'input window, operand 29, single buffered']
    #allocation15 [shape = 'u8[512]{0}', space=vmem, size = 0x400, scoped, tag = 'input window, operand 31, single buffered']
    #allocation16 [shape = 's32[1]{0}', space=sflag, size = 0x4, scoped, tag = 'scoped memory for festgcn_forward.1']
    #allocation17 [shape = 'u8[512]{0}', space=vmem, size = 0x400, scoped, tag = 'input window, operand 33, single buffered']
    %74 = vsyncpa [#allocation5], 0
    %75 = vsyncpa [#allocation7], 0
    %76 = vsyncpa [#allocation10], 0
    %77 = vsyncpa [#allocation13], 0
    %78 = vsyncpa [#allocation16], 0
    // Predicated region
    $region2: #{festgcn_forward.1} parent=1 // pred_check
      _
    $region3: #{festgcn_forward.1} parent=1 // pred_check_branch
      %80 = sbr.rel (0) target = $region5
    $region4: #{festgcn_forward.1} parent=1 // pred_region
      _
    $region5: #{festgcn_forward.1} parent=1 // pred_fallthru
      _
    // Predicated region
    $region6: #{festgcn_forward.1} parent=1 // pred_check
      _
    $region7: #{festgcn_forward.1} parent=1 // pred_check_branch
      %82 = sbr.rel (0) target = $region9
    $region8: #{festgcn_forward.1} parent=1 // pred_region
      _
    $region9: #{festgcn_forward.1} parent=1 // pred_fallthru
      _
    // Predicated region
    $region10: #{festgcn_forward.1} parent=1 // pred_check
      _
    $region11: #{festgcn_forward.1} parent=1 // pred_check_branch
      %84 = sbr.rel (0) target = $region13
    $region12: #{festgcn_forward.1} parent=1 // pred_region
      _
    $region13: #{festgcn_forward.1} parent=1 // pred_fallthru
      _
    // Predicated region
    $region14: #{festgcn_forward.1} parent=1 // pred_check
      _
    $region15: #{festgcn_forward.1} parent=1 // pred_check_branch
      %86 = sbr.rel (0) target = $region17
    $region16: #{festgcn_forward.1} parent=1 // pred_region
      _
    $region17: #{festgcn_forward.1} parent=1 // pred_fallthru
      _
    // Predicated region
    $region18: #{festgcn_forward.1} parent=1 // pred_check
      _
    $region19: #{festgcn_forward.1} parent=1 // pred_check_branch
      %88 = sbr.rel (0) target = $region21
    $region20: #{festgcn_forward.1} parent=1 // pred_region
      _
    $region21: #{festgcn_forward.1} parent=1 // pred_fallthru
      _
    // Predicated region
    $region22: #{festgcn_forward.1} parent=1 // pred_check
      _
    $region23: #{festgcn_forward.1} parent=1 // pred_check_branch
      %90 = sbr.rel (0) target = $region25
    $region24: #{festgcn_forward.1} parent=1 // pred_region
      _
    $region25: #{festgcn_forward.1} parent=1 // pred_fallthru
      _
    // Predicated region
    $region26: #{festgcn_forward.1} parent=1 // pred_check
      _
    $region27: #{festgcn_forward.1} parent=1 // pred_check_branch
      %92 = sbr.rel (0) target = $region29
    $region28: #{festgcn_forward.1} parent=1 // pred_region
      _
    $region29: #{festgcn_forward.1} parent=1 // pred_fallthru
      _
    // Predicated region
    $region30: #{festgcn_forward.1} parent=1 // pred_check
      _
    $region31: #{festgcn_forward.1} parent=1 // pred_check_branch
      %94 = sbr.rel (0) target = $region33
    $region32: #{festgcn_forward.1} parent=1 // pred_region
      _
    $region33: #{festgcn_forward.1} parent=1 // pred_fallthru
      _
    // Predicated region
    $region34: #{festgcn_forward.1} parent=1 // pred_check
      _
    $region35: #{festgcn_forward.1} parent=1 // pred_check_branch
      %96 = sbr.rel (0) target = $region37
    $region36: #{festgcn_forward.1} parent=1 // pred_region
      _
    $region37: #{festgcn_forward.1} parent=1 // pred_fallthru
      _
    // Predicated region
    $region38: #{festgcn_forward.1} parent=1 // pred_check
      _
    $region39: #{festgcn_forward.1} parent=1 // pred_check_branch
      %98 = sbr.rel (0) target = $region41
    $region40: #{festgcn_forward.1} parent=1 // pred_region
      _
    $region41: #{festgcn_forward.1} parent=1 // pred_fallthru
      _
    // Predicated region
    $region42: #{festgcn_forward.1} parent=1 // pred_check
      _
    $region43: #{festgcn_forward.1} parent=1 // pred_check_branch
      %100 = sbr.rel (0) target = $region45
    $region44: #{festgcn_forward.1} parent=1 // pred_region
      _
    $region45: #{festgcn_forward.1} parent=1 // pred_fallthru
      _
    // Predicated region
    $region46: #{festgcn_forward.1} parent=1 // pred_check
      _
    $region47: #{festgcn_forward.1} parent=1 // pred_check_branch
      %102 = sbr.rel (0) target = $region49
    $region48: #{festgcn_forward.1} parent=1 // pred_region
      _
    $region49: #{festgcn_forward.1} parent=1 // pred_fallthru
      _
    // Predicated region
    $region50: #{festgcn_forward.1} parent=1 // pred_check
      _
    $region51: #{festgcn_forward.1} parent=1 // pred_check_branch
      %104 = sbr.rel (0) target = $region53
    $region52: #{festgcn_forward.1} parent=1 // pred_region
      _
    $region53: #{festgcn_forward.1} parent=1 // pred_fallthru
      _
    // Predicated region
    $region54: #{festgcn_forward.1} parent=1 // pred_check
      _
    $region55: #{festgcn_forward.1} parent=1 // pred_check_branch
      %106 = sbr.rel (0) target = $region57
    $region56: #{festgcn_forward.1} parent=1 // pred_region
      _
    $region57: #{festgcn_forward.1} parent=1 // pred_fallthru
      _
    // Predicated region
    $region58: #{festgcn_forward.1} parent=1 // pred_check
      _
    $region59: #{festgcn_forward.1} parent=1 // pred_check_branch
      %108 = sbr.rel (0) target = $region61
    $region60: #{festgcn_forward.1} parent=1 // pred_region
      _
    $region61: #{festgcn_forward.1} parent=1 // pred_fallthru
      _
    // Predicated region
    $region62: #{festgcn_forward.1} parent=1 // pred_check
      _
    $region63: #{festgcn_forward.1} parent=1 // pred_check_branch
      %110 = sbr.rel (0) target = $region65
    $region64: #{festgcn_forward.1} parent=1 // pred_region
      %112 = vsyncadd [#allocation5], 0
      %s114 = sshll.u32 %s31, 4
      %s115 = int_to_ptr.hbm [resolvable:$true] %s114
      %s116 = sshll.u32 [#allocation4], 4
      %s117 = int_to_ptr.vmem [resolvable:$true] %s116
      %119 = dma.hbm_to_vmem [thread:$0]  %s115, 16, %s117, [#allocation5]
    $region65: #{festgcn_forward.1} parent=1 // pred_fallthru
      _
    // Predicated region
    $region66: #{festgcn_forward.1} parent=1 // pred_check
      _
    $region67: #{festgcn_forward.1} parent=1 // pred_check_branch
      %121 = sbr.rel (0) target = $region69
    $region68: #{festgcn_forward.1} parent=1 // pred_region
      _
    $region69: #{festgcn_forward.1} parent=1 // pred_fallthru
      _
    // Predicated region
    $region70: #{festgcn_forward.1} parent=1 // pred_check
      _
    $region71: #{festgcn_forward.1} parent=1 // pred_check_branch
      %123 = sbr.rel (0) target = $region73
    $region72: #{festgcn_forward.1} parent=1 // pred_region
      %125 = vsyncadd [#allocation7], 0
      %s127 = sshll.u32 %s35, 4
      %s128 = int_to_ptr.hbm [resolvable:$true] %s127
      %s129 = sshll.u32 [#allocation6], 4
      %s130 = int_to_ptr.vmem [resolvable:$true] %s129
      %132 = dma.hbm_to_vmem [thread:$0]  %s128, 16, %s130, [#allocation7]
    $region73: #{festgcn_forward.1} parent=1 // pred_fallthru
      _
    // Predicated region
    $region74: #{festgcn_forward.1} parent=1 // pred_check
      _
    $region75: #{festgcn_forward.1} parent=1 // pred_check_branch
      %134 = sbr.rel (0) target = $region77
    $region76: #{festgcn_forward.1} parent=1 // pred_region
      _
    $region77: #{festgcn_forward.1} parent=1 // pred_fallthru
      _
    // Predicated region
    $region78: #{festgcn_forward.1} parent=1 // pred_check
      _
    $region79: #{festgcn_forward.1} parent=1 // pred_check_branch
      %136 = sbr.rel (0) target = $region81
    $region80: #{festgcn_forward.1} parent=1 // pred_region
      %138 = vsyncadd [#allocation7], 0
      %s140 = sshll.u32 %s39, 4
      %s141 = int_to_ptr.hbm [resolvable:$true] %s140
      %s142 = sshll.u32 [#allocation8], 4
      %s143 = int_to_ptr.vmem [resolvable:$true] %s142
      %145 = dma.hbm_to_vmem [thread:$0]  %s141, 16, %s143, [#allocation7]
    $region81: #{festgcn_forward.1} parent=1 // pred_fallthru
      _
    // Predicated region
    $region82: #{festgcn_forward.1} parent=1 // pred_check
      _
    $region83: #{festgcn_forward.1} parent=1 // pred_check_branch
      %147 = sbr.rel (0) target = $region85
    $region84: #{festgcn_forward.1} parent=1 // pred_region
      _
    $region85: #{festgcn_forward.1} parent=1 // pred_fallthru
      _
    // Predicated region
    $region86: #{festgcn_forward.1} parent=1 // pred_check
      _
    $region87: #{festgcn_forward.1} parent=1 // pred_check_branch
      %149 = sbr.rel (0) target = $region89
    $region88: #{festgcn_forward.1} parent=1 // pred_region
      %151 = vsyncadd [#allocation10], 0
      %s153 = sshll.u32 %s43, 4
      %s154 = int_to_ptr.hbm [resolvable:$true] %s153
      %s155 = sshll.u32 [#allocation9], 4
      %s156 = int_to_ptr.vmem [resolvable:$true] %s155
      %158 = dma.hbm_to_vmem [thread:$0]  %s154, 16, %s156, [#allocation10]
    $region89: #{festgcn_forward.1} parent=1 // pred_fallthru
      _
    // Predicated region
    $region90: #{festgcn_forward.1} parent=1 // pred_check
      _
    $region91: #{festgcn_forward.1} parent=1 // pred_check_branch
      %160 = sbr.rel (0) target = $region93
    $region92: #{festgcn_forward.1} parent=1 // pred_region
      _
    $region93: #{festgcn_forward.1} parent=1 // pred_fallthru
      _
    // Predicated region
    $region94: #{festgcn_forward.1} parent=1 // pred_check
      _
    $region95: #{festgcn_forward.1} parent=1 // pred_check_branch
      %162 = sbr.rel (0) target = $region97
    $region96: #{festgcn_forward.1} parent=1 // pred_region
      %164 = vsyncadd [#allocation10], 0
      %s166 = sshll.u32 %s47, 4
      %s167 = int_to_ptr.hbm [resolvable:$true] %s166
      %s168 = sshll.u32 [#allocation11], 4
      %s169 = int_to_ptr.vmem [resolvable:$true] %s168
      %171 = dma.hbm_to_vmem [thread:$0]  %s167, 16, %s169, [#allocation10]
    $region97: #{festgcn_forward.1} parent=1 // pred_fallthru
      _
    // Predicated region
    $region98: #{festgcn_forward.1} parent=1 // pred_check
      _
    $region99: #{festgcn_forward.1} parent=1 // pred_check_branch
      %173 = sbr.rel (0) target = $region101
    $region100: #{festgcn_forward.1} parent=1 // pred_region
      _
    $region101: #{festgcn_forward.1} parent=1 // pred_fallthru
      _
    // Predicated region
    $region102: #{festgcn_forward.1} parent=1 // pred_check
      _
    $region103: #{festgcn_forward.1} parent=1 // pred_check_branch
      %175 = sbr.rel (0) target = $region105
    $region104: #{festgcn_forward.1} parent=1 // pred_region
      _
    $region105: #{festgcn_forward.1} parent=1 // pred_fallthru
      _
    // Predicated region
    $region106: #{festgcn_forward.1} parent=1 // pred_check
      _
    $region107: #{festgcn_forward.1} parent=1 // pred_check_branch
      %177 = sbr.rel (0) target = $region109
    $region108: #{festgcn_forward.1} parent=1 // pred_region
      _
    $region109: #{festgcn_forward.1} parent=1 // pred_fallthru
      _
    // Predicated region
    $region110: #{festgcn_forward.1} parent=1 // pred_check
      _
    $region111: #{festgcn_forward.1} parent=1 // pred_check_branch
      %179 = sbr.rel (0) target = $region113
    $region112: #{festgcn_forward.1} parent=1 // pred_region
      %181 = vsyncadd [#allocation13], 0
      %s183 = sshll.u32 %s55, 4
      %s184 = int_to_ptr.hbm [resolvable:$true] %s183
      %s185 = sshll.u32 [#allocation12], 4
      %s186 = int_to_ptr.vmem [resolvable:$true] %s185
      %188 = dma.hbm_to_vmem [thread:$0]  %s184, 16, %s186, [#allocation13]
    $region113: #{festgcn_forward.1} parent=1 // pred_fallthru
      _
    // Predicated region
    $region114: #{festgcn_forward.1} parent=1 // pred_check
      _
    $region115: #{festgcn_forward.1} parent=1 // pred_check_branch
      %190 = sbr.rel (0) target = $region117
    $region116: #{festgcn_forward.1} parent=1 // pred_region
      _
    $region117: #{festgcn_forward.1} parent=1 // pred_fallthru
      _
    // Predicated region
    $region118: #{festgcn_forward.1} parent=1 // pred_check
      _
    $region119: #{festgcn_forward.1} parent=1 // pred_check_branch
      %192 = sbr.rel (0) target = $region121
    $region120: #{festgcn_forward.1} parent=1 // pred_region
      %194 = vsyncadd [#allocation13], 0
      %s196 = sshll.u32 %s59, 4
      %s197 = int_to_ptr.hbm [resolvable:$true] %s196
      %s198 = sshll.u32 [#allocation14], 4
      %s199 = int_to_ptr.vmem [resolvable:$true] %s198
      %201 = dma.hbm_to_vmem [thread:$0]  %s197, 16, %s199, [#allocation13]
    $region121: #{festgcn_forward.1} parent=1 // pred_fallthru
      _
    // Predicated region
    $region122: #{festgcn_forward.1} parent=1 // pred_check
      _
    $region123: #{festgcn_forward.1} parent=1 // pred_check_branch
      %203 = sbr.rel (0) target = $region125
    $region124: #{festgcn_forward.1} parent=1 // pred_region
      _
    $region125: #{festgcn_forward.1} parent=1 // pred_fallthru
      _
    // Predicated region
    $region126: #{festgcn_forward.1} parent=1 // pred_check
      _
    $region127: #{festgcn_forward.1} parent=1 // pred_check_branch
      %205 = sbr.rel (0) target = $region129
    $region128: #{festgcn_forward.1} parent=1 // pred_region
      %207 = vsyncadd [#allocation16], 0
      %s209 = sshll.u32 %s63, 4
      %s210 = int_to_ptr.hbm [resolvable:$true] %s209
      %s211 = sshll.u32 [#allocation15], 4
      %s212 = int_to_ptr.vmem [resolvable:$true] %s211
      %214 = dma.hbm_to_vmem [thread:$0]  %s210, 16, %s212, [#allocation16]
    $region129: #{festgcn_forward.1} parent=1 // pred_fallthru
      _
    // Predicated region
    $region130: #{festgcn_forward.1} parent=1 // pred_check
      _
    $region131: #{festgcn_forward.1} parent=1 // pred_check_branch
      %216 = sbr.rel (0) target = $region133
    $region132: #{festgcn_forward.1} parent=1 // pred_region
      _
    $region133: #{festgcn_forward.1} parent=1 // pred_fallthru
      _
    // Predicated region
    $region134: #{festgcn_forward.1} parent=1 // pred_check
      _
    $region135: #{festgcn_forward.1} parent=1 // pred_check_branch
      %218 = sbr.rel (0) target = $region137
    $region136: #{festgcn_forward.1} parent=1 // pred_region
      %220 = vsyncadd [#allocation16], 0
      %s222 = sshll.u32 %s67, 4
      %s223 = int_to_ptr.hbm [resolvable:$true] %s222
      %s224 = sshll.u32 [#allocation17], 4
      %s225 = int_to_ptr.vmem [resolvable:$true] %s224
      %227 = dma.hbm_to_vmem [thread:$0]  %s223, 16, %s225, [#allocation16]
    $region137: #{festgcn_forward.1} parent=1 // pred_fallthru
      _
    // Predicated region
    $region138: #{festgcn_forward.1} parent=1 // pred_check
      _
    $region139: #{festgcn_forward.1} parent=1 // pred_check_branch
      %229 = sbr.rel (0) target = $region141
    $region140: #{festgcn_forward.1} parent=1 // pred_region
      %231 = dma.done [#allocation5], 16
    $region141: #{festgcn_forward.1} parent=1 // pred_fallthru
      _
    // Predicated region
    $region142: #{festgcn_forward.1} parent=1 // pred_check
      _
    $region143: #{festgcn_forward.1} parent=1 // pred_check_branch
      %233 = sbr.rel (0) target = $region145
    $region144: #{festgcn_forward.1} parent=1 // pred_region
      %235 = dma.done [#allocation7], 16
    $region145: #{festgcn_forward.1} parent=1 // pred_fallthru
      _
    // Predicated region
    $region146: #{festgcn_forward.1} parent=1 // pred_check
      _
    $region147: #{festgcn_forward.1} parent=1 // pred_check_branch
      %237 = sbr.rel (0) target = $region149
    $region148: #{festgcn_forward.1} parent=1 // pred_region
      %239 = dma.done [#allocation7], 16
    $region149: #{festgcn_forward.1} parent=1 // pred_fallthru
      _
    // Predicated region
    $region150: #{festgcn_forward.1} parent=1 // pred_check
      _
    $region151: #{festgcn_forward.1} parent=1 // pred_check_branch
      %241 = sbr.rel (0) target = $region153
    $region152: #{festgcn_forward.1} parent=1 // pred_region
      %243 = dma.done [#allocation10], 16
    $region153: #{festgcn_forward.1} parent=1 // pred_fallthru
      _
    // Predicated region
    $region154: #{festgcn_forward.1} parent=1 // pred_check
      _
    $region155: #{festgcn_forward.1} parent=1 // pred_check_branch
      %245 = sbr.rel (0) target = $region157
    $region156: #{festgcn_forward.1} parent=1 // pred_region
      %247 = dma.done [#allocation10], 16
    $region157: #{festgcn_forward.1} parent=1 // pred_fallthru
      _
    // Predicated region
    $region158: #{festgcn_forward.1} parent=1 // pred_check
      _
    $region159: #{festgcn_forward.1} parent=1 // pred_check_branch
      %249 = sbr.rel (0) target = $region161
    $region160: #{festgcn_forward.1} parent=1 // pred_region
      %251 = dma.done [#allocation13], 16
    $region161: #{festgcn_forward.1} parent=1 // pred_fallthru
      _
    // Predicated region
    $region162: #{festgcn_forward.1} parent=1 // pred_check
      _
    $region163: #{festgcn_forward.1} parent=1 // pred_check_branch
      %253 = sbr.rel (0) target = $region165
    $region164: #{festgcn_forward.1} parent=1 // pred_region
      %255 = dma.done [#allocation13], 16
    $region165: #{festgcn_forward.1} parent=1 // pred_fallthru
      _
    // Predicated region
    $region166: #{festgcn_forward.1} parent=1 // pred_check
      _
    $region167: #{festgcn_forward.1} parent=1 // pred_check_branch
      %257 = sbr.rel (0) target = $region169
    $region168: #{festgcn_forward.1} parent=1 // pred_region
      %259 = dma.done [#allocation16], 16
    $region169: #{festgcn_forward.1} parent=1 // pred_fallthru
      _
    // Predicated region
    $region170: #{festgcn_forward.1} parent=1 // pred_check
      _
    $region171: #{festgcn_forward.1} parent=1 // pred_check_branch
      %261 = sbr.rel (0) target = $region173
    $region172: #{festgcn_forward.1} parent=1 // pred_region
      %263 = dma.done [#allocation16], 16
    $region173: #{festgcn_forward.1} parent=1 // pred_fallthru
      _
    %v264 = vld [vmem:[%s1] sm:$0xff]
    %s265 = scalar_lea.vmem %s1, 8
    %v266 = vld [vmem:[%s265] sm:$0xff]
    %v267 = vld [vmem:[%s3] sm:$0xff]
    %v268 = vld [vmem:[%s3 + $0x8] sm:$0xff]
    %v269 = vld [vmem:[%s5] sm:$0x1]
    %v271 = vperm.slane %v269, 0
    %vm273 = vcmask 130048
    %v275 = vsel %vm273, %v264, 0
    %277 = vmatpush.msra.mxu0 0.0
    %278 = vmatpush.msra.mxu0 0.0
    %279 = vmatpush.msra.mxu0 0.0
    %280 = vmatpush.msra.mxu0 0.0
    %281 = vmatpush.msra.mxu0 0.0
    %282 = vmatpush.msra.mxu0 0.0
    %283 = vmatpush.msra.mxu0 0.0
    %284 = vmatpush.msra.mxu0 0.0
    %285 = vmatpush.msra.mxu0 0.0
    %286 = vmatpush.msra.mxu0 0.0
    %287 = vmatpush.msra.mxu0 0.0
    %288 = vmatpush.msra.mxu0 0.0
    %289 = vmatpush.msra.mxu0 0.0
    %290 = vmatpush.msra.mxu0 0.0
    %291 = vmatpush.msra.mxu0 %v268
    %292 = vmatpush.msra.mxu0 %v267
    %293 = vmatmul.f32.gmra.mxu0 %v275
    %v294 = vpop.f32.mrf.mxu0
    %v295 = vadd.f32 %v271, %v294
    %296 = vdwg.mxu0
    %298 = vrot.lane.b32.xlu0 %v295, 112
    %v299 = vpop.permute.xlu0 %298
    %vm300 = vcmask 64512
    %v301 = vsel %vm300, %v295, 0
    %v303 = vsel %vm300, %v299, 0
    %305 = vmatpush.xpose.msra.mxu0 0.0
    %306 = vmatpush.xpose.msra.mxu0 0.0
    %307 = vmatpush.xpose.msra.mxu0 0.0
    %308 = vmatpush.xpose.msra.mxu0 0.0
    %309 = vmatpush.xpose.msra.mxu0 0.0
    %310 = vmatpush.xpose.msra.mxu0 0.0
    %311 = vmatpush.xpose.msra.mxu0 0.0
    %312 = vmatpush.xpose.msra.mxu0 0.0
    %313 = vmatpush.xpose.msra.mxu0 0.0
    %314 = vmatpush.xpose.msra.mxu0 0.0
    %315 = vmatpush.xpose.msra.mxu0 0.0
    %316 = vmatpush.xpose.msra.mxu0 0.0
    %317 = vmatpush.xpose.msra.mxu0 0.0
    %318 = vmatpush.xpose.msra.mxu0 0.0
    %319 = vmatpush.xpose.msra.mxu0 0.0
    %320 = vmatpush.xpose.msra.mxu0 %v303
    %321 = vmatmul.f32.gmra.mxu0 %v301
    %v322 = vpop.f32.mrf.mxu0
    %v323 = vadd.f32 0.0, %v322
    %324 = vdwg.mxu0
    %v325 = vmul.f32 %v323, 0.35355338
    %v326 = vsel %vm300, %v325, -inf
    %327 = vmax.xlane.f32.xlu0 %v326
    %v328 = vpop.xlane.xlu0 %327
    %v329 = vsub.f32 %v325, %v328
    %v330 = vmul.f32 %v329, 1.442695
    %v331 = vpow.pop %v330
    %v332 = vsel %vm300, %v331, 0.0
    %333 = vadd.xlane.f32.xlu0 %v332
    %v334 = vpop.xlane.xlu0 %333
    %v335 = vrcp.pop %v334
    %v336 = vmul.f32 %v331, %v335
    %v337 = vadd.f32 %v336, 0.0
    %338 = vrot.lane.b32.xlu0 %v295, 120
    %v339 = vpop.permute.xlu0 %338
    %340 = vrot.lane.b32.xlu0 %v295, 104
    %v341 = vpop.permute.xlu0 %340
    %v342 = vsel %vm300, %v339, 0
    %v344 = vsel %vm300, %v341, 0
    %346 = vmatpush.xpose.msra.mxu0 0.0
    %347 = vmatpush.xpose.msra.mxu0 0.0
    %348 = vmatpush.xpose.msra.mxu0 0.0
    %349 = vmatpush.xpose.msra.mxu0 0.0
    %350 = vmatpush.xpose.msra.mxu0 0.0
    %351 = vmatpush.xpose.msra.mxu0 0.0
    %352 = vmatpush.xpose.msra.mxu0 0.0
    %353 = vmatpush.xpose.msra.mxu0 0.0
    %354 = vmatpush.xpose.msra.mxu0 0.0
    %355 = vmatpush.xpose.msra.mxu0 0.0
    %356 = vmatpush.xpose.msra.mxu0 0.0
    %357 = vmatpush.xpose.msra.mxu0 0.0
    %358 = vmatpush.xpose.msra.mxu0 0.0
    %359 = vmatpush.xpose.msra.mxu0 0.0
    %360 = vmatpush.xpose.msra.mxu0 0.0
    %361 = vmatpush.xpose.msra.mxu0 %v344
    %362 = vmatmul.f32.gmra.mxu0 %v342
    %v363 = vpop.f32.mrf.mxu0
    %v364 = vadd.f32 0.0, %v363
    %365 = vdwg.mxu0
    %v366 = vmul.f32 %v364, 0.35355338
    %v367 = vsel %vm300, %v366, -inf
    %368 = vmax.xlane.f32.xlu0 %v367
    %v369 = vpop.xlane.xlu0 %368
    %v370 = vsub.f32 %v366, %v369
    %v371 = vmul.f32 %v370, 1.442695
    %v372 = vpow.pop %v371
    %v373 = vsel %vm300, %v372, 0.0
    %374 = vadd.xlane.f32.xlu0 %v373
    %v375 = vpop.xlane.xlu0 %374
    %v376 = vrcp.pop %v375
    %v377 = vmul.f32 %v372, %v376
    %v378 = vadd.f32 %v337, %v377
    %v380 = vsel %vm273, %v266, 0
    %382 = vmatpush.msra.mxu0 0.0
    %383 = vmatpush.msra.mxu0 0.0
    %384 = vmatpush.msra.mxu0 0.0
    %385 = vmatpush.msra.mxu0 0.0
    %386 = vmatpush.msra.mxu0 0.0
    %387 = vmatpush.msra.mxu0 0.0
    %388 = vmatpush.msra.mxu0 0.0
    %389 = vmatpush.msra.mxu0 0.0
    %390 = vmatpush.msra.mxu0 0.0
    %391 = vmatpush.msra.mxu0 0.0
    %392 = vmatpush.msra.mxu0 0.0
    %393 = vmatpush.msra.mxu0 0.0
    %394 = vmatpush.msra.mxu0 0.0
    %395 = vmatpush.msra.mxu0 0.0
    %396 = vmatpush.msra.mxu0 %v268
    %397 = vmatpush.msra.mxu0 %v267
    %398 = vmatmul.f32.gmra.mxu0 %v380
    %v399 = vpop.f32.mrf.mxu0
    %v400 = vadd.f32 %v271, %v399
    %401 = vdwg.mxu0
    %403 = vrot.lane.b32.xlu0 %v400, 112
    %v404 = vpop.permute.xlu0 %403
    %v405 = vsel %vm300, %v400, 0
    %v407 = vsel %vm300, %v404, 0
    %409 = vmatpush.xpose.msra.mxu0 0.0
    %410 = vmatpush.xpose.msra.mxu0 0.0
    %411 = vmatpush.xpose.msra.mxu0 0.0
    %412 = vmatpush.xpose.msra.mxu0 0.0
    %413 = vmatpush.xpose.msra.mxu0 0.0
    %414 = vmatpush.xpose.msra.mxu0 0.0
    %415 = vmatpush.xpose.msra.mxu0 0.0
    %416 = vmatpush.xpose.msra.mxu0 0.0
    %417 = vmatpush.xpose.msra.mxu0 0.0
    %418 = vmatpush.xpose.msra.mxu0 0.0
    %419 = vmatpush.xpose.msra.mxu0 0.0
    %420 = vmatpush.xpose.msra.mxu0 0.0
    %421 = vmatpush.xpose.msra.mxu0 0.0
    %422 = vmatpush.xpose.msra.mxu0 0.0
    %423 = vmatpush.xpose.msra.mxu0 0.0
    %424 = vmatpush.xpose.msra.mxu0 %v407
    %425 = vmatmul.f32.gmra.mxu0 %v405
    %v426 = vpop.f32.mrf.mxu0
    %v427 = vadd.f32 0.0, %v426
    %428 = vdwg.mxu0
    %v429 = vmul.f32 %v427, 0.35355338
    %v430 = vsel %vm300, %v429, -inf
    %431 = vmax.xlane.f32.xlu0 %v430
    %v432 = vpop.xlane.xlu0 %431
    %v433 = vsub.f32 %v429, %v432
    %v434 = vmul.f32 %v433, 1.442695
    %v435 = vpow.pop %v434
    %v436 = vsel %vm300, %v435, 0.0
    %437 = vadd.xlane.f32.xlu0 %v436
    %v438 = vpop.xlane.xlu0 %437
    %v439 = vrcp.pop %v438
    %v440 = vmul.f32 %v435, %v439
    %v441 = vadd.f32 %v378, %v440
    %442 = vrot.lane.b32.xlu0 %v400, 120
    %v443 = vpop.permute.xlu0 %442
    %444 = vrot.lane.b32.xlu0 %v400, 104
    %v445 = vpop.permute.xlu0 %444
    %v446 = vsel %vm300, %v443, 0
    %v448 = vsel %vm300, %v445, 0
    %450 = vmatpush.xpose.msra.mxu0 0.0
    %451 = vmatpush.xpose.msra.mxu0 0.0
    %452 = vmatpush.xpose.msra.mxu0 0.0
    %453 = vmatpush.xpose.msra.mxu0 0.0
    %454 = vmatpush.xpose.msra.mxu0 0.0
    %455 = vmatpush.xpose.msra.mxu0 0.0
    %456 = vmatpush.xpose.msra.mxu0 0.0
    %457 = vmatpush.xpose.msra.mxu0 0.0
    %458 = vmatpush.xpose.msra.mxu0 0.0
    %459 = vmatpush.xpose.msra.mxu0 0.0
    %460 = vmatpush.xpose.msra.mxu0 0.0
    %461 = vmatpush.xpose.msra.mxu0 0.0
    %462 = vmatpush.xpose.msra.mxu0 0.0
    %463 = vmatpush.xpose.msra.mxu0 0.0
    %464 = vmatpush.xpose.msra.mxu0 0.0
    %465 = vmatpush.xpose.msra.mxu0 %v448
    %466 = vmatmul.f32.gmra.mxu0 %v446
    %v467 = vpop.f32.mrf.mxu0
    %v468 = vadd.f32 0.0, %v467
    %469 = vdwg.mxu0
    %v470 = vmul.f32 %v468, 0.35355338
    %v471 = vsel %vm300, %v470, -inf
    %472 = vmax.xlane.f32.xlu0 %v471
    %v473 = vpop.xlane.xlu0 %472
    %v474 = vsub.f32 %v470, %v473
    %v475 = vmul.f32 %v474, 1.442695
    %v476 = vpow.pop %v475
    %v477 = vsel %vm300, %v476, 0.0
    %478 = vadd.xlane.f32.xlu0 %v477
    %v479 = vpop.xlane.xlu0 %478
    %v480 = vrcp.pop %v479
    %v481 = vmul.f32 %v476, %v480
    %v482 = vadd.f32 %v441, %v481
    %v483 = vld [vmem:[%s7] sm:$0xff]
    %v484 = vmul.f32 %v482, 0.25
    %v485 = vmul.f32 %v483, %v484
    %v486 = vsel %vm300, %v485, 0.0
    %487 = vadd.xlane.f32.xlu0 %v486
    %v488 = vpop.xlane.xlu0 %487
    %v489 = vrot.slane %v486, 4
    %v490 = vadd.f32 %v486, %v489
    %v491 = vrot.slane %v490, 2
    %v492 = vadd.f32 %v490, %v491
    %v493 = vrot.slane %v492, 1
    %v494 = vadd.f32 %v492, %v493
    %vm495 = vcmp.ne.f32.partialorder %v488, 0.0
    %v496 = vsel %vm495, %v488, 1.0
    %v497 = vrcp.pop %v496
    %v498 = vmul.f32 %v485, %v497
    %vm499 = vcmp.ne.f32.partialorder %v494, 0.0
    %v500 = vsel %vm499, %v494, 1.0
    %v501 = vrcp.pop %v500
    %v502 = vmul.f32 %v485, %v501
    %v503 = vld [vmem:[%s13] sm:$0xff]
    %v504 = vld [vmem:[%s13 + $0x8] sm:$0xff]
    %v505 = vld [vmem:[%s15] sm:$0xff]
    %v506 = vld [vmem:[%s15 + $0x8] sm:$0xff]
    %v507 = vld [vmem:[%s17] sm:$0xff]
    %v508 = vld [vmem:[%s17 + $0x8] sm:$0xff]
    %v509 = vld [vmem:[%s19] sm:$0x1]
    %v510 = vld [vmem:[%s9] sm:$0xff]
    %v511 = vld [vmem:[%s11] sm:$0xff]
    %v512 = vld [vmem:[%s21] sm:$0xff]
    %v513 = vld [vmem:[%s21 + $0x8] sm:$0xff]
    %v514 = vld [vmem:[%s21 + $0x10] sm:$0xff]
    %v515 = vld [vmem:[%s21 + $0x18] sm:$0xff]
    %v516 = vld [vmem:[%s23] sm:$0x1]
    %v517 = vld [vmem:[%s25] sm:$0xff]
    %v518 = vld [vmem:[%s25 + $0x8] sm:$0xff]
    %v519 = vld [vmem:[%s25 + $0x10] sm:$0xff]
    %v520 = vld [vmem:[%s25 + $0x18] sm:$0xff]
    %v521 = vld [vmem:[%s25 + $0x20] sm:$0xff]
    %v522 = vld [vmem:[%s25 + $0x28] sm:$0xff]
    %v523 = vld [vmem:[%s25 + $0x30] sm:$0xff]
    %v524 = vld [vmem:[%s25 + $0x38] sm:$0xff]
    %v525 = vld [vmem:[%s25 + $0x40] sm:$0xff]
    %v526 = vld [vmem:[%s25 + $0x48] sm:$0xff]
    %v527 = vld [vmem:[%s25 + $0x50] sm:$0xff]
    %v528 = vld [vmem:[%s25 + $0x58] sm:$0xff]
    %v529 = vld [vmem:[%s25 + $0x60] sm:$0xff]
    %v530 = vld [vmem:[%s25 + $0x68] sm:$0xff]
    %v531 = vld [vmem:[%s25 + $0x70] sm:$0xff]
    %v532 = vld [vmem:[%s25 + $0x78] sm:$0xff]
    %v533 = vld [vmem:[%s27] sm:$0x1]
    %v534 = vld [vmem:[%s29] sm:$0xff]
    %v535 = vld [vmem:[%s29 + $0x8] sm:$0xff]
    %v536 = vld [vmem:[#allocation4] sm:$0x1]
    %v537 = vld [vmem:[%s33] sm:$0xff]
    %v538 = vld [vmem:[%s33 + $0x8] sm:$0xff]
    %v539 = vld [vmem:[%s33 + $0x10] sm:$0xff]
    %v540 = vld [vmem:[%s33 + $0x18] sm:$0xff]
    %v541 = vld [vmem:[%s33 + $0x20] sm:$0xff]
    %v542 = vld [vmem:[%s33 + $0x28] sm:$0xff]
    %v543 = vld [vmem:[%s33 + $0x30] sm:$0xff]
    %v544 = vld [vmem:[%s33 + $0x38] sm:$0xff]
    %v545 = vld [vmem:[%s33 + $0x40] sm:$0xff]
    %v546 = vld [vmem:[%s33 + $0x48] sm:$0xff]
    %v547 = vld [vmem:[%s33 + $0x50] sm:$0xff]
    %v548 = vld [vmem:[%s33 + $0x58] sm:$0xff]
    %v549 = vld [vmem:[%s33 + $0x60] sm:$0xff]
    %v550 = vld [vmem:[%s33 + $0x68] sm:$0xff]
    %v551 = vld [vmem:[%s33 + $0x70] sm:$0xff]
    %v552 = vld [vmem:[%s33 + $0x78] sm:$0xff]
    %v553 = vld [vmem:[#allocation6] sm:$0x1]
    %v554 = vld [vmem:[%s37] sm:$0xff]
    %v555 = vld [vmem:[%s37 + $0x8] sm:$0xff]
    %v556 = vld [vmem:[%s37 + $0x10] sm:$0xff]
    %v557 = vld [vmem:[%s37 + $0x18] sm:$0xff]
    %v558 = vld [vmem:[%s37 + $0x20] sm:$0xff]
    %v559 = vld [vmem:[%s37 + $0x28] sm:$0xff]
    %v560 = vld [vmem:[%s37 + $0x30] sm:$0xff]
    %v561 = vld [vmem:[%s37 + $0x38] sm:$0xff]
    %v562 = vld [vmem:[#allocation8] sm:$0x1]
    %v563 = vld [vmem:[%s41] sm:$0xff]
    %v564 = vld [vmem:[%s41 + $0x8] sm:$0xff]
    %v565 = vld [vmem:[%s41 + $0x10] sm:$0xff]
    %v566 = vld [vmem:[%s41 + $0x18] sm:$0xff]
    %v567 = vld [vmem:[%s41 + $0x20] sm:$0xff]
    %v568 = vld [vmem:[%s41 + $0x28] sm:$0xff]
    %v569 = vld [vmem:[%s41 + $0x30] sm:$0xff]
    %v570 = vld [vmem:[%s41 + $0x38] sm:$0xff]
    %v571 = vld [vmem:[#allocation9] sm:$0x1]
    %v572 = vld [vmem:[%s45] sm:$0xff]
    %v573 = vld [vmem:[%s45 + $0x8] sm:$0xff]
    %v574 = vld [vmem:[%s45 + $0x10] sm:$0xff]
    %v575 = vld [vmem:[%s45 + $0x18] sm:$0xff]
    %v576 = vld [vmem:[%s45 + $0x20] sm:$0xff]
    %v577 = vld [vmem:[%s45 + $0x28] sm:$0xff]
    %v578 = vld [vmem:[%s45 + $0x30] sm:$0xff]
    %v579 = vld [vmem:[%s45 + $0x38] sm:$0xff]
    %v580 = vld [vmem:[%s45 + $0x40] sm:$0xff]
    %v581 = vld [vmem:[%s45 + $0x48] sm:$0xff]
    %v582 = vld [vmem:[%s45 + $0x50] sm:$0xff]
    %v583 = vld [vmem:[%s45 + $0x58] sm:$0xff]
    %v584 = vld [vmem:[%s45 + $0x60] sm:$0xff]
    %v585 = vld [vmem:[%s45 + $0x68] sm:$0xff]
    %v586 = vld [vmem:[%s45 + $0x70] sm:$0xff]
    %v587 = vld [vmem:[%s45 + $0x78] sm:$0xff]
    %v588 = vld [vmem:[#allocation11] sm:$0x1]
    %v589 = vld [vmem:[%s49] sm:$0xff]
    %v590 = vld [vmem:[%s49 + $0x8] sm:$0xff]
    %v591 = vld [vmem:[%s49 + $0x10] sm:$0xff]
    %v592 = vld [vmem:[%s49 + $0x18] sm:$0xff]
    %v593 = vld [vmem:[%s51] sm:$0xff]
    %v594 = vld [vmem:[%s51 + $0x8] sm:$0xff]
    %v595 = vld [vmem:[%s51 + $0x10] sm:$0xff]
    %v596 = vld [vmem:[%s51 + $0x18] sm:$0xff]
    %v597 = vld [vmem:[%s53] sm:$0xff]
    %v598 = vld [vmem:[%s53 + $0x8] sm:$0x1]
    %v599 = vld [vmem:[#allocation12] sm:$0x1]
    %v600 = vld [vmem:[%s57] sm:$0xff]
    %v601 = vld [vmem:[%s57 + $0x8] sm:$0xf]
    %v602 = vld [vmem:[#allocation14] sm:$0x1]
    %603 = vxpose.xlu0.b32.start [1/16] %v498, 128
    %604 = vxpose.xlu0.b32.cont [2/16] 0.0, 128
    %605 = vxpose.xlu0.b32.cont [3/16] 0.0, 128
    %606 = vxpose.xlu0.b32.cont [4/16] 0.0, 128
    %607 = vxpose.xlu0.b32.cont [5/16] 0.0, 128
    %608 = vxpose.xlu0.b32.cont [6/16] 0.0, 128
    %609 = vxpose.xlu0.b32.cont [7/16] 0.0, 128
    %610 = vxpose.xlu0.b32.cont [8/16] 0.0, 128
    %611 = vxpose.xlu0.b32.cont [9/16] 0.0, 128
    %612 = vxpose.xlu0.b32.cont [10/16] 0.0, 128
    %613 = vxpose.xlu0.b32.cont [11/16] 0.0, 128
    %614 = vxpose.xlu0.b32.cont [12/16] 0.0, 128
    %615 = vxpose.xlu0.b32.cont [13/16] 0.0, 128
    %616 = vxpose.xlu0.b32.cont [14/16] 0.0, 128
    %617 = vxpose.xlu0.b32.cont [15/16] 0.0, 128
    %618 = vxpose.xlu0.b32.end [16/16] 0.0, 128
    %v619 = vpop.trf.xlu0
    %v620 = vpop.trf.xlu0
    %v621 = vpop.trf.xlu0
    %v622 = vpop.trf.xlu0
    %v623 = vpop.trf.xlu0
    %v624 = vpop.trf.xlu0
    %v625 = vpop.trf.xlu0
    %v626 = vpop.trf.xlu0
    %v627 = vpop.trf.xlu0
    %v628 = vpop.trf.xlu0
    %v629 = vpop.trf.xlu0
    %v630 = vpop.trf.xlu0
    %v631 = vpop.trf.xlu0
    %v632 = vpop.trf.xlu0
    %v633 = vpop.trf.xlu0
    %v634 = vpop.trf.xlu0
    %v636 = vsel %vm300, %v619, 0
    %638 = vmatpush.msra.mxu0 0.0
    %639 = vmatpush.msra.mxu0 0.0
    %640 = vmatpush.msra.mxu0 0.0
    %641 = vmatpush.msra.mxu0 0.0
    %642 = vmatpush.msra.mxu0 0.0
    %643 = vmatpush.msra.mxu0 0.0
    %644 = vmatpush.msra.mxu0 0.0
    %645 = vmatpush.msra.mxu0 0.0
    %646 = vmatpush.msra.mxu0 0.0
    %647 = vmatpush.msra.mxu0 0.0
    %648 = vmatpush.msra.mxu0 0.0
    %649 = vmatpush.msra.mxu0 0.0
    %650 = vmatpush.msra.mxu0 0.0
    %651 = vmatpush.msra.mxu0 0.0
    %652 = vmatpush.msra.mxu0 0.0
    %653 = vmatpush.msra.mxu0 %v264
    %654 = vmatmul.f32.gmra.mxu0 %v636
    %v655 = vpop.f32.mrf.mxu0
    %v656 = vadd.f32 0.0, %v655
    %657 = vdwg.mxu0
    %v659 = vsel %vm300, %v502, 0
    %661 = vmatpush.msra.mxu0 0.0
    %662 = vmatpush.msra.mxu0 0.0
    %663 = vmatpush.msra.mxu0 0.0
    %664 = vmatpush.msra.mxu0 0.0
    %665 = vmatpush.msra.mxu0 0.0
    %666 = vmatpush.msra.mxu0 0.0
    %667 = vmatpush.msra.mxu0 0.0
    %668 = vmatpush.msra.mxu0 0.0
    %669 = vmatpush.msra.mxu0 0.0
    %670 = vmatpush.msra.mxu0 0.0
    %671 = vmatpush.msra.mxu0 0.0
    %672 = vmatpush.msra.mxu0 0.0
    %673 = vmatpush.msra.mxu0 0.0
    %674 = vmatpush.msra.mxu0 0.0
    %675 = vmatpush.msra.mxu0 0.0
    %676 = vmatpush.msra.mxu0 %v264
    %677 = vmatmul.f32.gmra.mxu0 %v659
    %v678 = vpop.f32.mrf.mxu0
    %v679 = vadd.f32 0.0, %v678
    %680 = vdwg.mxu0
    %v682 = vsel %vm273, %v656, 0
    %684 = vmatpush.msra.mxu0 0.0
    %685 = vmatpush.msra.mxu0 0.0
    %686 = vmatpush.msra.mxu0 0.0
    %687 = vmatpush.msra.mxu0 0.0
    %688 = vmatpush.msra.mxu0 0.0
    %689 = vmatpush.msra.mxu0 0.0
    %690 = vmatpush.msra.mxu0 0.0
    %691 = vmatpush.msra.mxu0 0.0
    %692 = vmatpush.msra.mxu0 0.0
    %693 = vmatpush.msra.mxu0 0.0
    %694 = vmatpush.msra.mxu0 0.0
    %695 = vmatpush.msra.mxu0 0.0
    %696 = vmatpush.msra.mxu0 0.0
    %697 = vmatpush.msra.mxu0 0.0
    %698 = vmatpush.msra.mxu0 %v506
    %699 = vmatpush.msra.mxu0 %v505
    %700 = vmatmul.f32.gmra.mxu0 %v682
    %v701 = vpop.f32.mrf.mxu0
    %v702 = vadd.f32 0.0, %v701
    %703 = vdwg.mxu0
    %704 = vmatpush.msra.mxu0 0.0
    %705 = vmatpush.msra.mxu0 0.0
    %706 = vmatpush.msra.mxu0 0.0
    %707 = vmatpush.msra.mxu0 0.0
    %708 = vmatpush.msra.mxu0 0.0
    %709 = vmatpush.msra.mxu0 0.0
    %710 = vmatpush.msra.mxu0 0.0
    %711 = vmatpush.msra.mxu0 0.0
    %712 = vmatpush.msra.mxu0 0.0
    %713 = vmatpush.msra.mxu0 0.0
    %714 = vmatpush.msra.mxu0 0.0
    %715 = vmatpush.msra.mxu0 0.0
    %716 = vmatpush.msra.mxu0 0.0
    %717 = vmatpush.msra.mxu0 0.0
    %718 = vmatpush.msra.mxu0 %v504
    %719 = vmatpush.msra.mxu0 %v503
    %720 = vmatmul.f32.gmra.mxu0 %v275
    %v721 = vpop.f32.mrf.mxu0
    %v722 = vadd.f32 %v702, %v721
    %723 = vdwg.mxu0
    %v725 = vsel %vm273, %v679, 0
    %727 = vmatpush.msra.mxu0 0.0
    %728 = vmatpush.msra.mxu0 0.0
    %729 = vmatpush.msra.mxu0 0.0
    %730 = vmatpush.msra.mxu0 0.0
    %731 = vmatpush.msra.mxu0 0.0
    %732 = vmatpush.msra.mxu0 0.0
    %733 = vmatpush.msra.mxu0 0.0
    %734 = vmatpush.msra.mxu0 0.0
    %735 = vmatpush.msra.mxu0 0.0
    %736 = vmatpush.msra.mxu0 0.0
    %737 = vmatpush.msra.mxu0 0.0
    %738 = vmatpush.msra.mxu0 0.0
    %739 = vmatpush.msra.mxu0 0.0
    %740 = vmatpush.msra.mxu0 0.0
    %741 = vmatpush.msra.mxu0 %v508
    %742 = vmatpush.msra.mxu0 %v507
    %743 = vmatmul.f32.gmra.mxu0 %v725
    %v744 = vpop.f32.mrf.mxu0
    %v745 = vadd.f32 0.0, %v744
    %746 = vdwg.mxu0
    %v747 = vadd.f32 %v722, %v745
    %v749 = vperm.slane %v509, 0
    %v751 = vadd.f32 %v747, %v749
    %v752 = vmax.f32 %v751, 0.0
    %v754 = vsel %vm300, %v510, 0
    %756 = vmatpush.msra.mxu0 0.0
    %757 = vmatpush.msra.mxu0 0.0
    %758 = vmatpush.msra.mxu0 0.0
    %759 = vmatpush.msra.mxu0 0.0
    %760 = vmatpush.msra.mxu0 0.0
    %761 = vmatpush.msra.mxu0 0.0
    %762 = vmatpush.msra.mxu0 0.0
    %763 = vmatpush.msra.mxu0 0.0
    %764 = vmatpush.msra.mxu0 0.0
    %765 = vmatpush.msra.mxu0 0.0
    %766 = vmatpush.msra.mxu0 0.0
    %767 = vmatpush.msra.mxu0 0.0
    %768 = vmatpush.msra.mxu0 0.0
    %769 = vmatpush.msra.mxu0 0.0
    %770 = vmatpush.msra.mxu0 0.0
    %771 = vmatpush.msra.mxu0 %v264
    %772 = vmatmul.f32.gmra.mxu0 %v754
    %v773 = vpop.f32.mrf.mxu0
    %v774 = vadd.f32 0.0, %v773
    %775 = vdwg.mxu0
    %v777 = vsel %vm273, %v774, 0
    %779 = vmatpush.msra.mxu0 0.0
    %780 = vmatpush.msra.mxu0 0.0
    %781 = vmatpush.msra.mxu0 0.0
    %782 = vmatpush.msra.mxu0 0.0
    %783 = vmatpush.msra.mxu0 0.0
    %784 = vmatpush.msra.mxu0 0.0
    %785 = vmatpush.msra.mxu0 0.0
    %786 = vmatpush.msra.mxu0 0.0
    %787 = vmatpush.msra.mxu0 0.0
    %788 = vmatpush.msra.mxu0 0.0
    %789 = vmatpush.msra.mxu0 0.0
    %790 = vmatpush.msra.mxu0 0.0
    %791 = vmatpush.msra.mxu0 0.0
    %792 = vmatpush.msra.mxu0 0.0
    %793 = vmatpush.msra.mxu0 %v513
    %794 = vmatpush.msra.mxu0 %v512
    %795 = vmatmul.f32.gmra.mxu0 %v777
    %v796 = vpop.f32.mrf.mxu0
    %v797 = vadd.f32 0.0, %v796
    %798 = vdwg.mxu0
    %799 = vmatpush.msra.mxu0 0.0
    %800 = vmatpush.msra.mxu0 0.0
    %801 = vmatpush.msra.mxu0 0.0
    %802 = vmatpush.msra.mxu0 0.0
    %803 = vmatpush.msra.mxu0 0.0
    %804 = vmatpush.msra.mxu0 0.0
    %805 = vmatpush.msra.mxu0 0.0
    %806 = vmatpush.msra.mxu0 0.0
    %807 = vmatpush.msra.mxu0 0.0
    %808 = vmatpush.msra.mxu0 0.0
    %809 = vmatpush.msra.mxu0 0.0
    %810 = vmatpush.msra.mxu0 0.0
    %811 = vmatpush.msra.mxu0 0.0
    %812 = vmatpush.msra.mxu0 0.0
    %813 = vmatpush.msra.mxu0 %v515
    %814 = vmatpush.msra.mxu0 %v514
    %815 = vmatmul.f32.gmra.mxu0 %v275
    %v816 = vpop.f32.mrf.mxu0
    %v817 = vadd.f32 %v797, %v816
    %818 = vdwg.mxu0
    %v820 = vperm.slane %v516, 0
    %v822 = vadd.f32 %v817, %v820
    %v823 = vmax.f32 %v822, 0.0
    %824 = vmatpush.msra.mxu0 0.0
    %825 = vmatpush.msra.mxu0 0.0
    %826 = vmatpush.msra.mxu0 0.0
    %827 = vmatpush.msra.mxu0 0.0
    %828 = vmatpush.msra.mxu0 0.0
    %829 = vmatpush.msra.mxu0 0.0
    %830 = vmatpush.msra.mxu0 0.0
    %831 = vmatpush.msra.mxu0 0.0
    %832 = vmatpush.msra.mxu0 0.0
    %833 = vmatpush.msra.mxu0 0.0
    %834 = vmatpush.msra.mxu0 0.0
    %835 = vmatpush.msra.mxu0 0.0
    %836 = vmatpush.msra.mxu0 0.0
    %837 = vmatpush.msra.mxu0 0.0
    %838 = vmatpush.msra.mxu0 0.0
    %839 = vmatpush.msra.mxu0 %v823
    %840 = vmatmul.f32.gmra.mxu0 %v754
    %v841 = vpop.f32.mrf.mxu0
    %v842 = vadd.f32 0.0, %v841
    %843 = vdwg.mxu0
    %vm844 = vcmask 523264
    %v846 = vsel %vm844, %v842, 0
    %848 = vmatpush.msra.mxu0 0.0
    %849 = vmatpush.msra.mxu0 0.0
    %850 = vmatpush.msra.mxu0 0.0
    %851 = vmatpush.msra.mxu0 0.0
    %852 = vmatpush.msra.mxu0 0.0
    %853 = vmatpush.msra.mxu0 0.0
    %854 = vmatpush.msra.mxu0 0.0
    %855 = vmatpush.msra.mxu0 0.0
    %856 = vmatpush.msra.mxu0 %v524
    %857 = vmatpush.msra.mxu0 %v523
    %858 = vmatpush.msra.mxu0 %v522
    %859 = vmatpush.msra.mxu0 %v521
    %860 = vmatpush.msra.mxu0 %v520
    %861 = vmatpush.msra.mxu0 %v519
    %862 = vmatpush.msra.mxu0 %v518
    %863 = vmatpush.msra.mxu0 %v517
    %864 = vmatmul.f32.gmra.mxu0 %v846
    %v865 = vpop.f32.mrf.mxu0
    %v866 = vadd.f32 0.0, %v865
    %867 = vdwg.mxu0
    %v869 = vsel %vm844, %v823, 0
    %871 = vmatpush.msra.mxu0 0.0
    %872 = vmatpush.msra.mxu0 0.0
    %873 = vmatpush.msra.mxu0 0.0
    %874 = vmatpush.msra.mxu0 0.0
    %875 = vmatpush.msra.mxu0 0.0
    %876 = vmatpush.msra.mxu0 0.0
    %877 = vmatpush.msra.mxu0 0.0
    %878 = vmatpush.msra.mxu0 0.0
    %879 = vmatpush.msra.mxu0 %v532
    %880 = vmatpush.msra.mxu0 %v531
    %881 = vmatpush.msra.mxu0 %v530
    %882 = vmatpush.msra.mxu0 %v529
    %883 = vmatpush.msra.mxu0 %v528
    %884 = vmatpush.msra.mxu0 %v527
    %885 = vmatpush.msra.mxu0 %v526
    %886 = vmatpush.msra.mxu0 %v525
    %887 = vmatmul.f32.gmra.mxu0 %v869
    %v888 = vpop.f32.mrf.mxu0
    %v889 = vadd.f32 %v866, %v888
    %890 = vdwg.mxu0
    %v892 = vperm.slane %v533, 0
    %v894 = vadd.f32 %v889, %v892
    %v895 = vmax.f32 %v894, 0.0
    %v897 = vperm.slane %v536, 0
    %899 = vmatpush.msra.mxu0 0.0
    %900 = vmatpush.msra.mxu0 0.0
    %901 = vmatpush.msra.mxu0 0.0
    %902 = vmatpush.msra.mxu0 0.0
    %903 = vmatpush.msra.mxu0 0.0
    %904 = vmatpush.msra.mxu0 0.0
    %905 = vmatpush.msra.mxu0 0.0
    %906 = vmatpush.msra.mxu0 0.0
    %907 = vmatpush.msra.mxu0 0.0
    %908 = vmatpush.msra.mxu0 0.0
    %909 = vmatpush.msra.mxu0 0.0
    %910 = vmatpush.msra.mxu0 0.0
    %911 = vmatpush.msra.mxu0 0.0
    %912 = vmatpush.msra.mxu0 0.0
    %913 = vmatpush.msra.mxu0 %v535
    %914 = vmatpush.msra.mxu0 %v534
    %915 = vmatmul.f32.gmra.mxu0 %v275
    %v916 = vpop.f32.mrf.mxu0
    %v917 = vadd.f32 %v897, %v916
    %918 = vdwg.mxu0
    %v919 = vadd.f32 %v895, %v917
    %v920 = vmax.f32 %v919, 0.0
    %v922 = vsel %vm300, %v511, 0
    %924 = vmatpush.msra.mxu0 0.0
    %925 = vmatpush.msra.mxu0 0.0
    %926 = vmatpush.msra.mxu0 0.0
    %927 = vmatpush.msra.mxu0 0.0
    %928 = vmatpush.msra.mxu0 0.0
    %929 = vmatpush.msra.mxu0 0.0
    %930 = vmatpush.msra.mxu0 0.0
    %931 = vmatpush.msra.mxu0 0.0
    %932 = vmatpush.msra.mxu0 0.0
    %933 = vmatpush.msra.mxu0 0.0
    %934 = vmatpush.msra.mxu0 0.0
    %935 = vmatpush.msra.mxu0 0.0
    %936 = vmatpush.msra.mxu0 0.0
    %937 = vmatpush.msra.mxu0 0.0
    %938 = vmatpush.msra.mxu0 0.0
    %939 = vmatpush.msra.mxu0 %v920
    %940 = vmatmul.f32.gmra.mxu0 %v922
    %v941 = vpop.f32.mrf.mxu0
    %v942 = vadd.f32 0.0, %v941
    %943 = vdwg.mxu0
    %v945 = vsel %vm844, %v942, 0
    %947 = vmatpush.msra.mxu0 0.0
    %948 = vmatpush.msra.mxu0 0.0
    %949 = vmatpush.msra.mxu0 0.0
    %950 = vmatpush.msra.mxu0 0.0
    %951 = vmatpush.msra.mxu0 0.0
    %952 = vmatpush.msra.mxu0 0.0
    %953 = vmatpush.msra.mxu0 0.0
    %954 = vmatpush.msra.mxu0 0.0
    %955 = vmatpush.msra.mxu0 %v544
    %956 = vmatpush.msra.mxu0 %v543
    %957 = vmatpush.msra.mxu0 %v542
    %958 = vmatpush.msra.mxu0 %v541
    %959 = vmatpush.msra.mxu0 %v540
    %960 = vmatpush.msra.mxu0 %v539
    %961 = vmatpush.msra.mxu0 %v538
    %962 = vmatpush.msra.mxu0 %v537
    %963 = vmatmul.f32.gmra.mxu0 %v945
    %v964 = vpop.f32.mrf.mxu0
    %v965 = vadd.f32 0.0, %v964
    %966 = vdwg.mxu0
    %v968 = vsel %vm844, %v920, 0
    %970 = vmatpush.msra.mxu0 0.0
    %971 = vmatpush.msra.mxu0 0.0
    %972 = vmatpush.msra.mxu0 0.0
    %973 = vmatpush.msra.mxu0 0.0
    %974 = vmatpush.msra.mxu0 0.0
    %975 = vmatpush.msra.mxu0 0.0
    %976 = vmatpush.msra.mxu0 0.0
    %977 = vmatpush.msra.mxu0 0.0
    %978 = vmatpush.msra.mxu0 %v552
    %979 = vmatpush.msra.mxu0 %v551
    %980 = vmatpush.msra.mxu0 %v550
    %981 = vmatpush.msra.mxu0 %v549
    %982 = vmatpush.msra.mxu0 %v548
    %983 = vmatpush.msra.mxu0 %v547
    %984 = vmatpush.msra.mxu0 %v546
    %985 = vmatpush.msra.mxu0 %v545
    %986 = vmatmul.f32.gmra.mxu0 %v968
    %v987 = vpop.f32.mrf.mxu0
    %v988 = vadd.f32 %v965, %v987
    %989 = vdwg.mxu0
    %v991 = vperm.slane %v553, 0
    %v993 = vadd.f32 %v988, %v991
    %v994 = vmax.f32 %v993, 0.0
    %995 = vmatpush.msra.mxu0 0.0
    %996 = vmatpush.msra.mxu0 0.0
    %997 = vmatpush.msra.mxu0 0.0
    %998 = vmatpush.msra.mxu0 0.0
    %999 = vmatpush.msra.mxu0 0.0
    %1000 = vmatpush.msra.mxu0 0.0
    %1001 = vmatpush.msra.mxu0 0.0
    %1002 = vmatpush.msra.mxu0 0.0
    %1003 = vmatpush.msra.mxu0 0.0
    %1004 = vmatpush.msra.mxu0 0.0
    %1005 = vmatpush.msra.mxu0 0.0
    %1006 = vmatpush.msra.mxu0 0.0
    %1007 = vmatpush.msra.mxu0 0.0
    %1008 = vmatpush.msra.mxu0 0.0
    %1009 = vmatpush.msra.mxu0 0.0
    %1010 = vmatpush.msra.mxu0 %v994
    %1011 = vmatmul.f32.gmra.mxu0 %v922
    %v1012 = vpop.f32.mrf.mxu0
    %v1013 = vadd.f32 0.0, %v1012
    %1014 = vdwg.mxu0
    %vm1015 = vcmask 261120
    %v1017 = vsel %vm1015, %v1013, 0
    %1019 = vmatpush.msra.mxu0 0.0
    %1020 = vmatpush.msra.mxu0 0.0
    %1021 = vmatpush.msra.mxu0 0.0
    %1022 = vmatpush.msra.mxu0 0.0
    %1023 = vmatpush.msra.mxu0 0.0
    %1024 = vmatpush.msra.mxu0 0.0
    %1025 = vmatpush.msra.mxu0 0.0
    %1026 = vmatpush.msra.mxu0 0.0
    %1027 = vmatpush.msra.mxu0 0.0
    %1028 = vmatpush.msra.mxu0 0.0
    %1029 = vmatpush.msra.mxu0 0.0
    %1030 = vmatpush.msra.mxu0 0.0
    %1031 = vmatpush.msra.mxu0 %v557
    %1032 = vmatpush.msra.mxu0 %v556
    %1033 = vmatpush.msra.mxu0 %v555
    %1034 = vmatpush.msra.mxu0 %v554
    %1035 = vmatmul.f32.gmra.mxu0 %v1017
    %v1036 = vpop.f32.mrf.mxu0
    %v1037 = vadd.f32 0.0, %v1036
    %1038 = vdwg.mxu0
    %v1040 = vsel %vm1015, %v994, 0
    %1042 = vmatpush.msra.mxu0 0.0
    %1043 = vmatpush.msra.mxu0 0.0
    %1044 = vmatpush.msra.mxu0 0.0
    %1045 = vmatpush.msra.mxu0 0.0
    %1046 = vmatpush.msra.mxu0 0.0
    %1047 = vmatpush.msra.mxu0 0.0
    %1048 = vmatpush.msra.mxu0 0.0
    %1049 = vmatpush.msra.mxu0 0.0
    %1050 = vmatpush.msra.mxu0 0.0
    %1051 = vmatpush.msra.mxu0 0.0
    %1052 = vmatpush.msra.mxu0 0.0
    %1053 = vmatpush.msra.mxu0 0.0
    %1054 = vmatpush.msra.mxu0 %v561
    %1055 = vmatpush.msra.mxu0 %v560
    %1056 = vmatpush.msra.mxu0 %v559
    %1057 = vmatpush.msra.mxu0 %v558
    %1058 = vmatmul.f32.gmra.mxu0 %v1040
    %v1059 = vpop.f32.mrf.mxu0
    %v1060 = vadd.f32 %v1037, %v1059
    %1061 = vdwg.mxu0
    %v1063 = vperm.slane %v562, 0
    %v1065 = vadd.f32 %v1060, %v1063
    %v1066 = vmax.f32 %v1065, 0.0
    %v1068 = vperm.slane %v571, 0
    %1070 = vmatpush.msra.mxu0 0.0
    %1071 = vmatpush.msra.mxu0 0.0
    %1072 = vmatpush.msra.mxu0 0.0
    %1073 = vmatpush.msra.mxu0 0.0
    %1074 = vmatpush.msra.mxu0 0.0
    %1075 = vmatpush.msra.mxu0 0.0
    %1076 = vmatpush.msra.mxu0 0.0
    %1077 = vmatpush.msra.mxu0 0.0
    %1078 = vmatpush.msra.mxu0 %v570
    %1079 = vmatpush.msra.mxu0 %v569
    %1080 = vmatpush.msra.mxu0 %v568
    %1081 = vmatpush.msra.mxu0 %v567
    %1082 = vmatpush.msra.mxu0 %v566
    %1083 = vmatpush.msra.mxu0 %v565
    %1084 = vmatpush.msra.mxu0 %v564
    %1085 = vmatpush.msra.mxu0 %v563
    %1086 = vmatmul.f32.gmra.mxu0 %v968
    %v1087 = vpop.f32.mrf.mxu0
    %v1088 = vadd.f32 %v1068, %v1087
    %1089 = vdwg.mxu0
    %v1090 = vadd.f32 %v1066, %v1088
    %v1091 = vmax.f32 %v1090, 0.0
    %1092 = vmatpush.msra.mxu0 0.0
    %1093 = vmatpush.msra.mxu0 0.0
    %1094 = vmatpush.msra.mxu0 0.0
    %1095 = vmatpush.msra.mxu0 0.0
    %1096 = vmatpush.msra.mxu0 0.0
    %1097 = vmatpush.msra.mxu0 0.0
    %1098 = vmatpush.msra.mxu0 0.0
    %1099 = vmatpush.msra.mxu0 0.0
    %1100 = vmatpush.msra.mxu0 0.0
    %1101 = vmatpush.msra.mxu0 0.0
    %1102 = vmatpush.msra.mxu0 0.0
    %1103 = vmatpush.msra.mxu0 0.0
    %1104 = vmatpush.msra.mxu0 0.0
    %1105 = vmatpush.msra.mxu0 0.0
    %1106 = vmatpush.msra.mxu0 %v573
    %1107 = vmatpush.msra.mxu0 %v572
    %1108 = vmatmul.f32.gmra.mxu0 %v275
    %v1109 = vpop.f32.mrf.mxu0
    %v1110 = vadd.f32 0.0, %v1109
    %1111 = vdwg.mxu0
    %vm1112 = vcmask 65536
    %1113 = vst.msk [vmem:[#allocation2] sm:$0x1] %vm1112, %v1110
    %v1114 = vrot.slane %v264, 1
    %v1115 = vsel %vm273, %v1114, 0
    %1117 = vmatpush.msra.mxu0 0.0
    %1118 = vmatpush.msra.mxu0 0.0
    %1119 = vmatpush.msra.mxu0 0.0
    %1120 = vmatpush.msra.mxu0 0.0
    %1121 = vmatpush.msra.mxu0 0.0
    %1122 = vmatpush.msra.mxu0 0.0
    %1123 = vmatpush.msra.mxu0 0.0
    %1124 = vmatpush.msra.mxu0 0.0
    %1125 = vmatpush.msra.mxu0 0.0
    %1126 = vmatpush.msra.mxu0 0.0
    %1127 = vmatpush.msra.mxu0 0.0
    %1128 = vmatpush.msra.mxu0 0.0
    %1129 = vmatpush.msra.mxu0 0.0
    %1130 = vmatpush.msra.mxu0 0.0
    %1131 = vmatpush.msra.mxu0 %v575
    %1132 = vmatpush.msra.mxu0 %v574
    %1133 = vmatmul.f32.gmra.mxu0 %v1115
    %v1134 = vpop.f32.mrf.mxu0
    %v1135 = vadd.f32 0.0, %v1134
    %1136 = vdwg.mxu0
    %1137 = vst.msk [vmem:[#allocation2 + $0x1] sm:$0x1] %vm1112, %v1135
    %v1138 = vrot.slane %v264, 2
    %v1139 = vsel %vm273, %v1138, 0
    %1141 = vmatpush.msra.mxu0 0.0
    %1142 = vmatpush.msra.mxu0 0.0
    %1143 = vmatpush.msra.mxu0 0.0
    %1144 = vmatpush.msra.mxu0 0.0
    %1145 = vmatpush.msra.mxu0 0.0
    %1146 = vmatpush.msra.mxu0 0.0
    %1147 = vmatpush.msra.mxu0 0.0
    %1148 = vmatpush.msra.mxu0 0.0
    %1149 = vmatpush.msra.mxu0 0.0
    %1150 = vmatpush.msra.mxu0 0.0
    %1151 = vmatpush.msra.mxu0 0.0
    %1152 = vmatpush.msra.mxu0 0.0
    %1153 = vmatpush.msra.mxu0 0.0
    %1154 = vmatpush.msra.mxu0 0.0
    %1155 = vmatpush.msra.mxu0 %v577
    %1156 = vmatpush.msra.mxu0 %v576
    %1157 = vmatmul.f32.gmra.mxu0 %v1139
    %v1158 = vpop.f32.mrf.mxu0
    %v1159 = vadd.f32 0.0, %v1158
    %1160 = vdwg.mxu0
    %1161 = vst.msk [vmem:[#allocation2 + $0x2] sm:$0x1] %vm1112, %v1159
    %v1162 = vrot.slane %v264, 3
    %v1163 = vsel %vm273, %v1162, 0
    %1165 = vmatpush.msra.mxu0 0.0
    %1166 = vmatpush.msra.mxu0 0.0
    %1167 = vmatpush.msra.mxu0 0.0
    %1168 = vmatpush.msra.mxu0 0.0
    %1169 = vmatpush.msra.mxu0 0.0
    %1170 = vmatpush.msra.mxu0 0.0
    %1171 = vmatpush.msra.mxu0 0.0
    %1172 = vmatpush.msra.mxu0 0.0
    %1173 = vmatpush.msra.mxu0 0.0
    %1174 = vmatpush.msra.mxu0 0.0
    %1175 = vmatpush.msra.mxu0 0.0
    %1176 = vmatpush.msra.mxu0 0.0
    %1177 = vmatpush.msra.mxu0 0.0
    %1178 = vmatpush.msra.mxu0 0.0
    %1179 = vmatpush.msra.mxu0 %v579
    %1180 = vmatpush.msra.mxu0 %v578
    %1181 = vmatmul.f32.gmra.mxu0 %v1163
    %v1182 = vpop.f32.mrf.mxu0
    %v1183 = vadd.f32 0.0, %v1182
    %1184 = vdwg.mxu0
    %1185 = vst.msk [vmem:[#allocation2 + $0x3] sm:$0x1] %vm1112, %v1183
    %v1186 = vrot.slane %v264, 4
    %v1187 = vsel %vm273, %v1186, 0
    %1189 = vmatpush.msra.mxu0 0.0
    %1190 = vmatpush.msra.mxu0 0.0
    %1191 = vmatpush.msra.mxu0 0.0
    %1192 = vmatpush.msra.mxu0 0.0
    %1193 = vmatpush.msra.mxu0 0.0
    %1194 = vmatpush.msra.mxu0 0.0
    %1195 = vmatpush.msra.mxu0 0.0
    %1196 = vmatpush.msra.mxu0 0.0
    %1197 = vmatpush.msra.mxu0 0.0
    %1198 = vmatpush.msra.mxu0 0.0
    %1199 = vmatpush.msra.mxu0 0.0
    %1200 = vmatpush.msra.mxu0 0.0
    %1201 = vmatpush.msra.mxu0 0.0
    %1202 = vmatpush.msra.mxu0 0.0
    %1203 = vmatpush.msra.mxu0 %v581
    %1204 = vmatpush.msra.mxu0 %v580
    %1205 = vmatmul.f32.gmra.mxu0 %v1187
    %v1206 = vpop.f32.mrf.mxu0
    %v1207 = vadd.f32 0.0, %v1206
    %1208 = vdwg.mxu0
    %1209 = vst.msk [vmem:[#allocation2 + $0x4] sm:$0x1] %vm1112, %v1207
    %v1210 = vrot.slane %v264, 5
    %v1211 = vsel %vm273, %v1210, 0
    %1213 = vmatpush.msra.mxu0 0.0
    %1214 = vmatpush.msra.mxu0 0.0
    %1215 = vmatpush.msra.mxu0 0.0
    %1216 = vmatpush.msra.mxu0 0.0
    %1217 = vmatpush.msra.mxu0 0.0
    %1218 = vmatpush.msra.mxu0 0.0
    %1219 = vmatpush.msra.mxu0 0.0
    %1220 = vmatpush.msra.mxu0 0.0
    %1221 = vmatpush.msra.mxu0 0.0
    %1222 = vmatpush.msra.mxu0 0.0
    %1223 = vmatpush.msra.mxu0 0.0
    %1224 = vmatpush.msra.mxu0 0.0
    %1225 = vmatpush.msra.mxu0 0.0
    %1226 = vmatpush.msra.mxu0 0.0
    %1227 = vmatpush.msra.mxu0 %v583
    %1228 = vmatpush.msra.mxu0 %v582
    %1229 = vmatmul.f32.gmra.mxu0 %v1211
    %v1230 = vpop.f32.mrf.mxu0
    %v1231 = vadd.f32 0.0, %v1230
    %1232 = vdwg.mxu0
    %1233 = vst.msk [vmem:[#allocation2 + $0x5] sm:$0x1] %vm1112, %v1231
    %v1234 = vrot.slane %v264, 6
    %v1235 = vsel %vm273, %v1234, 0
    %1237 = vmatpush.msra.mxu0 0.0
    %1238 = vmatpush.msra.mxu0 0.0
    %1239 = vmatpush.msra.mxu0 0.0
    %1240 = vmatpush.msra.mxu0 0.0
    %1241 = vmatpush.msra.mxu0 0.0
    %1242 = vmatpush.msra.mxu0 0.0
    %1243 = vmatpush.msra.mxu0 0.0
    %1244 = vmatpush.msra.mxu0 0.0
    %1245 = vmatpush.msra.mxu0 0.0
    %1246 = vmatpush.msra.mxu0 0.0
    %1247 = vmatpush.msra.mxu0 0.0
    %1248 = vmatpush.msra.mxu0 0.0
    %1249 = vmatpush.msra.mxu0 0.0
    %1250 = vmatpush.msra.mxu0 0.0
    %1251 = vmatpush.msra.mxu0 %v585
    %1252 = vmatpush.msra.mxu0 %v584
    %1253 = vmatmul.f32.gmra.mxu0 %v1235
    %v1254 = vpop.f32.mrf.mxu0
    %v1255 = vadd.f32 0.0, %v1254
    %1256 = vdwg.mxu0
    %1257 = vst.msk [vmem:[#allocation2 + $0x6] sm:$0x1] %vm1112, %v1255
    %v1258 = vrot.slane %v264, 7
    %v1259 = vsel %vm273, %v1258, 0
    %1261 = vmatpush.msra.mxu0 0.0
    %1262 = vmatpush.msra.mxu0 0.0
    %1263 = vmatpush.msra.mxu0 0.0
    %1264 = vmatpush.msra.mxu0 0.0
    %1265 = vmatpush.msra.mxu0 0.0
    %1266 = vmatpush.msra.mxu0 0.0
    %1267 = vmatpush.msra.mxu0 0.0
    %1268 = vmatpush.msra.mxu0 0.0
    %1269 = vmatpush.msra.mxu0 0.0
    %1270 = vmatpush.msra.mxu0 0.0
    %1271 = vmatpush.msra.mxu0 0.0
    %1272 = vmatpush.msra.mxu0 0.0
    %1273 = vmatpush.msra.mxu0 0.0
    %1274 = vmatpush.msra.mxu0 0.0
    %1275 = vmatpush.msra.mxu0 %v587
    %1276 = vmatpush.msra.mxu0 %v586
    %1277 = vmatmul.f32.gmra.mxu0 %v1259
    %v1278 = vpop.f32.mrf.mxu0
    %v1279 = vadd.f32 0.0, %v1278
    %1280 = vdwg.mxu0
    %1281 = vst.msk [vmem:[#allocation2 + $0x7] sm:$0x1] %vm1112, %v1279
    %v1282 = vld [vmem:[#allocation2] sm:$0xff]
    %v1284 = vperm.slane %v588, 0
    %v1286 = vadd.f32 %v1282, %v1284
    %v1287 = vmax.f32 %v1286, 0.0
    %v1289 = vsel %vm1015, %v752, 0
    %1291 = vmatpush.msra.mxu0 0.0
    %1292 = vmatpush.msra.mxu0 0.0
    %1293 = vmatpush.msra.mxu0 0.0
    %1294 = vmatpush.msra.mxu0 0.0
    %1295 = vmatpush.msra.mxu0 0.0
    %1296 = vmatpush.msra.mxu0 0.0
    %1297 = vmatpush.msra.mxu0 0.0
    %1298 = vmatpush.msra.mxu0 0.0
    %1299 = vmatpush.msra.mxu0 0.0
    %1300 = vmatpush.msra.mxu0 0.0
    %1301 = vmatpush.msra.mxu0 0.0
    %1302 = vmatpush.msra.mxu0 0.0
    %1303 = vmatpush.msra.mxu0 %v596
    %1304 = vmatpush.msra.mxu0 %v595
    %1305 = vmatpush.msra.mxu0 %v594
    %1306 = vmatpush.msra.mxu0 %v593
    %1307 = vmatmul.f32.gmra.mxu0 %v1289
    %v1308 = vpop.f32.mrf.mxu0
    %v1309 = vadd.f32 0.0, %v1308
    %1310 = vdwg.mxu0
    %v1312 = vsel %vm1015, %v1091, 0
    %1314 = vmatpush.msra.mxu0 0.0
    %1315 = vmatpush.msra.mxu0 0.0
    %1316 = vmatpush.msra.mxu0 0.0
    %1317 = vmatpush.msra.mxu0 0.0
    %1318 = vmatpush.msra.mxu0 0.0
    %1319 = vmatpush.msra.mxu0 0.0
    %1320 = vmatpush.msra.mxu0 0.0
    %1321 = vmatpush.msra.mxu0 0.0
    %1322 = vmatpush.msra.mxu0 0.0
    %1323 = vmatpush.msra.mxu0 0.0
    %1324 = vmatpush.msra.mxu0 0.0
    %1325 = vmatpush.msra.mxu0 0.0
    %1326 = vmatpush.msra.mxu0 %v592
    %1327 = vmatpush.msra.mxu0 %v591
    %1328 = vmatpush.msra.mxu0 %v590
    %1329 = vmatpush.msra.mxu0 %v589
    %1330 = vmatmul.f32.gmra.mxu0 %v1312
    %v1331 = vpop.f32.mrf.mxu0
    %v1332 = vadd.f32 %v1309, %v1331
    %1333 = vdwg.mxu0
    %vm1334 = vcmask 72704
    %v1336 = vsel %vm1334, %v1287, 0
    %vm1338 = vcmask 1040384
    %v1340 = vsel %vm1338, %v598, 0
    %1342 = vmatpush.msra.mxu0 0.0
    %1343 = vmatpush.msra.mxu0 0.0
    %1344 = vmatpush.msra.mxu0 0.0
    %1345 = vmatpush.msra.mxu0 0.0
    %1346 = vmatpush.msra.mxu0 0.0
    %1347 = vmatpush.msra.mxu0 0.0
    %1348 = vmatpush.msra.mxu0 0.0
    %1349 = vmatpush.msra.mxu0 0.0
    %1350 = vmatpush.msra.mxu0 0.0
    %1351 = vmatpush.msra.mxu0 0.0
    %1352 = vmatpush.msra.mxu0 0.0
    %1353 = vmatpush.msra.mxu0 0.0
    %1354 = vmatpush.msra.mxu0 0.0
    %1355 = vmatpush.msra.mxu0 0.0
    %1356 = vmatpush.msra.mxu0 %v1340
    %1357 = vmatpush.msra.mxu0 %v597
    %1358 = vmatmul.f32.gmra.mxu0 %v1336
    %v1359 = vpop.f32.mrf.mxu0
    %v1360 = vadd.f32 0.0, %v1359
    %1361 = vdwg.mxu0
    %v1362 = vadd.f32 %v1332, %v1360
    %v1364 = vperm.slane %v599, 0
    %v1366 = vadd.f32 %v1362, %v1364
    %v1368 = vperm.slane %v602, 0
    %vm1370 = vcmask 97280
    %v1372 = vsel %vm1370, %v1366, 0
    %vm1374 = vcmask 1043456
    %v1376 = vsel %vm1374, %v601, 0
    %1378 = vmatpush.msra.mxu0 0.0
    %1379 = vmatpush.msra.mxu0 0.0
    %1380 = vmatpush.msra.mxu0 0.0
    %1381 = vmatpush.msra.mxu0 0.0
    %1382 = vmatpush.msra.mxu0 0.0
    %1383 = vmatpush.msra.mxu0 0.0
    %1384 = vmatpush.msra.mxu0 0.0
    %1385 = vmatpush.msra.mxu0 0.0
    %1386 = vmatpush.msra.mxu0 0.0
    %1387 = vmatpush.msra.mxu0 0.0
    %1388 = vmatpush.msra.mxu0 0.0
    %1389 = vmatpush.msra.mxu0 0.0
    %1390 = vmatpush.msra.mxu0 0.0
    %1391 = vmatpush.msra.mxu0 0.0
    %1392 = vmatpush.msra.mxu0 %v1376
    %1393 = vmatpush.msra.mxu0 %v600
    %1394 = vmatmul.f32.gmra.mxu0 %v1372
    %v1395 = vpop.f32.mrf.mxu0
    %v1396 = vadd.f32 %v1368, %v1395
    %1397 = vdwg.mxu0
    %1398 = vmatpush.msra.mxu0 0.0
    %1399 = vmatpush.msra.mxu0 0.0
    %1400 = vmatpush.msra.mxu0 0.0
    %1401 = vmatpush.msra.mxu0 0.0
    %1402 = vmatpush.msra.mxu0 0.0
    %1403 = vmatpush.msra.mxu0 0.0
    %1404 = vmatpush.msra.mxu0 0.0
    %1405 = vmatpush.msra.mxu0 0.0
    %1406 = vmatpush.msra.mxu0 0.0
    %1407 = vmatpush.msra.mxu0 0.0
    %1408 = vmatpush.msra.mxu0 0.0
    %1409 = vmatpush.msra.mxu0 0.0
    %1410 = vmatpush.msra.mxu0 0.0
    %1411 = vmatpush.msra.mxu0 0.0
    %1412 = vmatpush.msra.mxu0 0.0
    %1413 = vmatpush.msra.mxu0 %v266
    %1414 = vmatmul.f32.gmra.mxu0 %v636
    %v1415 = vpop.f32.mrf.mxu0
    %v1416 = vadd.f32 0.0, %v1415
    %1417 = vdwg.mxu0
    %1418 = vmatpush.msra.mxu0 0.0
    %1419 = vmatpush.msra.mxu0 0.0
    %1420 = vmatpush.msra.mxu0 0.0
    %1421 = vmatpush.msra.mxu0 0.0
    %1422 = vmatpush.msra.mxu0 0.0
    %1423 = vmatpush.msra.mxu0 0.0
    %1424 = vmatpush.msra.mxu0 0.0
    %1425 = vmatpush.msra.mxu0 0.0
    %1426 = vmatpush.msra.mxu0 0.0
    %1427 = vmatpush.msra.mxu0 0.0
    %1428 = vmatpush.msra.mxu0 0.0
    %1429 = vmatpush.msra.mxu0 0.0
    %1430 = vmatpush.msra.mxu0 0.0
    %1431 = vmatpush.msra.mxu0 0.0
    %1432 = vmatpush.msra.mxu0 0.0
    %1433 = vmatpush.msra.mxu0 %v266
    %1434 = vmatmul.f32.gmra.mxu0 %v659
    %v1435 = vpop.f32.mrf.mxu0
    %v1436 = vadd.f32 0.0, %v1435
    %1437 = vdwg.mxu0
    %v1439 = vsel %vm273, %v1416, 0
    %1441 = vmatpush.msra.mxu0 0.0
    %1442 = vmatpush.msra.mxu0 0.0
    %1443 = vmatpush.msra.mxu0 0.0
    %1444 = vmatpush.msra.mxu0 0.0
    %1445 = vmatpush.msra.mxu0 0.0
    %1446 = vmatpush.msra.mxu0 0.0
    %1447 = vmatpush.msra.mxu0 0.0
    %1448 = vmatpush.msra.mxu0 0.0
    %1449 = vmatpush.msra.mxu0 0.0
    %1450 = vmatpush.msra.mxu0 0.0
    %1451 = vmatpush.msra.mxu0 0.0
    %1452 = vmatpush.msra.mxu0 0.0
    %1453 = vmatpush.msra.mxu0 0.0
    %1454 = vmatpush.msra.mxu0 0.0
    %1455 = vmatpush.msra.mxu0 %v506
    %1456 = vmatpush.msra.mxu0 %v505
    %1457 = vmatmul.f32.gmra.mxu0 %v1439
    %v1458 = vpop.f32.mrf.mxu0
    %v1459 = vadd.f32 0.0, %v1458
    %1460 = vdwg.mxu0
    %1461 = vmatpush.msra.mxu0 0.0
    %1462 = vmatpush.msra.mxu0 0.0
    %1463 = vmatpush.msra.mxu0 0.0
    %1464 = vmatpush.msra.mxu0 0.0
    %1465 = vmatpush.msra.mxu0 0.0
    %1466 = vmatpush.msra.mxu0 0.0
    %1467 = vmatpush.msra.mxu0 0.0
    %1468 = vmatpush.msra.mxu0 0.0
    %1469 = vmatpush.msra.mxu0 0.0
    %1470 = vmatpush.msra.mxu0 0.0
    %1471 = vmatpush.msra.mxu0 0.0
    %1472 = vmatpush.msra.mxu0 0.0
    %1473 = vmatpush.msra.mxu0 0.0
    %1474 = vmatpush.msra.mxu0 0.0
    %1475 = vmatpush.msra.mxu0 %v504
    %1476 = vmatpush.msra.mxu0 %v503
    %1477 = vmatmul.f32.gmra.mxu0 %v380
    %v1478 = vpop.f32.mrf.mxu0
    %v1479 = vadd.f32 %v1459, %v1478
    %1480 = vdwg.mxu0
    %v1482 = vsel %vm273, %v1436, 0
    %1484 = vmatpush.msra.mxu0 0.0
    %1485 = vmatpush.msra.mxu0 0.0
    %1486 = vmatpush.msra.mxu0 0.0
    %1487 = vmatpush.msra.mxu0 0.0
    %1488 = vmatpush.msra.mxu0 0.0
    %1489 = vmatpush.msra.mxu0 0.0
    %1490 = vmatpush.msra.mxu0 0.0
    %1491 = vmatpush.msra.mxu0 0.0
    %1492 = vmatpush.msra.mxu0 0.0
    %1493 = vmatpush.msra.mxu0 0.0
    %1494 = vmatpush.msra.mxu0 0.0
    %1495 = vmatpush.msra.mxu0 0.0
    %1496 = vmatpush.msra.mxu0 0.0
    %1497 = vmatpush.msra.mxu0 0.0
    %1498 = vmatpush.msra.mxu0 %v508
    %1499 = vmatpush.msra.mxu0 %v507
    %1500 = vmatmul.f32.gmra.mxu0 %v1482
    %v1501 = vpop.f32.mrf.mxu0
    %v1502 = vadd.f32 0.0, %v1501
    %1503 = vdwg.mxu0
    %v1504 = vadd.f32 %v1479, %v1502
    %v1505 = vadd.f32 %v1504, %v749
    %v1506 = vmax.f32 %v1505, 0.0
    %1507 = vmatpush.msra.mxu0 0.0
    %1508 = vmatpush.msra.mxu0 0.0
    %1509 = vmatpush.msra.mxu0 0.0
    %1510 = vmatpush.msra.mxu0 0.0
    %1511 = vmatpush.msra.mxu0 0.0
    %1512 = vmatpush.msra.mxu0 0.0
    %1513 = vmatpush.msra.mxu0 0.0
    %1514 = vmatpush.msra.mxu0 0.0
    %1515 = vmatpush.msra.mxu0 0.0
    %1516 = vmatpush.msra.mxu0 0.0
    %1517 = vmatpush.msra.mxu0 0.0
    %1518 = vmatpush.msra.mxu0 0.0
    %1519 = vmatpush.msra.mxu0 0.0
    %1520 = vmatpush.msra.mxu0 0.0
    %1521 = vmatpush.msra.mxu0 0.0
    %1522 = vmatpush.msra.mxu0 %v266
    %1523 = vmatmul.f32.gmra.mxu0 %v754
    %v1524 = vpop.f32.mrf.mxu0
    %v1525 = vadd.f32 0.0, %v1524
    %1526 = vdwg.mxu0
    %v1528 = vsel %vm273, %v1525, 0
    %1530 = vmatpush.msra.mxu0 0.0
    %1531 = vmatpush.msra.mxu0 0.0
    %1532 = vmatpush.msra.mxu0 0.0
    %1533 = vmatpush.msra.mxu0 0.0
    %1534 = vmatpush.msra.mxu0 0.0
    %1535 = vmatpush.msra.mxu0 0.0
    %1536 = vmatpush.msra.mxu0 0.0
    %1537 = vmatpush.msra.mxu0 0.0
    %1538 = vmatpush.msra.mxu0 0.0
    %1539 = vmatpush.msra.mxu0 0.0
    %1540 = vmatpush.msra.mxu0 0.0
    %1541 = vmatpush.msra.mxu0 0.0
    %1542 = vmatpush.msra.mxu0 0.0
    %1543 = vmatpush.msra.mxu0 0.0
    %1544 = vmatpush.msra.mxu0 %v513
    %1545 = vmatpush.msra.mxu0 %v512
    %1546 = vmatmul.f32.gmra.mxu0 %v1528
    %v1547 = vpop.f32.mrf.mxu0
    %v1548 = vadd.f32 0.0, %v1547
    %1549 = vdwg.mxu0
    %1550 = vmatpush.msra.mxu0 0.0
    %1551 = vmatpush.msra.mxu0 0.0
    %1552 = vmatpush.msra.mxu0 0.0
    %1553 = vmatpush.msra.mxu0 0.0
    %1554 = vmatpush.msra.mxu0 0.0
    %1555 = vmatpush.msra.mxu0 0.0
    %1556 = vmatpush.msra.mxu0 0.0
    %1557 = vmatpush.msra.mxu0 0.0
    %1558 = vmatpush.msra.mxu0 0.0
    %1559 = vmatpush.msra.mxu0 0.0
    %1560 = vmatpush.msra.mxu0 0.0
    %1561 = vmatpush.msra.mxu0 0.0
    %1562 = vmatpush.msra.mxu0 0.0
    %1563 = vmatpush.msra.mxu0 0.0
    %1564 = vmatpush.msra.mxu0 %v515
    %1565 = vmatpush.msra.mxu0 %v514
    %1566 = vmatmul.f32.gmra.mxu0 %v380
    %v1567 = vpop.f32.mrf.mxu0
    %v1568 = vadd.f32 %v1548, %v1567
    %1569 = vdwg.mxu0
    %v1570 = vadd.f32 %v1568, %v820
    %v1571 = vmax.f32 %v1570, 0.0
    %1572 = vmatpush.msra.mxu0 0.0
    %1573 = vmatpush.msra.mxu0 0.0
    %1574 = vmatpush.msra.mxu0 0.0
    %1575 = vmatpush.msra.mxu0 0.0
    %1576 = vmatpush.msra.mxu0 0.0
    %1577 = vmatpush.msra.mxu0 0.0
    %1578 = vmatpush.msra.mxu0 0.0
    %1579 = vmatpush.msra.mxu0 0.0
    %1580 = vmatpush.msra.mxu0 0.0
    %1581 = vmatpush.msra.mxu0 0.0
    %1582 = vmatpush.msra.mxu0 0.0
    %1583 = vmatpush.msra.mxu0 0.0
    %1584 = vmatpush.msra.mxu0 0.0
    %1585 = vmatpush.msra.mxu0 0.0
    %1586 = vmatpush.msra.mxu0 0.0
    %1587 = vmatpush.msra.mxu0 %v1571
    %1588 = vmatmul.f32.gmra.mxu0 %v754
    %v1589 = vpop.f32.mrf.mxu0
    %v1590 = vadd.f32 0.0, %v1589
    %1591 = vdwg.mxu0
    %v1593 = vsel %vm844, %v1590, 0
    %1595 = vmatpush.msra.mxu0 0.0
    %1596 = vmatpush.msra.mxu0 0.0
    %1597 = vmatpush.msra.mxu0 0.0
    %1598 = vmatpush.msra.mxu0 0.0
    %1599 = vmatpush.msra.mxu0 0.0
    %1600 = vmatpush.msra.mxu0 0.0
    %1601 = vmatpush.msra.mxu0 0.0
    %1602 = vmatpush.msra.mxu0 0.0
    %1603 = vmatpush.msra.mxu0 %v524
    %1604 = vmatpush.msra.mxu0 %v523
    %1605 = vmatpush.msra.mxu0 %v522
    %1606 = vmatpush.msra.mxu0 %v521
    %1607 = vmatpush.msra.mxu0 %v520
    %1608 = vmatpush.msra.mxu0 %v519
    %1609 = vmatpush.msra.mxu0 %v518
    %1610 = vmatpush.msra.mxu0 %v517
    %1611 = vmatmul.f32.gmra.mxu0 %v1593
    %v1612 = vpop.f32.mrf.mxu0
    %v1613 = vadd.f32 0.0, %v1612
    %1614 = vdwg.mxu0
    %v1616 = vsel %vm844, %v1571, 0
    %1618 = vmatpush.msra.mxu0 0.0
    %1619 = vmatpush.msra.mxu0 0.0
    %1620 = vmatpush.msra.mxu0 0.0
    %1621 = vmatpush.msra.mxu0 0.0
    %1622 = vmatpush.msra.mxu0 0.0
    %1623 = vmatpush.msra.mxu0 0.0
    %1624 = vmatpush.msra.mxu0 0.0
    %1625 = vmatpush.msra.mxu0 0.0
    %1626 = vmatpush.msra.mxu0 %v532
    %1627 = vmatpush.msra.mxu0 %v531
    %1628 = vmatpush.msra.mxu0 %v530
    %1629 = vmatpush.msra.mxu0 %v529
    %1630 = vmatpush.msra.mxu0 %v528
    %1631 = vmatpush.msra.mxu0 %v527
    %1632 = vmatpush.msra.mxu0 %v526
    %1633 = vmatpush.msra.mxu0 %v525
    %1634 = vmatmul.f32.gmra.mxu0 %v1616
    %v1635 = vpop.f32.mrf.mxu0
    %v1636 = vadd.f32 %v1613, %v1635
    %1637 = vdwg.mxu0
    %v1638 = vadd.f32 %v1636, %v892
    %v1639 = vmax.f32 %v1638, 0.0
    %1640 = vmatpush.msra.mxu0 0.0
    %1641 = vmatpush.msra.mxu0 0.0
    %1642 = vmatpush.msra.mxu0 0.0
    %1643 = vmatpush.msra.mxu0 0.0
    %1644 = vmatpush.msra.mxu0 0.0
    %1645 = vmatpush.msra.mxu0 0.0
    %1646 = vmatpush.msra.mxu0 0.0
    %1647 = vmatpush.msra.mxu0 0.0
    %1648 = vmatpush.msra.mxu0 0.0
    %1649 = vmatpush.msra.mxu0 0.0
    %1650 = vmatpush.msra.mxu0 0.0
    %1651 = vmatpush.msra.mxu0 0.0
    %1652 = vmatpush.msra.mxu0 0.0
    %1653 = vmatpush.msra.mxu0 0.0
    %1654 = vmatpush.msra.mxu0 %v535
    %1655 = vmatpush.msra.mxu0 %v534
    %1656 = vmatmul.f32.gmra.mxu0 %v380
    %v1657 = vpop.f32.mrf.mxu0
    %v1658 = vadd.f32 %v897, %v1657
    %1659 = vdwg.mxu0
    %v1660 = vadd.f32 %v1639, %v1658
    %v1661 = vmax.f32 %v1660, 0.0
    %1662 = vmatpush.msra.mxu0 0.0
    %1663 = vmatpush.msra.mxu0 0.0
    %1664 = vmatpush.msra.mxu0 0.0
    %1665 = vmatpush.msra.mxu0 0.0
    %1666 = vmatpush.msra.mxu0 0.0
    %1667 = vmatpush.msra.mxu0 0.0
    %1668 = vmatpush.msra.mxu0 0.0
    %1669 = vmatpush.msra.mxu0 0.0
    %1670 = vmatpush.msra.mxu0 0.0
    %1671 = vmatpush.msra.mxu0 0.0
    %1672 = vmatpush.msra.mxu0 0.0
    %1673 = vmatpush.msra.mxu0 0.0
    %1674 = vmatpush.msra.mxu0 0.0
    %1675 = vmatpush.msra.mxu0 0.0
    %1676 = vmatpush.msra.mxu0 0.0
    %1677 = vmatpush.msra.mxu0 %v1661
    %1678 = vmatmul.f32.gmra.mxu0 %v922
    %v1679 = vpop.f32.mrf.mxu0
    %v1680 = vadd.f32 0.0, %v1679
    %1681 = vdwg.mxu0
    %v1683 = vsel %vm844, %v1680, 0
    %1685 = vmatpush.msra.mxu0 0.0
    %1686 = vmatpush.msra.mxu0 0.0
    %1687 = vmatpush.msra.mxu0 0.0
    %1688 = vmatpush.msra.mxu0 0.0
    %1689 = vmatpush.msra.mxu0 0.0
    %1690 = vmatpush.msra.mxu0 0.0
    %1691 = vmatpush.msra.mxu0 0.0
    %1692 = vmatpush.msra.mxu0 0.0
    %1693 = vmatpush.msra.mxu0 %v544
    %1694 = vmatpush.msra.mxu0 %v543
    %1695 = vmatpush.msra.mxu0 %v542
    %1696 = vmatpush.msra.mxu0 %v541
    %1697 = vmatpush.msra.mxu0 %v540
    %1698 = vmatpush.msra.mxu0 %v539
    %1699 = vmatpush.msra.mxu0 %v538
    %1700 = vmatpush.msra.mxu0 %v537
    %1701 = vmatmul.f32.gmra.mxu0 %v1683
    %v1702 = vpop.f32.mrf.mxu0
    %v1703 = vadd.f32 0.0, %v1702
    %1704 = vdwg.mxu0
    %v1706 = vsel %vm844, %v1661, 0
    %1708 = vmatpush.msra.mxu0 0.0
    %1709 = vmatpush.msra.mxu0 0.0
    %1710 = vmatpush.msra.mxu0 0.0
    %1711 = vmatpush.msra.mxu0 0.0
    %1712 = vmatpush.msra.mxu0 0.0
    %1713 = vmatpush.msra.mxu0 0.0
    %1714 = vmatpush.msra.mxu0 0.0
    %1715 = vmatpush.msra.mxu0 0.0
    %1716 = vmatpush.msra.mxu0 %v552
    %1717 = vmatpush.msra.mxu0 %v551
    %1718 = vmatpush.msra.mxu0 %v550
    %1719 = vmatpush.msra.mxu0 %v549
    %1720 = vmatpush.msra.mxu0 %v548
    %1721 = vmatpush.msra.mxu0 %v547
    %1722 = vmatpush.msra.mxu0 %v546
    %1723 = vmatpush.msra.mxu0 %v545
    %1724 = vmatmul.f32.gmra.mxu0 %v1706
    %v1725 = vpop.f32.mrf.mxu0
    %v1726 = vadd.f32 %v1703, %v1725
    %1727 = vdwg.mxu0
    %v1728 = vadd.f32 %v1726, %v991
    %v1729 = vmax.f32 %v1728, 0.0
    %1730 = vmatpush.msra.mxu0 0.0
    %1731 = vmatpush.msra.mxu0 0.0
    %1732 = vmatpush.msra.mxu0 0.0
    %1733 = vmatpush.msra.mxu0 0.0
    %1734 = vmatpush.msra.mxu0 0.0
    %1735 = vmatpush.msra.mxu0 0.0
    %1736 = vmatpush.msra.mxu0 0.0
    %1737 = vmatpush.msra.mxu0 0.0
    %1738 = vmatpush.msra.mxu0 0.0
    %1739 = vmatpush.msra.mxu0 0.0
    %1740 = vmatpush.msra.mxu0 0.0
    %1741 = vmatpush.msra.mxu0 0.0
    %1742 = vmatpush.msra.mxu0 0.0
    %1743 = vmatpush.msra.mxu0 0.0
    %1744 = vmatpush.msra.mxu0 0.0
    %1745 = vmatpush.msra.mxu0 %v1729
    %1746 = vmatmul.f32.gmra.mxu0 %v922
    %v1747 = vpop.f32.mrf.mxu0
    %v1748 = vadd.f32 0.0, %v1747
    %1749 = vdwg.mxu0
    %v1751 = vsel %vm1015, %v1748, 0
    %1753 = vmatpush.msra.mxu0 0.0
    %1754 = vmatpush.msra.mxu0 0.0
    %1755 = vmatpush.msra.mxu0 0.0
    %1756 = vmatpush.msra.mxu0 0.0
    %1757 = vmatpush.msra.mxu0 0.0
    %1758 = vmatpush.msra.mxu0 0.0
    %1759 = vmatpush.msra.mxu0 0.0
    %1760 = vmatpush.msra.mxu0 0.0
    %1761 = vmatpush.msra.mxu0 0.0
    %1762 = vmatpush.msra.mxu0 0.0
    %1763 = vmatpush.msra.mxu0 0.0
    %1764 = vmatpush.msra.mxu0 0.0
    %1765 = vmatpush.msra.mxu0 %v557
    %1766 = vmatpush.msra.mxu0 %v556
    %1767 = vmatpush.msra.mxu0 %v555
    %1768 = vmatpush.msra.mxu0 %v554
    %1769 = vmatmul.f32.gmra.mxu0 %v1751
    %v1770 = vpop.f32.mrf.mxu0
    %v1771 = vadd.f32 0.0, %v1770
    %1772 = vdwg.mxu0
    %v1774 = vsel %vm1015, %v1729, 0
    %1776 = vmatpush.msra.mxu0 0.0
    %1777 = vmatpush.msra.mxu0 0.0
    %1778 = vmatpush.msra.mxu0 0.0
    %1779 = vmatpush.msra.mxu0 0.0
    %1780 = vmatpush.msra.mxu0 0.0
    %1781 = vmatpush.msra.mxu0 0.0
    %1782 = vmatpush.msra.mxu0 0.0
    %1783 = vmatpush.msra.mxu0 0.0
    %1784 = vmatpush.msra.mxu0 0.0
    %1785 = vmatpush.msra.mxu0 0.0
    %1786 = vmatpush.msra.mxu0 0.0
    %1787 = vmatpush.msra.mxu0 0.0
    %1788 = vmatpush.msra.mxu0 %v561
    %1789 = vmatpush.msra.mxu0 %v560
    %1790 = vmatpush.msra.mxu0 %v559
    %1791 = vmatpush.msra.mxu0 %v558
    %1792 = vmatmul.f32.gmra.mxu0 %v1774
    %v1793 = vpop.f32.mrf.mxu0
    %v1794 = vadd.f32 %v1771, %v1793
    %1795 = vdwg.mxu0
    %v1796 = vadd.f32 %v1794, %v1063
    %v1797 = vmax.f32 %v1796, 0.0
    %1798 = vmatpush.msra.mxu0 0.0
    %1799 = vmatpush.msra.mxu0 0.0
    %1800 = vmatpush.msra.mxu0 0.0
    %1801 = vmatpush.msra.mxu0 0.0
    %1802 = vmatpush.msra.mxu0 0.0
    %1803 = vmatpush.msra.mxu0 0.0
    %1804 = vmatpush.msra.mxu0 0.0
    %1805 = vmatpush.msra.mxu0 0.0
    %1806 = vmatpush.msra.mxu0 %v570
    %1807 = vmatpush.msra.mxu0 %v569
    %1808 = vmatpush.msra.mxu0 %v568
    %1809 = vmatpush.msra.mxu0 %v567
    %1810 = vmatpush.msra.mxu0 %v566
    %1811 = vmatpush.msra.mxu0 %v565
    %1812 = vmatpush.msra.mxu0 %v564
    %1813 = vmatpush.msra.mxu0 %v563
    %1814 = vmatmul.f32.gmra.mxu0 %v1706
    %v1815 = vpop.f32.mrf.mxu0
    %v1816 = vadd.f32 %v1068, %v1815
    %1817 = vdwg.mxu0
    %v1818 = vadd.f32 %v1797, %v1816
    %v1819 = vmax.f32 %v1818, 0.0
    %1820 = vmatpush.msra.mxu0 0.0
    %1821 = vmatpush.msra.mxu0 0.0
    %1822 = vmatpush.msra.mxu0 0.0
    %1823 = vmatpush.msra.mxu0 0.0
    %1824 = vmatpush.msra.mxu0 0.0
    %1825 = vmatpush.msra.mxu0 0.0
    %1826 = vmatpush.msra.mxu0 0.0
    %1827 = vmatpush.msra.mxu0 0.0
    %1828 = vmatpush.msra.mxu0 0.0
    %1829 = vmatpush.msra.mxu0 0.0
    %1830 = vmatpush.msra.mxu0 0.0
    %1831 = vmatpush.msra.mxu0 0.0
    %1832 = vmatpush.msra.mxu0 0.0
    %1833 = vmatpush.msra.mxu0 0.0
    %1834 = vmatpush.msra.mxu0 %v573
    %1835 = vmatpush.msra.mxu0 %v572
    %1836 = vmatmul.f32.gmra.mxu0 %v380
    %v1837 = vpop.f32.mrf.mxu0
    %v1838 = vadd.f32 0.0, %v1837
    %1839 = vdwg.mxu0
    %1840 = vst.msk [vmem:[#allocation2] sm:$0x1] %vm1112, %v1838
    %v1841 = vrot.slane %v266, 1
    %v1842 = vsel %vm273, %v1841, 0
    %1844 = vmatpush.msra.mxu0 0.0
    %1845 = vmatpush.msra.mxu0 0.0
    %1846 = vmatpush.msra.mxu0 0.0
    %1847 = vmatpush.msra.mxu0 0.0
    %1848 = vmatpush.msra.mxu0 0.0
    %1849 = vmatpush.msra.mxu0 0.0
    %1850 = vmatpush.msra.mxu0 0.0
    %1851 = vmatpush.msra.mxu0 0.0
    %1852 = vmatpush.msra.mxu0 0.0
    %1853 = vmatpush.msra.mxu0 0.0
    %1854 = vmatpush.msra.mxu0 0.0
    %1855 = vmatpush.msra.mxu0 0.0
    %1856 = vmatpush.msra.mxu0 0.0
    %1857 = vmatpush.msra.mxu0 0.0
    %1858 = vmatpush.msra.mxu0 %v575
    %1859 = vmatpush.msra.mxu0 %v574
    %1860 = vmatmul.f32.gmra.mxu0 %v1842
    %v1861 = vpop.f32.mrf.mxu0
    %v1862 = vadd.f32 0.0, %v1861
    %1863 = vdwg.mxu0
    %1864 = vst.msk [vmem:[#allocation2 + $0x1] sm:$0x1] %vm1112, %v1862
    %v1865 = vrot.slane %v266, 2
    %v1866 = vsel %vm273, %v1865, 0
    %1868 = vmatpush.msra.mxu0 0.0
    %1869 = vmatpush.msra.mxu0 0.0
    %1870 = vmatpush.msra.mxu0 0.0
    %1871 = vmatpush.msra.mxu0 0.0
    %1872 = vmatpush.msra.mxu0 0.0
    %1873 = vmatpush.msra.mxu0 0.0
    %1874 = vmatpush.msra.mxu0 0.0
    %1875 = vmatpush.msra.mxu0 0.0
    %1876 = vmatpush.msra.mxu0 0.0
    %1877 = vmatpush.msra.mxu0 0.0
    %1878 = vmatpush.msra.mxu0 0.0
    %1879 = vmatpush.msra.mxu0 0.0
    %1880 = vmatpush.msra.mxu0 0.0
    %1881 = vmatpush.msra.mxu0 0.0
    %1882 = vmatpush.msra.mxu0 %v577
    %1883 = vmatpush.msra.mxu0 %v576
    %1884 = vmatmul.f32.gmra.mxu0 %v1866
    %v1885 = vpop.f32.mrf.mxu0
    %v1886 = vadd.f32 0.0, %v1885
    %1887 = vdwg.mxu0
    %1888 = vst.msk [vmem:[#allocation2 + $0x2] sm:$0x1] %vm1112, %v1886
    %v1889 = vrot.slane %v266, 3
    %v1890 = vsel %vm273, %v1889, 0
    %1892 = vmatpush.msra.mxu0 0.0
    %1893 = vmatpush.msra.mxu0 0.0
    %1894 = vmatpush.msra.mxu0 0.0
    %1895 = vmatpush.msra.mxu0 0.0
    %1896 = vmatpush.msra.mxu0 0.0
    %1897 = vmatpush.msra.mxu0 0.0
    %1898 = vmatpush.msra.mxu0 0.0
    %1899 = vmatpush.msra.mxu0 0.0
    %1900 = vmatpush.msra.mxu0 0.0
    %1901 = vmatpush.msra.mxu0 0.0
    %1902 = vmatpush.msra.mxu0 0.0
    %1903 = vmatpush.msra.mxu0 0.0
    %1904 = vmatpush.msra.mxu0 0.0
    %1905 = vmatpush.msra.mxu0 0.0
    %1906 = vmatpush.msra.mxu0 %v579
    %1907 = vmatpush.msra.mxu0 %v578
    %1908 = vmatmul.f32.gmra.mxu0 %v1890
    %v1909 = vpop.f32.mrf.mxu0
    %v1910 = vadd.f32 0.0, %v1909
    %1911 = vdwg.mxu0
    %1912 = vst.msk [vmem:[#allocation2 + $0x3] sm:$0x1] %vm1112, %v1910
    %v1913 = vrot.slane %v266, 4
    %v1914 = vsel %vm273, %v1913, 0
    %1916 = vmatpush.msra.mxu0 0.0
    %1917 = vmatpush.msra.mxu0 0.0
    %1918 = vmatpush.msra.mxu0 0.0
    %1919 = vmatpush.msra.mxu0 0.0
    %1920 = vmatpush.msra.mxu0 0.0
    %1921 = vmatpush.msra.mxu0 0.0
    %1922 = vmatpush.msra.mxu0 0.0
    %1923 = vmatpush.msra.mxu0 0.0
    %1924 = vmatpush.msra.mxu0 0.0
    %1925 = vmatpush.msra.mxu0 0.0
    %1926 = vmatpush.msra.mxu0 0.0
    %1927 = vmatpush.msra.mxu0 0.0
    %1928 = vmatpush.msra.mxu0 0.0
    %1929 = vmatpush.msra.mxu0 0.0
    %1930 = vmatpush.msra.mxu0 %v581
    %1931 = vmatpush.msra.mxu0 %v580
    %1932 = vmatmul.f32.gmra.mxu0 %v1914
    %v1933 = vpop.f32.mrf.mxu0
    %v1934 = vadd.f32 0.0, %v1933
    %1935 = vdwg.mxu0
    %1936 = vst.msk [vmem:[#allocation2 + $0x4] sm:$0x1] %vm1112, %v1934
    %v1937 = vrot.slane %v266, 5
    %v1938 = vsel %vm273, %v1937, 0
    %1940 = vmatpush.msra.mxu0 0.0
    %1941 = vmatpush.msra.mxu0 0.0
    %1942 = vmatpush.msra.mxu0 0.0
    %1943 = vmatpush.msra.mxu0 0.0
    %1944 = vmatpush.msra.mxu0 0.0
    %1945 = vmatpush.msra.mxu0 0.0
    %1946 = vmatpush.msra.mxu0 0.0
    %1947 = vmatpush.msra.mxu0 0.0
    %1948 = vmatpush.msra.mxu0 0.0
    %1949 = vmatpush.msra.mxu0 0.0
    %1950 = vmatpush.msra.mxu0 0.0
    %1951 = vmatpush.msra.mxu0 0.0
    %1952 = vmatpush.msra.mxu0 0.0
    %1953 = vmatpush.msra.mxu0 0.0
    %1954 = vmatpush.msra.mxu0 %v583
    %1955 = vmatpush.msra.mxu0 %v582
    %1956 = vmatmul.f32.gmra.mxu0 %v1938
    %v1957 = vpop.f32.mrf.mxu0
    %v1958 = vadd.f32 0.0, %v1957
    %1959 = vdwg.mxu0
    %1960 = vst.msk [vmem:[#allocation2 + $0x5] sm:$0x1] %vm1112, %v1958
    %v1961 = vrot.slane %v266, 6
    %v1962 = vsel %vm273, %v1961, 0
    %1964 = vmatpush.msra.mxu0 0.0
    %1965 = vmatpush.msra.mxu0 0.0
    %1966 = vmatpush.msra.mxu0 0.0
    %1967 = vmatpush.msra.mxu0 0.0
    %1968 = vmatpush.msra.mxu0 0.0
    %1969 = vmatpush.msra.mxu0 0.0
    %1970 = vmatpush.msra.mxu0 0.0
    %1971 = vmatpush.msra.mxu0 0.0
    %1972 = vmatpush.msra.mxu0 0.0
    %1973 = vmatpush.msra.mxu0 0.0
    %1974 = vmatpush.msra.mxu0 0.0
    %1975 = vmatpush.msra.mxu0 0.0
    %1976 = vmatpush.msra.mxu0 0.0
    %1977 = vmatpush.msra.mxu0 0.0
    %1978 = vmatpush.msra.mxu0 %v585
    %1979 = vmatpush.msra.mxu0 %v584
    %1980 = vmatmul.f32.gmra.mxu0 %v1962
    %v1981 = vpop.f32.mrf.mxu0
    %v1982 = vadd.f32 0.0, %v1981
    %1983 = vdwg.mxu0
    %1984 = vst.msk [vmem:[#allocation2 + $0x6] sm:$0x1] %vm1112, %v1982
    %v1985 = vrot.slane %v266, 7
    %v1986 = vsel %vm273, %v1985, 0
    %1988 = vmatpush.msra.mxu0 0.0
    %1989 = vmatpush.msra.mxu0 0.0
    %1990 = vmatpush.msra.mxu0 0.0
    %1991 = vmatpush.msra.mxu0 0.0
    %1992 = vmatpush.msra.mxu0 0.0
    %1993 = vmatpush.msra.mxu0 0.0
    %1994 = vmatpush.msra.mxu0 0.0
    %1995 = vmatpush.msra.mxu0 0.0
    %1996 = vmatpush.msra.mxu0 0.0
    %1997 = vmatpush.msra.mxu0 0.0
    %1998 = vmatpush.msra.mxu0 0.0
    %1999 = vmatpush.msra.mxu0 0.0
    %2000 = vmatpush.msra.mxu0 0.0
    %2001 = vmatpush.msra.mxu0 0.0
    %2002 = vmatpush.msra.mxu0 %v587
    %2003 = vmatpush.msra.mxu0 %v586
    %2004 = vmatmul.f32.gmra.mxu0 %v1986
    %v2005 = vpop.f32.mrf.mxu0
    %v2006 = vadd.f32 0.0, %v2005
    %2007 = vdwg.mxu0
    %2008 = vst.msk [vmem:[#allocation2 + $0x7] sm:$0x1] %vm1112, %v2006
    %v2009 = vld [vmem:[#allocation2] sm:$0xff]
    %v2010 = vadd.f32 %v2009, %v1284
    %v2011 = vmax.f32 %v2010, 0.0
    %v2013 = vsel %vm1015, %v1506, 0
    %2015 = vmatpush.msra.mxu0 0.0
    %2016 = vmatpush.msra.mxu0 0.0
    %2017 = vmatpush.msra.mxu0 0.0
    %2018 = vmatpush.msra.mxu0 0.0
    %2019 = vmatpush.msra.mxu0 0.0
    %2020 = vmatpush.msra.mxu0 0.0
    %2021 = vmatpush.msra.mxu0 0.0
    %2022 = vmatpush.msra.mxu0 0.0
    %2023 = vmatpush.msra.mxu0 0.0
    %2024 = vmatpush.msra.mxu0 0.0
    %2025 = vmatpush.msra.mxu0 0.0
    %2026 = vmatpush.msra.mxu0 0.0
    %2027 = vmatpush.msra.mxu0 %v596
    %2028 = vmatpush.msra.mxu0 %v595
    %2029 = vmatpush.msra.mxu0 %v594
    %2030 = vmatpush.msra.mxu0 %v593
    %2031 = vmatmul.f32.gmra.mxu0 %v2013
    %v2032 = vpop.f32.mrf.mxu0
    %v2033 = vadd.f32 0.0, %v2032
    %2034 = vdwg.mxu0
    %v2036 = vsel %vm1015, %v1819, 0
    %2038 = vmatpush.msra.mxu0 0.0
    %2039 = vmatpush.msra.mxu0 0.0
    %2040 = vmatpush.msra.mxu0 0.0
    %2041 = vmatpush.msra.mxu0 0.0
    %2042 = vmatpush.msra.mxu0 0.0
    %2043 = vmatpush.msra.mxu0 0.0
    %2044 = vmatpush.msra.mxu0 0.0
    %2045 = vmatpush.msra.mxu0 0.0
    %2046 = vmatpush.msra.mxu0 0.0
    %2047 = vmatpush.msra.mxu0 0.0
    %2048 = vmatpush.msra.mxu0 0.0
    %2049 = vmatpush.msra.mxu0 0.0
    %2050 = vmatpush.msra.mxu0 %v592
    %2051 = vmatpush.msra.mxu0 %v591
    %2052 = vmatpush.msra.mxu0 %v590
    %2053 = vmatpush.msra.mxu0 %v589
    %2054 = vmatmul.f32.gmra.mxu0 %v2036
    %v2055 = vpop.f32.mrf.mxu0
    %v2056 = vadd.f32 %v2033, %v2055
    %2057 = vdwg.mxu0
    %v2059 = vsel %vm1334, %v2011, 0
    %2061 = vmatpush.msra.mxu0 0.0
    %2062 = vmatpush.msra.mxu0 0.0
    %2063 = vmatpush.msra.mxu0 0.0
    %2064 = vmatpush.msra.mxu0 0.0
    %2065 = vmatpush.msra.mxu0 0.0
    %2066 = vmatpush.msra.mxu0 0.0
    %2067 = vmatpush.msra.mxu0 0.0
    %2068 = vmatpush.msra.mxu0 0.0
    %2069 = vmatpush.msra.mxu0 0.0
    %2070 = vmatpush.msra.mxu0 0.0
    %2071 = vmatpush.msra.mxu0 0.0
    %2072 = vmatpush.msra.mxu0 0.0
    %2073 = vmatpush.msra.mxu0 0.0
    %2074 = vmatpush.msra.mxu0 0.0
    %2075 = vmatpush.msra.mxu0 %v1340
    %2076 = vmatpush.msra.mxu0 %v597
    %2077 = vmatmul.f32.gmra.mxu0 %v2059
    %v2078 = vpop.f32.mrf.mxu0
    %v2079 = vadd.f32 0.0, %v2078
    %2080 = vdwg.mxu0
    %v2081 = vadd.f32 %v2056, %v2079
    %v2082 = vadd.f32 %v2081, %v1364
    %v2084 = vsel %vm1370, %v2082, 0
    %2086 = vmatpush.msra.mxu0 0.0
    %2087 = vmatpush.msra.mxu0 0.0
    %2088 = vmatpush.msra.mxu0 0.0
    %2089 = vmatpush.msra.mxu0 0.0
    %2090 = vmatpush.msra.mxu0 0.0
    %2091 = vmatpush.msra.mxu0 0.0
    %2092 = vmatpush.msra.mxu0 0.0
    %2093 = vmatpush.msra.mxu0 0.0
    %2094 = vmatpush.msra.mxu0 0.0
    %2095 = vmatpush.msra.mxu0 0.0
    %2096 = vmatpush.msra.mxu0 0.0
    %2097 = vmatpush.msra.mxu0 0.0
    %2098 = vmatpush.msra.mxu0 0.0
    %2099 = vmatpush.msra.mxu0 0.0
    %2100 = vmatpush.msra.mxu0 %v1376
    %2101 = vmatpush.msra.mxu0 %v600
    %2102 = vmatmul.f32.gmra.mxu0 %v2084
    %v2103 = vpop.f32.mrf.mxu0
    %v2104 = vadd.f32 %v1368, %v2103
    %2105 = vdwg.mxu0
    %2107 = vrot.lane.b32.xlu0 %v2104, 16
    %v2108 = vpop.permute.xlu0 %2107
    %2111 = vrot.lane.b32.xlu0 %v1396, 16
    %v2112 = vpop.permute.xlu0 %2111
    %2114 = vrot.lane.b32.xlu0 %v2104, 32
    %v2115 = vpop.permute.xlu0 %2114
    %2117 = vrot.lane.b32.xlu0 %v1396, 32
    %v2118 = vpop.permute.xlu0 %2117
    %2120 = vrot.lane.b32.xlu0 %v2104, 48
    %v2121 = vpop.permute.xlu0 %2120
    %v2123 = vsel %vm273, %v1396, %v2108
    %v2124 = vsel %vm1015, %v2123, %v2112
    %vm2125 = vcmask 392192
    %v2126 = vsel %vm2125, %v2124, %v2115
    %v2127 = vsel %vm844, %v2126, %v2118
    %vm2128 = vcmask 654336
    %v2129 = vsel %vm2128, %v2127, %v2121
    %v2130 = vld [vmem:[%s61] sm:$0xff]
    %v2131 = vld [vmem:[%s61 + $0x8] sm:$0xff]
    %v2132 = vld [vmem:[%s61 + $0x10] sm:$0xff]
    %v2133 = vld [vmem:[%s61 + $0x18] sm:$0xff]
    %v2134 = vld [vmem:[#allocation15] sm:$0x1]
    %v2136 = vsel %vm1015, 0.0, 0
    %2138 = vmatpush.msra.mxu0 0.0
    %2139 = vmatpush.msra.mxu0 0.0
    %2140 = vmatpush.msra.mxu0 0.0
    %2141 = vmatpush.msra.mxu0 0.0
    %2142 = vmatpush.msra.mxu0 0.0
    %2143 = vmatpush.msra.mxu0 0.0
    %2144 = vmatpush.msra.mxu0 0.0
    %2145 = vmatpush.msra.mxu0 0.0
    %2146 = vmatpush.msra.mxu0 0.0
    %2147 = vmatpush.msra.mxu0 0.0
    %2148 = vmatpush.msra.mxu0 0.0
    %2149 = vmatpush.msra.mxu0 0.0
    %2150 = vmatpush.msra.mxu0 %v2133
    %2151 = vmatpush.msra.mxu0 %v2132
    %2152 = vmatpush.msra.mxu0 %v2131
    %2153 = vmatpush.msra.mxu0 %v2130
    %2154 = vmatmul.f32.gmra.mxu0 %v2136
    %v2155 = vpop.f32.mrf.mxu0
    %v2156 = vadd.f32 %v2134, %v2155
    %2157 = vdwg.mxu0
    %v2158 = vadd.f32 %v2129, %v2156
    %v2159 = vxor.u32 %v2158, 2147483648
    %v2160 = vmul.f32 %v2159, 1.442695
    %v2161 = vpow.pop %v2160
    %v2162 = vadd.f32 %v2161, 1.0
    %v2163 = vrcp.pop %v2162
    %v2164 = vmul.f32 %v2162, %v2163
    %v2165 = vsub.f32 1.0, %v2164
    %v2166 = vmul.f32 %v2163, %v2165
    %v2167 = vadd.f32 %v2163, %v2166
    %vm2168 = vweird.f32 %v2162
    %vm2169 = vweird.f32 %v2163
    %vm2170 = vmor %vm2168, %vm2169
    %v2171 = vsel %vm2170, %v2163, %v2167
    %v2172 = vand.u32 2147483647, %v2162
    %vm2173 = vcmp.eq.f32.partialorder %v2172, 8.507059e+37
    %v2174 = vand.u32 %v2162, 2147483648
    %v2175 = vor.u32 1.1754944e-38, %v2174
    %v2176 = vsel %vm2173, %v2175, %v2171
    %v2177 = vmul.f32 1.0, %v2176
    %2179 = vrot.lane.b32.xlu0 %v2156, 64
    %v2180 = vpop.permute.xlu0 %2179
    %v2182 = vmul.f32 %v2177, %v2180
    %2184 = vrot.lane.b32.xlu0 %v2182, 64
    %v2185 = vpop.permute.xlu0 %2184
    %v2187 = vadd.f32 %v2129, %v2185
    %v2188 = vtanh.pop %v2187
    %v2189 = vsub.f32 1.0, %v2177
    %2191 = vrot.lane.b32.xlu0 %v2188, 96
    %v2192 = vpop.permute.xlu0 %2191
    %v2194 = vmul.f32 %v2189, %v2192
    %v2195 = vmul.f32 %v2177, 0.0
    %v2196 = vadd.f32 %v2194, %v2195
    %2198 = vrot.lane.b32.xlu0 %v2196, 96
    %v2199 = vpop.permute.xlu0 %2198
    %vm2201 = vcmask 253952
    %2202 = vst.msk [vmem:[#allocation3] sm:$0x1] %vm2201, %v2199
    %v2203 = vsel %vm1015, %v2199, 0
    %2205 = vmatpush.msra.mxu0 0.0
    %2206 = vmatpush.msra.mxu0 0.0
    %2207 = vmatpush.msra.mxu0 0.0
    %2208 = vmatpush.msra.mxu0 0.0
    %2209 = vmatpush.msra.mxu0 0.0
    %2210 = vmatpush.msra.mxu0 0.0
    %2211 = vmatpush.msra.mxu0 0.0
    %2212 = vmatpush.msra.mxu0 0.0
    %2213 = vmatpush.msra.mxu0 0.0
    %2214 = vmatpush.msra.mxu0 0.0
    %2215 = vmatpush.msra.mxu0 0.0
    %2216 = vmatpush.msra.mxu0 0.0
    %2217 = vmatpush.msra.mxu0 %v2133
    %2218 = vmatpush.msra.mxu0 %v2132
    %2219 = vmatpush.msra.mxu0 %v2131
    %2220 = vmatpush.msra.mxu0 %v2130
    %2221 = vmatmul.f32.gmra.mxu0 %v2203
    %v2222 = vpop.f32.mrf.mxu0
    %v2223 = vadd.f32 %v2134, %v2222
    %2224 = vdwg.mxu0
    %v2226 = vrot.slane %v2223, 7
    %v2228 = vadd.f32 %v2129, %v2226
    %v2229 = vxor.u32 %v2228, 2147483648
    %v2230 = vmul.f32 %v2229, 1.442695
    %v2231 = vpow.pop %v2230
    %v2232 = vadd.f32 %v2231, 1.0
    %v2233 = vrcp.pop %v2232
    %v2234 = vmul.f32 %v2232, %v2233
    %v2235 = vsub.f32 1.0, %v2234
    %v2236 = vmul.f32 %v2233, %v2235
    %v2237 = vadd.f32 %v2233, %v2236
    %vm2238 = vweird.f32 %v2232
    %vm2239 = vweird.f32 %v2233
    %vm2240 = vmor %vm2238, %vm2239
    %v2241 = vsel %vm2240, %v2233, %v2237
    %v2242 = vand.u32 2147483647, %v2232
    %vm2243 = vcmp.eq.f32.partialorder %v2242, 8.507059e+37
    %v2244 = vand.u32 %v2232, 2147483648
    %v2245 = vor.u32 1.1754944e-38, %v2244
    %v2246 = vsel %vm2243, %v2245, %v2241
    %v2247 = vmul.f32 1.0, %v2246
    %2248 = vrot.lane.b32.xlu0 %v2226, 64
    %v2249 = vpop.permute.xlu0 %2248
    %v2251 = vmul.f32 %v2247, %v2249
    %2253 = vrot.lane.b32.xlu0 %v2251, 64
    %v2254 = vpop.permute.xlu0 %2253
    %v2256 = vadd.f32 %v2129, %v2254
    %v2257 = vtanh.pop %v2256
    %v2258 = vsub.f32 1.0, %v2247
    %2260 = vrot.lane.b32.xlu0 %v2257, 96
    %v2261 = vpop.permute.xlu0 %2260
    %v2263 = vmul.f32 %v2258, %v2261
    %v2264 = vrot.slane %v2196, 7
    %v2266 = vmul.f32 %v2247, %v2264
    %v2267 = vadd.f32 %v2263, %v2266
    %2269 = vrot.lane.b32.xlu0 %v2267, 96
    %v2270 = vpop.permute.xlu0 %2269
    %vm2272 = vcmask 254977
    %2273 = vst.msk [vmem:[#allocation3] sm:$0x2] %vm2272, %v2270
    %v2274 = vrot.slane %v2267, 1
    %2275 = vrot.lane.b32.xlu0 %v2274, 96
    %v2276 = vpop.permute.xlu0 %2275
    %v2277 = vsel %vm1015, %v2276, 0
    %2279 = vmatpush.msra.mxu0 0.0
    %2280 = vmatpush.msra.mxu0 0.0
    %2281 = vmatpush.msra.mxu0 0.0
    %2282 = vmatpush.msra.mxu0 0.0
    %2283 = vmatpush.msra.mxu0 0.0
    %2284 = vmatpush.msra.mxu0 0.0
    %2285 = vmatpush.msra.mxu0 0.0
    %2286 = vmatpush.msra.mxu0 0.0
    %2287 = vmatpush.msra.mxu0 0.0
    %2288 = vmatpush.msra.mxu0 0.0
    %2289 = vmatpush.msra.mxu0 0.0
    %2290 = vmatpush.msra.mxu0 0.0
    %2291 = vmatpush.msra.mxu0 %v2133
    %2292 = vmatpush.msra.mxu0 %v2132
    %2293 = vmatpush.msra.mxu0 %v2131
    %2294 = vmatpush.msra.mxu0 %v2130
    %2295 = vmatmul.f32.gmra.mxu0 %v2277
    %v2296 = vpop.f32.mrf.mxu0
    %v2297 = vadd.f32 %v2134, %v2296
    %2298 = vdwg.mxu0
    %v2300 = vrot.slane %v2297, 6
    %v2302 = vadd.f32 %v2129, %v2300
    %v2303 = vxor.u32 %v2302, 2147483648
    %v2304 = vmul.f32 %v2303, 1.442695
    %v2305 = vpow.pop %v2304
    %v2306 = vadd.f32 %v2305, 1.0
    %v2307 = vrcp.pop %v2306
    %v2308 = vmul.f32 %v2306, %v2307
    %v2309 = vsub.f32 1.0, %v2308
    %v2310 = vmul.f32 %v2307, %v2309
    %v2311 = vadd.f32 %v2307, %v2310
    %vm2312 = vweird.f32 %v2306
    %vm2313 = vweird.f32 %v2307
    %vm2314 = vmor %vm2312, %vm2313
    %v2315 = vsel %vm2314, %v2307, %v2311
    %v2316 = vand.u32 2147483647, %v2306
    %vm2317 = vcmp.eq.f32.partialorder %v2316, 8.507059e+37
    %v2318 = vand.u32 %v2306, 2147483648
    %v2319 = vor.u32 1.1754944e-38, %v2318
    %v2320 = vsel %vm2317, %v2319, %v2315
    %v2321 = vmul.f32 1.0, %v2320
    %2322 = vrot.lane.b32.xlu0 %v2300, 64
    %v2323 = vpop.permute.xlu0 %2322
    %v2325 = vmul.f32 %v2321, %v2323
    %2327 = vrot.lane.b32.xlu0 %v2325, 64
    %v2328 = vpop.permute.xlu0 %2327
    %v2330 = vadd.f32 %v2129, %v2328
    %v2331 = vtanh.pop %v2330
    %v2332 = vsub.f32 1.0, %v2321
    %2334 = vrot.lane.b32.xlu0 %v2331, 96
    %v2335 = vpop.permute.xlu0 %2334
    %v2337 = vmul.f32 %v2332, %v2335
    %v2338 = vrot.slane %v2267, 7
    %v2340 = vmul.f32 %v2321, %v2338
    %v2341 = vadd.f32 %v2337, %v2340
    %2343 = vrot.lane.b32.xlu0 %v2341, 96
    %v2344 = vpop.permute.xlu0 %2343
    %vm2346 = vcmask 256002
    %2347 = vst.msk [vmem:[#allocation3] sm:$0x4] %vm2346, %v2344
    %v2348 = vrot.slane %v2341, 2
    %2349 = vrot.lane.b32.xlu0 %v2348, 96
    %v2350 = vpop.permute.xlu0 %2349
    %v2351 = vsel %vm1015, %v2350, 0
    %2353 = vmatpush.msra.mxu0 0.0
    %2354 = vmatpush.msra.mxu0 0.0
    %2355 = vmatpush.msra.mxu0 0.0
    %2356 = vmatpush.msra.mxu0 0.0
    %2357 = vmatpush.msra.mxu0 0.0
    %2358 = vmatpush.msra.mxu0 0.0
    %2359 = vmatpush.msra.mxu0 0.0
    %2360 = vmatpush.msra.mxu0 0.0
    %2361 = vmatpush.msra.mxu0 0.0
    %2362 = vmatpush.msra.mxu0 0.0
    %2363 = vmatpush.msra.mxu0 0.0
    %2364 = vmatpush.msra.mxu0 0.0
    %2365 = vmatpush.msra.mxu0 %v2133
    %2366 = vmatpush.msra.mxu0 %v2132
    %2367 = vmatpush.msra.mxu0 %v2131
    %2368 = vmatpush.msra.mxu0 %v2130
    %2369 = vmatmul.f32.gmra.mxu0 %v2351
    %v2370 = vpop.f32.mrf.mxu0
    %v2371 = vadd.f32 %v2134, %v2370
    %2372 = vdwg.mxu0
    %v2374 = vrot.slane %v2371, 5
    %v2376 = vadd.f32 %v2129, %v2374
    %v2377 = vxor.u32 %v2376, 2147483648
    %v2378 = vmul.f32 %v2377, 1.442695
    %v2379 = vpow.pop %v2378
    %v2380 = vadd.f32 %v2379, 1.0
    %v2381 = vrcp.pop %v2380
    %v2382 = vmul.f32 %v2380, %v2381
    %v2383 = vsub.f32 1.0, %v2382
    %v2384 = vmul.f32 %v2381, %v2383
    %v2385 = vadd.f32 %v2381, %v2384
    %vm2386 = vweird.f32 %v2380
    %vm2387 = vweird.f32 %v2381
    %vm2388 = vmor %vm2386, %vm2387
    %v2389 = vsel %vm2388, %v2381, %v2385
    %v2390 = vand.u32 2147483647, %v2380
    %vm2391 = vcmp.eq.f32.partialorder %v2390, 8.507059e+37
    %v2392 = vand.u32 %v2380, 2147483648
    %v2393 = vor.u32 1.1754944e-38, %v2392
    %v2394 = vsel %vm2391, %v2393, %v2389
    %v2395 = vmul.f32 1.0, %v2394
    %2396 = vrot.lane.b32.xlu0 %v2374, 64
    %v2397 = vpop.permute.xlu0 %2396
    %v2399 = vmul.f32 %v2395, %v2397
    %2401 = vrot.lane.b32.xlu0 %v2399, 64
    %v2402 = vpop.permute.xlu0 %2401
    %v2404 = vadd.f32 %v2129, %v2402
    %v2405 = vtanh.pop %v2404
    %v2406 = vsub.f32 1.0, %v2395
    %2408 = vrot.lane.b32.xlu0 %v2405, 96
    %v2409 = vpop.permute.xlu0 %2408
    %v2411 = vmul.f32 %v2406, %v2409
    %v2412 = vrot.slane %v2341, 7
    %v2414 = vmul.f32 %v2395, %v2412
    %v2415 = vadd.f32 %v2411, %v2414
    %2417 = vrot.lane.b32.xlu0 %v2415, 96
    %v2418 = vpop.permute.xlu0 %2417
    %vm2420 = vcmask 257027
    %2421 = vst.msk [vmem:[#allocation3] sm:$0x8] %vm2420, %v2418
    %v2422 = vrot.slane %v2415, 3
    %2423 = vrot.lane.b32.xlu0 %v2422, 96
    %v2424 = vpop.permute.xlu0 %2423
    %v2425 = vsel %vm1015, %v2424, 0
    %2427 = vmatpush.msra.mxu0 0.0
    %2428 = vmatpush.msra.mxu0 0.0
    %2429 = vmatpush.msra.mxu0 0.0
    %2430 = vmatpush.msra.mxu0 0.0
    %2431 = vmatpush.msra.mxu0 0.0
    %2432 = vmatpush.msra.mxu0 0.0
    %2433 = vmatpush.msra.mxu0 0.0
    %2434 = vmatpush.msra.mxu0 0.0
    %2435 = vmatpush.msra.mxu0 0.0
    %2436 = vmatpush.msra.mxu0 0.0
    %2437 = vmatpush.msra.mxu0 0.0
    %2438 = vmatpush.msra.mxu0 0.0
    %2439 = vmatpush.msra.mxu0 %v2133
    %2440 = vmatpush.msra.mxu0 %v2132
    %2441 = vmatpush.msra.mxu0 %v2131
    %2442 = vmatpush.msra.mxu0 %v2130
    %2443 = vmatmul.f32.gmra.mxu0 %v2425
    %v2444 = vpop.f32.mrf.mxu0
    %v2445 = vadd.f32 %v2134, %v2444
    %2446 = vdwg.mxu0
    %v2448 = vrot.slane %v2445, 4
    %v2450 = vadd.f32 %v2129, %v2448
    %v2451 = vxor.u32 %v2450, 2147483648
    %v2452 = vmul.f32 %v2451, 1.442695
    %v2453 = vpow.pop %v2452
    %v2454 = vadd.f32 %v2453, 1.0
    %v2455 = vrcp.pop %v2454
    %v2456 = vmul.f32 %v2454, %v2455
    %v2457 = vsub.f32 1.0, %v2456
    %v2458 = vmul.f32 %v2455, %v2457
    %v2459 = vadd.f32 %v2455, %v2458
    %vm2460 = vweird.f32 %v2454
    %vm2461 = vweird.f32 %v2455
    %vm2462 = vmor %vm2460, %vm2461
    %v2463 = vsel %vm2462, %v2455, %v2459
    %v2464 = vand.u32 2147483647, %v2454
    %vm2465 = vcmp.eq.f32.partialorder %v2464, 8.507059e+37
    %v2466 = vand.u32 %v2454, 2147483648
    %v2467 = vor.u32 1.1754944e-38, %v2466
    %v2468 = vsel %vm2465, %v2467, %v2463
    %v2469 = vmul.f32 1.0, %v2468
    %2470 = vrot.lane.b32.xlu0 %v2448, 64
    %v2471 = vpop.permute.xlu0 %2470
    %v2473 = vmul.f32 %v2469, %v2471
    %2475 = vrot.lane.b32.xlu0 %v2473, 64
    %v2476 = vpop.permute.xlu0 %2475
    %v2478 = vadd.f32 %v2129, %v2476
    %v2479 = vtanh.pop %v2478
    %v2480 = vsub.f32 1.0, %v2469
    %2482 = vrot.lane.b32.xlu0 %v2479, 96
    %v2483 = vpop.permute.xlu0 %2482
    %v2485 = vmul.f32 %v2480, %v2483
    %v2486 = vrot.slane %v2415, 7
    %v2488 = vmul.f32 %v2469, %v2486
    %v2489 = vadd.f32 %v2485, %v2488
    %2491 = vrot.lane.b32.xlu0 %v2489, 96
    %v2492 = vpop.permute.xlu0 %2491
    %vm2494 = vcmask 258052
    %2495 = vst.msk [vmem:[#allocation3] sm:$0x10] %vm2494, %v2492
    %v2496 = vrot.slane %v2489, 4
    %2497 = vrot.lane.b32.xlu0 %v2496, 96
    %v2498 = vpop.permute.xlu0 %2497
    %v2499 = vsel %vm1015, %v2498, 0
    %2501 = vmatpush.msra.mxu0 0.0
    %2502 = vmatpush.msra.mxu0 0.0
    %2503 = vmatpush.msra.mxu0 0.0
    %2504 = vmatpush.msra.mxu0 0.0
    %2505 = vmatpush.msra.mxu0 0.0
    %2506 = vmatpush.msra.mxu0 0.0
    %2507 = vmatpush.msra.mxu0 0.0
    %2508 = vmatpush.msra.mxu0 0.0
    %2509 = vmatpush.msra.mxu0 0.0
    %2510 = vmatpush.msra.mxu0 0.0
    %2511 = vmatpush.msra.mxu0 0.0
    %2512 = vmatpush.msra.mxu0 0.0
    %2513 = vmatpush.msra.mxu0 %v2133
    %2514 = vmatpush.msra.mxu0 %v2132
    %2515 = vmatpush.msra.mxu0 %v2131
    %2516 = vmatpush.msra.mxu0 %v2130
    %2517 = vmatmul.f32.gmra.mxu0 %v2499
    %v2518 = vpop.f32.mrf.mxu0
    %v2519 = vadd.f32 %v2134, %v2518
    %2520 = vdwg.mxu0
    %v2522 = vrot.slane %v2519, 3
    %v2524 = vadd.f32 %v2129, %v2522
    %v2525 = vxor.u32 %v2524, 2147483648
    %v2526 = vmul.f32 %v2525, 1.442695
    %v2527 = vpow.pop %v2526
    %v2528 = vadd.f32 %v2527, 1.0
    %v2529 = vrcp.pop %v2528
    %v2530 = vmul.f32 %v2528, %v2529
    %v2531 = vsub.f32 1.0, %v2530
    %v2532 = vmul.f32 %v2529, %v2531
    %v2533 = vadd.f32 %v2529, %v2532
    %vm2534 = vweird.f32 %v2528
    %vm2535 = vweird.f32 %v2529
    %vm2536 = vmor %vm2534, %vm2535
    %v2537 = vsel %vm2536, %v2529, %v2533
    %v2538 = vand.u32 2147483647, %v2528
    %vm2539 = vcmp.eq.f32.partialorder %v2538, 8.507059e+37
    %v2540 = vand.u32 %v2528, 2147483648
    %v2541 = vor.u32 1.1754944e-38, %v2540
    %v2542 = vsel %vm2539, %v2541, %v2537
    %v2543 = vmul.f32 1.0, %v2542
    %2544 = vrot.lane.b32.xlu0 %v2522, 64
    %v2545 = vpop.permute.xlu0 %2544
    %v2547 = vmul.f32 %v2543, %v2545
    %2549 = vrot.lane.b32.xlu0 %v2547, 64
    %v2550 = vpop.permute.xlu0 %2549
    %v2552 = vadd.f32 %v2129, %v2550
    %v2553 = vtanh.pop %v2552
    %v2554 = vsub.f32 1.0, %v2543
    %2556 = vrot.lane.b32.xlu0 %v2553, 96
    %v2557 = vpop.permute.xlu0 %2556
    %v2559 = vmul.f32 %v2554, %v2557
    %v2560 = vrot.slane %v2489, 7
    %v2562 = vmul.f32 %v2543, %v2560
    %v2563 = vadd.f32 %v2559, %v2562
    %2565 = vrot.lane.b32.xlu0 %v2563, 96
    %v2566 = vpop.permute.xlu0 %2565
    %vm2568 = vcmask 259077
    %2569 = vst.msk [vmem:[#allocation3] sm:$0x20] %vm2568, %v2566
    %v2570 = vrot.slane %v2563, 5
    %2571 = vrot.lane.b32.xlu0 %v2570, 96
    %v2572 = vpop.permute.xlu0 %2571
    %v2573 = vsel %vm1015, %v2572, 0
    %2575 = vmatpush.msra.mxu0 0.0
    %2576 = vmatpush.msra.mxu0 0.0
    %2577 = vmatpush.msra.mxu0 0.0
    %2578 = vmatpush.msra.mxu0 0.0
    %2579 = vmatpush.msra.mxu0 0.0
    %2580 = vmatpush.msra.mxu0 0.0
    %2581 = vmatpush.msra.mxu0 0.0
    %2582 = vmatpush.msra.mxu0 0.0
    %2583 = vmatpush.msra.mxu0 0.0
    %2584 = vmatpush.msra.mxu0 0.0
    %2585 = vmatpush.msra.mxu0 0.0
    %2586 = vmatpush.msra.mxu0 0.0
    %2587 = vmatpush.msra.mxu0 %v2133
    %2588 = vmatpush.msra.mxu0 %v2132
    %2589 = vmatpush.msra.mxu0 %v2131
    %2590 = vmatpush.msra.mxu0 %v2130
    %2591 = vmatmul.f32.gmra.mxu0 %v2573
    %v2592 = vpop.f32.mrf.mxu0
    %v2593 = vadd.f32 %v2134, %v2592
    %2594 = vdwg.mxu0
    %v2596 = vrot.slane %v2593, 2
    %v2598 = vadd.f32 %v2129, %v2596
    %v2599 = vxor.u32 %v2598, 2147483648
    %v2600 = vmul.f32 %v2599, 1.442695
    %v2601 = vpow.pop %v2600
    %v2602 = vadd.f32 %v2601, 1.0
    %v2603 = vrcp.pop %v2602
    %v2604 = vmul.f32 %v2602, %v2603
    %v2605 = vsub.f32 1.0, %v2604
    %v2606 = vmul.f32 %v2603, %v2605
    %v2607 = vadd.f32 %v2603, %v2606
    %vm2608 = vweird.f32 %v2602
    %vm2609 = vweird.f32 %v2603
    %vm2610 = vmor %vm2608, %vm2609
    %v2611 = vsel %vm2610, %v2603, %v2607
    %v2612 = vand.u32 2147483647, %v2602
    %vm2613 = vcmp.eq.f32.partialorder %v2612, 8.507059e+37
    %v2614 = vand.u32 %v2602, 2147483648
    %v2615 = vor.u32 1.1754944e-38, %v2614
    %v2616 = vsel %vm2613, %v2615, %v2611
    %v2617 = vmul.f32 1.0, %v2616
    %2618 = vrot.lane.b32.xlu0 %v2596, 64
    %v2619 = vpop.permute.xlu0 %2618
    %v2621 = vmul.f32 %v2617, %v2619
    %2623 = vrot.lane.b32.xlu0 %v2621, 64
    %v2624 = vpop.permute.xlu0 %2623
    %v2626 = vadd.f32 %v2129, %v2624
    %v2627 = vtanh.pop %v2626
    %v2628 = vsub.f32 1.0, %v2617
    %2630 = vrot.lane.b32.xlu0 %v2627, 96
    %v2631 = vpop.permute.xlu0 %2630
    %v2633 = vmul.f32 %v2628, %v2631
    %v2634 = vrot.slane %v2563, 7
    %v2636 = vmul.f32 %v2617, %v2634
    %v2637 = vadd.f32 %v2633, %v2636
    %2639 = vrot.lane.b32.xlu0 %v2637, 96
    %v2640 = vpop.permute.xlu0 %2639
    %vm2642 = vcmask 260102
    %2643 = vst.msk [vmem:[#allocation3] sm:$0x40] %vm2642, %v2640
    %v2644 = vrot.slane %v2637, 6
    %2645 = vrot.lane.b32.xlu0 %v2644, 96
    %v2646 = vpop.permute.xlu0 %2645
    %v2647 = vsel %vm1015, %v2646, 0
    %2649 = vmatpush.msra.mxu0 0.0
    %2650 = vmatpush.msra.mxu0 0.0
    %2651 = vmatpush.msra.mxu0 0.0
    %2652 = vmatpush.msra.mxu0 0.0
    %2653 = vmatpush.msra.mxu0 0.0
    %2654 = vmatpush.msra.mxu0 0.0
    %2655 = vmatpush.msra.mxu0 0.0
    %2656 = vmatpush.msra.mxu0 0.0
    %2657 = vmatpush.msra.mxu0 0.0
    %2658 = vmatpush.msra.mxu0 0.0
    %2659 = vmatpush.msra.mxu0 0.0
    %2660 = vmatpush.msra.mxu0 0.0
    %2661 = vmatpush.msra.mxu0 %v2133
    %2662 = vmatpush.msra.mxu0 %v2132
    %2663 = vmatpush.msra.mxu0 %v2131
    %2664 = vmatpush.msra.mxu0 %v2130
    %2665 = vmatmul.f32.gmra.mxu0 %v2647
    %v2666 = vpop.f32.mrf.mxu0
    %v2667 = vadd.f32 %v2134, %v2666
    %2668 = vdwg.mxu0
    %v2670 = vrot.slane %v2667, 1
    %v2672 = vadd.f32 %v2129, %v2670
    %v2673 = vxor.u32 %v2672, 2147483648
    %v2674 = vmul.f32 %v2673, 1.442695
    %v2675 = vpow.pop %v2674
    %v2676 = vadd.f32 %v2675, 1.0
    %v2677 = vrcp.pop %v2676
    %v2678 = vmul.f32 %v2676, %v2677
    %v2679 = vsub.f32 1.0, %v2678
    %v2680 = vmul.f32 %v2677, %v2679
    %v2681 = vadd.f32 %v2677, %v2680
    %vm2682 = vweird.f32 %v2676
    %vm2683 = vweird.f32 %v2677
    %vm2684 = vmor %vm2682, %vm2683
    %v2685 = vsel %vm2684, %v2677, %v2681
    %v2686 = vand.u32 2147483647, %v2676
    %vm2687 = vcmp.eq.f32.partialorder %v2686, 8.507059e+37
    %v2688 = vand.u32 %v2676, 2147483648
    %v2689 = vor.u32 1.1754944e-38, %v2688
    %v2690 = vsel %vm2687, %v2689, %v2685
    %v2691 = vmul.f32 1.0, %v2690
    %2692 = vrot.lane.b32.xlu0 %v2670, 64
    %v2693 = vpop.permute.xlu0 %2692
    %v2695 = vmul.f32 %v2691, %v2693
    %2697 = vrot.lane.b32.xlu0 %v2695, 64
    %v2698 = vpop.permute.xlu0 %2697
    %v2700 = vadd.f32 %v2129, %v2698
    %v2701 = vtanh.pop %v2700
    %v2702 = vsub.f32 1.0, %v2691
    %2704 = vrot.lane.b32.xlu0 %v2701, 96
    %v2705 = vpop.permute.xlu0 %2704
    %v2707 = vmul.f32 %v2702, %v2705
    %v2708 = vrot.slane %v2637, 7
    %v2710 = vmul.f32 %v2691, %v2708
    %v2711 = vadd.f32 %v2707, %v2710
    %2713 = vrot.lane.b32.xlu0 %v2711, 96
    %v2714 = vpop.permute.xlu0 %2713
    %vm2716 = vcmask 261127
    %2717 = vst.msk [vmem:[#allocation3] sm:$0x80] %vm2716, %v2714
    %v2718 = vld [vmem:[%s65] sm:$0xff]
    %v2719 = vld [vmem:[%s65 + $0x8] sm:$0xff]
    %v2720 = vld [vmem:[#allocation17] sm:$0x1]
    %v2721 = vld [vmem:[#allocation3] sm:$0xff]
    %v2722 = vmax.f32 %v2721, 0.0
    %v2724 = vperm.slane %v2720, 0
    %v2727 = vsel %vm273, %v2722, 0
    %2729 = vmatpush.msra.mxu0 0.0
    %2730 = vmatpush.msra.mxu0 0.0
    %2731 = vmatpush.msra.mxu0 0.0
    %2732 = vmatpush.msra.mxu0 0.0
    %2733 = vmatpush.msra.mxu0 0.0
    %2734 = vmatpush.msra.mxu0 0.0
    %2735 = vmatpush.msra.mxu0 0.0
    %2736 = vmatpush.msra.mxu0 0.0
    %2737 = vmatpush.msra.mxu0 0.0
    %2738 = vmatpush.msra.mxu0 0.0
    %2739 = vmatpush.msra.mxu0 0.0
    %2740 = vmatpush.msra.mxu0 0.0
    %2741 = vmatpush.msra.mxu0 0.0
    %2742 = vmatpush.msra.mxu0 0.0
    %2743 = vmatpush.msra.mxu0 %v2719
    %2744 = vmatpush.msra.mxu0 %v2718
    %2745 = vmatmul.f32.gmra.mxu0 %v2727
    %v2746 = vpop.f32.mrf.mxu0
    %v2747 = vadd.f32 %v2724, %v2746
    %2748 = vdwg.mxu0
    %vm2749 = vcmask 31744
    %2750 = vst.msk [vmem:[%s69] sm:$0xff] %vm2749, %v2747
    %v2751 = vld [vmem:[#allocation3] sm:$0xff]
    %v2752 = vmax.f32 %v2751, 0.0
    %2754 = vrot.lane.b32.xlu0 %v2752, 112
    %v2755 = vpop.permute.xlu0 %2754
    %v2756 = vsel %vm273, %v2755, 0
    %2758 = vmatpush.msra.mxu0 0.0
    %2759 = vmatpush.msra.mxu0 0.0
    %2760 = vmatpush.msra.mxu0 0.0
    %2761 = vmatpush.msra.mxu0 0.0
    %2762 = vmatpush.msra.mxu0 0.0
    %2763 = vmatpush.msra.mxu0 0.0
    %2764 = vmatpush.msra.mxu0 0.0
    %2765 = vmatpush.msra.mxu0 0.0
    %2766 = vmatpush.msra.mxu0 0.0
    %2767 = vmatpush.msra.mxu0 0.0
    %2768 = vmatpush.msra.mxu0 0.0
    %2769 = vmatpush.msra.mxu0 0.0
    %2770 = vmatpush.msra.mxu0 0.0
    %2771 = vmatpush.msra.mxu0 0.0
    %2772 = vmatpush.msra.mxu0 %v2719
    %2773 = vmatpush.msra.mxu0 %v2718
    %2774 = vmatmul.f32.gmra.mxu0 %v2756
    %v2775 = vpop.f32.mrf.mxu0
    %v2776 = vadd.f32 %v2724, %v2775
    %2777 = vdwg.mxu0
    %s2778 = scalar_lea.vmem %s69, 8
    %2779 = vst.msk [vmem:[%s2778] sm:$0xff] %vm2749, %v2776
    // Predicated region
    $region174: #{festgcn_forward.1} parent=1 // pred_check
      _
    $region175: #{festgcn_forward.1} parent=1 // pred_check_branch
      %2781 = sbr.rel (0) target = $region177
    $region176: #{festgcn_forward.1} parent=1 // pred_region
      _
    $region177: #{festgcn_forward.1} parent=1 // pred_fallthru
      _
    // Predicated region
    $region178: #{festgcn_forward.1} parent=1 // pred_check
      _
    $region179: #{festgcn_forward.1} parent=1 // pred_check_branch
      %2783 = sbr.rel (0) target = $region181
    $region180: #{festgcn_forward.1} parent=1 // pred_region
      _
    $region181: #{festgcn_forward.1} parent=1 // pred_fallthru
      _
    %2784 = vsyncpa [#allocation5], 1
    %2785 = vsyncpa [#allocation7], 1
    %2786 = vsyncpa [#allocation10], 1
    %2787 = vsyncpa [#allocation13], 1
    %2788 = vsyncpa [#allocation16], 1

</llo_original>
